<compile_context>
chip_gen: v7x
topology: tpu7x:2x2x1
jax: 0.10.0
libtpu: 0.0.40
codegen_flags: <defaults>
</compile_context>

<pallas_src>
import functools

import jax
import jax.numpy as jnp
from jax.experimental import pallas as pl
from jax.experimental.pallas import tpu as pltpu

INPUT_SIZE = 2048
H1, H2, H3, OUT = 256, 124, 32, 1
H2_PAD = 128  # lane-aligned padding of the 124-wide hidden layer


def _round_up(n, m):
    return ((n + m - 1) // m) * m


def _mlp_kernel(x_ref, w1_ref, b1_ref, w2_ref, b2_ref, w3_ref, b3_ref,
                w4_ref, b4_ref, o_ref):
    # fc1 + relu: cast x f32 -> bf16 in-kernel (VPU work hidden under the MXU),
    # bf16 x bf16 -> f32 accumulate on the MXU (dominant matmul).
    x = x_ref[...].astype(jnp.bfloat16)
    h = jnp.dot(x, w1_ref[...], preferred_element_type=jnp.float32)
    h = jnp.maximum(h + b1_ref[...], 0.0)
    # fc2 + relu (output padded 124 -> 128, fully lane-dense).
    h = jnp.dot(h.astype(jnp.bfloat16), w2_ref[...],
                preferred_element_type=jnp.float32)
    h = jnp.maximum(h + b2_ref[...], 0.0)
    # fc3 + relu
    h = jnp.dot(h.astype(jnp.bfloat16), w3_ref[...],
                preferred_element_type=jnp.float32)
    h = jnp.maximum(h + b3_ref[...], 0.0)
    # fc_output (32 -> 1): VPU multiply + XLU lane reduction in f32 instead of
    # an N=1 MXU matmul; sigmoid's exp/recip land on the EUP slot.
    z = jnp.sum(h * w4_ref[...], axis=-1, keepdims=True) + b4_ref[...]
    o_ref[...] = jax.nn.sigmoid(z).astype(o_ref.dtype)


def _pick_block(B, block_b):
    """Batch tile: multiple of 256, >=2 grid steps when possible (v7x 2 TCs)."""
    granule = 256
    b_pad = _round_up(max(B, 1), granule)
    n = b_pad // granule
    if n <= 1:
        return granule
    # Split into at least two grid steps so both v7x TensorCores receive work;
    # cap at block_b (1024 keeps the f32 x double-buffer inside every
    # generation's VMEM budget: 2 x 8 MiB at blk=1024).
    return min(block_b, ((n + 1) // 2) * granule)


@functools.partial(jax.jit, static_argnames=("block_b",))
def mlp_forward(x, padded_params, block_b=1024):
    """x: (B, 2048) f32 (or bf16).  padded_params: output of pad_and_cast_params."""
    B = x.shape[0]
    w1, b1, w2, b2, w3, b3, w4, b4 = padded_params

    blk = _pick_block(B, block_b)

    full = lambda arr: pl.BlockSpec(arr.shape, lambda i: (0, 0))

    # Explicit scoped-VMEM budget: double-buffered x tile + double-buffered
    # resident weights + in-kernel intermediates (bf16 x copy, f32/bf16 h) +
    # headroom.  Clamped under v7x's 64 MiB physical VMEM (v5e/v6e have 128).
    w_bytes = sum(a.size * a.dtype.itemsize for a in padded_params)
    x_tile_bytes = blk * INPUT_SIZE * x.dtype.itemsize
    scratch_bytes = blk * (INPUT_SIZE * 2                     # bf16 copy of x tile
                           + (H1 + H2_PAD + H3) * (4 + 2)     # f32 h + bf16 casts
                           + OUT * 4)
    vmem_limit = int(2 * x_tile_bytes + 2 * w_bytes + scratch_bytes + (8 << 20))
    vmem_limit = min(vmem_limit, 56 << 20)

    flops = 2 * B * (INPUT_SIZE * H1 + H1 * H2_PAD + H2_PAD * H3 + H3 * OUT)
    bytes_accessed = (x.size * x.dtype.itemsize + w_bytes + B * OUT * 4)

    return pl.pallas_call(
        _mlp_kernel,
        out_shape=jax.ShapeDtypeStruct((B, OUT), jnp.float32),
        grid_spec=pltpu.PrefetchScalarGridSpec(
            num_scalar_prefetch=0,
            grid=(pl.cdiv(B, blk),),
            in_specs=[
                pl.BlockSpec((blk, INPUT_SIZE), lambda i: (i, 0)),
                full(w1), full(b1),   # constant block index -> fetched once, resident
                full(w2), full(b2),
                full(w3), full(b3),
                full(w4), full(b4),
            ],
            out_specs=pl.BlockSpec((blk, OUT), lambda i: (i, 0)),
        ),
        compiler_params=pltpu.CompilerParams(
            dimension_semantics=("parallel",),
            vmem_limit_bytes=vmem_limit),
        cost_estimate=pl.CostEstimate(
            flops=flops, transcendentals=B, bytes_accessed=bytes_accessed),
    )(x, w1, b1, w2, b2, w3, b3, w4, b4)


def init_params(key):
    """Unpadded f32 params mimicking PyTorch nn.Linear init (U(+-1/sqrt(fan_in)))."""
    dims = [(INPUT_SIZE, H1), (H1, H2), (H2, H3), (H3, OUT)]
    params = []
    for idx, (fan_in, fan_out) in enumerate(dims):
        kw, kb = jax.random.split(jax.random.fold_in(key, idx))
        bound = 1.0 / jnp.sqrt(fan_in)
        w = jax.random.uniform(kw, (fan_in, fan_out), jnp.float32, -bound, bound)
        b = jax.random.uniform(kb, (1, fan_out), jnp.float32, -bound, bound)
        params.extend([w, b])
    return tuple(params)


def pad_and_cast_params(params):
    """Zero-pad the 124-wide layer to 128, cast matmul weights to bf16
    (biases stay f32), and store the final (32,1) weight as a (1,32) f32 row
    for the in-kernel VPU dot.  Exact transformation: padded fc2 units produce
    relu(0*x + 0) = 0 and the corresponding fc3 weight rows are zero."""
    w1, b1, w2, b2, w3, b3, w4, b4 = params
    pad_c = H2_PAD - H2
    w2p = jnp.pad(w2, ((0, 0), (0, pad_c)))
    b2p = jnp.pad(b2, ((0, 0), (0, pad_c)))
    w3p = jnp.pad(w3, ((0, pad_c), (0, 0)))
    bf = lambda a: a.astype(jnp.bfloat16)
    w4_row = w4.reshape(1, H3).astype(jnp.float32)
    return (bf(w1), b1, bf(w2p), b2p, bf(w3p), b3, w4_row, b4)


def mlp_reference_f32(x, params):
    """Pure f32 reference matching the PyTorch module semantics."""
    w1, b1, w2, b2, w3, b3, w4, b4 = params
    h = jax.nn.relu(x @ w1 + b1)
    h = jax.nn.relu(h @ w2 + b2)
    h = jax.nn.relu(h @ w3 + b3)
    return jax.nn.sigmoid(h @ w4 + b4)


def mlp_reference_mixed(x, padded_params):
    """Reference mirroring the kernel's dtype pipeline (bf16 matmul operands,
    f32 accumulation, f32 VPU dot for the final 32->1 layer)."""
    w1, b1, w2, b2, w3, b3, w4_row, b4 = padded_params
    dot = lambda a, b: jnp.dot(a.astype(jnp.bfloat16), b,
                               preferred_element_type=jnp.float32)
    h = jax.nn.relu(dot(x, w1) + b1)
    h = jax.nn.relu(dot(h, w2) + b2)
    h = jax.nn.relu(dot(h, w3) + b3)
    z = jnp.sum(h * w4_row, axis=-1, keepdims=True) + b4
    return jax.nn.sigmoid(z)


if __name__ == "__main__":
    key = jax.random.PRNGKey(0)
    kx, kp = jax.random.split(key)

    # Small smoke-test batch that still exercises a 2-step grid + a partial
    # last tile (384 = 256 + 128 rows).
    B = 384
    x = jax.random.normal(kx, (B, INPUT_SIZE), jnp.float32)

    params = init_params(kp)
    padded = pad_and_cast_params(params)

    out = jax.block_until_ready(mlp_forward(x, padded))
    assert out.shape == (B, OUT), out.shape

    # Tight check vs. a reference with the identical mixed-precision pipeline.
    ref_mixed = mlp_reference_mixed(x, padded)
    assert jnp.allclose(out, ref_mixed, atol=1e-4, rtol=1e-4), "mismatch vs mixed reference"

    # Loose sanity check vs. the pure-f32 PyTorch-semantics reference
    # (difference is only bf16 matmul-operand rounding).
    ref_f32 = mlp_reference_f32(x, params)
    assert float(jnp.max(jnp.abs(out - ref_f32))) < 5e-2, "diverged from f32 reference"

    print("KERNEL_OK")
</pallas_src>

<mosaic_0001>
module attributes {stable_mosaic.version = 11 : i64} {
  func.func @_mlp_kernel(%arg0: i32, %arg1: memref<256x2048xf32, #tpu.memory_space<vmem>>, %arg2: memref<2048x256xbf16, #tpu.memory_space<vmem>>, %arg3: memref<1x256xf32, #tpu.memory_space<vmem>>, %arg4: memref<256x128xbf16, #tpu.memory_space<vmem>>, %arg5: memref<1x128xf32, #tpu.memory_space<vmem>>, %arg6: memref<128x32xbf16, #tpu.memory_space<vmem>>, %arg7: memref<1x32xf32, #tpu.memory_space<vmem>>, %arg8: memref<1x32xf32, #tpu.memory_space<vmem>>, %arg9: memref<1x1xf32, #tpu.memory_space<vmem>>, %arg10: memref<256x1xf32, #tpu.memory_space<vmem>>) attributes {dimension_semantics = [#tpu.dimension_semantics<parallel>], iteration_bounds = array<i64: 2>, scalar_prefetch = 0 : i64, scratch_operands = 0 : i64, tpu.core_type = #tpu.core_type<tc>, window_params = [{transform_indices = @transform_0, window_bounds = array<i64: 256, 2048>}, {pipeline_mode = #tpu.pipeline_mode<synchronous>, transform_indices = @transform_1, window_bounds = array<i64: 2048, 256>}, {pipeline_mode = #tpu.pipeline_mode<synchronous>, transform_indices = @transform_2, window_bounds = array<i64: 1, 256>}, {pipeline_mode = #tpu.pipeline_mode<synchronous>, transform_indices = @transform_3, window_bounds = array<i64: 256, 128>}, {pipeline_mode = #tpu.pipeline_mode<synchronous>, transform_indices = @transform_4, window_bounds = array<i64: 1, 128>}, {pipeline_mode = #tpu.pipeline_mode<synchronous>, transform_indices = @transform_5, window_bounds = array<i64: 128, 32>}, {pipeline_mode = #tpu.pipeline_mode<synchronous>, transform_indices = @transform_6, window_bounds = array<i64: 1, 32>}, {pipeline_mode = #tpu.pipeline_mode<synchronous>, transform_indices = @transform_7, window_bounds = array<i64: 1, 32>}, {pipeline_mode = #tpu.pipeline_mode<synchronous>, transform_indices = @transform_8, window_bounds = array<i64: 1, 1>}, {transform_indices = @transform_9, window_bounds = array<i64: 256, 1>}]} {
    %c0 = arith.constant 0 : index
    %c0_0 = arith.constant 0 : index
    %0 = vector.load %arg1[%c0, %c0_0] : memref<256x2048xf32, #tpu.memory_space<vmem>>, vector<256x2048xf32>
    %1 = arith.truncf %0 : vector<256x2048xf32> to vector<256x2048xbf16>
    %c0_1 = arith.constant 0 : index
    %c0_2 = arith.constant 0 : index
    %2 = vector.load %arg2[%c0_1, %c0_2] : memref<2048x256xbf16, #tpu.memory_space<vmem>>, vector<2048x256xbf16>
    %cst = arith.constant dense<0.000000e+00> : vector<256x256xf32>
    %3 = tpu.matmul %1, %2, %cst {dimension_numbers = #tpu.dot_dimension_numbers<[1], [0], [0], [1], [0, 0, 1, 1], [], []>} : vector<256x2048xbf16>, vector<2048x256xbf16>, vector<256x256xf32> -> vector<256x256xf32>
    %c0_3 = arith.constant 0 : index
    %c0_4 = arith.constant 0 : index
    %4 = vector.load %arg3[%c0_3, %c0_4] : memref<1x256xf32, #tpu.memory_space<vmem>>, vector<1x256xf32>
    %5 = vector.broadcast %4 : vector<1x256xf32> to vector<256x256xf32>
    %6 = arith.addf %3, %5 : vector<256x256xf32>
    %cst_5 = arith.constant 0.000000e+00 : f32
    %7 = vector.broadcast %cst_5 : f32 to vector<256x256xf32>
    %8 = arith.maximumf %6, %7 : vector<256x256xf32>
    %9 = arith.truncf %8 : vector<256x256xf32> to vector<256x256xbf16>
    %c0_6 = arith.constant 0 : index
    %c0_7 = arith.constant 0 : index
    %10 = vector.load %arg4[%c0_6, %c0_7] : memref<256x128xbf16, #tpu.memory_space<vmem>>, vector<256x128xbf16>
    %cst_8 = arith.constant dense<0.000000e+00> : vector<256x128xf32>
    %11 = tpu.matmul %9, %10, %cst_8 {dimension_numbers = #tpu.dot_dimension_numbers<[1], [0], [0], [1], [0, 0, 1, 1], [], []>} : vector<256x256xbf16>, vector<256x128xbf16>, vector<256x128xf32> -> vector<256x128xf32>
    %c0_9 = arith.constant 0 : index
    %c0_10 = arith.constant 0 : index
    %12 = vector.load %arg5[%c0_9, %c0_10] : memref<1x128xf32, #tpu.memory_space<vmem>>, vector<1x128xf32>
    %13 = vector.broadcast %12 : vector<1x128xf32> to vector<256x128xf32>
    %14 = arith.addf %11, %13 : vector<256x128xf32>
    %cst_11 = arith.constant 0.000000e+00 : f32
    %15 = vector.broadcast %cst_11 : f32 to vector<256x128xf32>
    %16 = arith.maximumf %14, %15 : vector<256x128xf32>
    %17 = arith.truncf %16 : vector<256x128xf32> to vector<256x128xbf16>
    %c0_12 = arith.constant 0 : index
    %c0_13 = arith.constant 0 : index
    %18 = vector.load %arg6[%c0_12, %c0_13] : memref<128x32xbf16, #tpu.memory_space<vmem>>, vector<128x32xbf16>
    %cst_14 = arith.constant dense<0.000000e+00> : vector<256x32xf32>
    %19 = tpu.matmul %17, %18, %cst_14 {dimension_numbers = #tpu.dot_dimension_numbers<[1], [0], [0], [1], [0, 0, 1, 1], [], []>} : vector<256x128xbf16>, vector<128x32xbf16>, vector<256x32xf32> -> vector<256x32xf32>
    %c0_15 = arith.constant 0 : index
    %c0_16 = arith.constant 0 : index
    %20 = vector.load %arg7[%c0_15, %c0_16] : memref<1x32xf32, #tpu.memory_space<vmem>>, vector<1x32xf32>
    %21 = vector.broadcast %20 : vector<1x32xf32> to vector<256x32xf32>
    %22 = arith.addf %19, %21 : vector<256x32xf32>
    %cst_17 = arith.constant 0.000000e+00 : f32
    %23 = vector.broadcast %cst_17 : f32 to vector<256x32xf32>
    %24 = arith.maximumf %22, %23 : vector<256x32xf32>
    %c0_18 = arith.constant 0 : index
    %c0_19 = arith.constant 0 : index
    %25 = vector.load %arg8[%c0_18, %c0_19] : memref<1x32xf32, #tpu.memory_space<vmem>>, vector<1x32xf32>
    %26 = vector.broadcast %25 : vector<1x32xf32> to vector<256x32xf32>
    %27 = arith.mulf %24, %26 : vector<256x32xf32>
    %cst_20 = arith.constant dense<0.000000e+00> : vector<256xf32>
    %28 = vector.multi_reduction <add>, %27, %cst_20 [1] : vector<256x32xf32> to vector<256xf32>
    %29 = vector.shape_cast %28 : vector<256xf32> to vector<256x1xf32>
    %c0_21 = arith.constant 0 : index
    %c0_22 = arith.constant 0 : index
    %30 = vector.load %arg9[%c0_21, %c0_22] : memref<1x1xf32, #tpu.memory_space<vmem>>, vector<1x1xf32>
    %31 = vector.broadcast %30 : vector<1x1xf32> to vector<256x1xf32>
    %32 = arith.addf %29, %31 : vector<256x1xf32>
    %33 = arith.negf %32 : vector<256x1xf32>
    %34 = math.exp %33 : vector<256x1xf32>
    %cst_23 = arith.constant 1.000000e+00 : f32
    %35 = vector.broadcast %cst_23 : f32 to vector<256x1xf32>
    %36 = arith.addf %35, %34 : vector<256x1xf32>
    %37 = arith.divf %35, %36 : vector<256x1xf32>
    %c0_24 = arith.constant 0 : index
    %c0_25 = arith.constant 0 : index
    %38 = vector.load %arg10[%c0_24, %c0_25] : memref<256x1xf32, #tpu.memory_space<vmem>>, vector<256x1xf32>
    tpu.vector_store %arg10[%c0_24, %c0_25], %37 {strides = array<i32>} : memref<256x1xf32, #tpu.memory_space<vmem>>, vector<256x1xf32>,
    return
  }
  func.func @transform_0(%arg0: i32) -> (i32, i32) {
    %c0_i32 = arith.constant 0 : i32
    %c0_i32_0 = arith.constant 0 : i32
    return %arg0, %c0_i32 : i32, i32
  }
  func.func @transform_1(%arg0: i32) -> (i32, i32) {
    %c0_i32 = arith.constant 0 : i32
    %c0_i32_0 = arith.constant 0 : i32
    %c0_i32_1 = arith.constant 0 : i32
    return %c0_i32, %c0_i32_0 : i32, i32
  }
  func.func @transform_2(%arg0: i32) -> (i32, i32) {
    %c0_i32 = arith.constant 0 : i32
    %c0_i32_0 = arith.constant 0 : i32
    %c0_i32_1 = arith.constant 0 : i32
    return %c0_i32, %c0_i32_0 : i32, i32
  }
  func.func @transform_3(%arg0: i32) -> (i32, i32) {
    %c0_i32 = arith.constant 0 : i32
    %c0_i32_0 = arith.constant 0 : i32
    %c0_i32_1 = arith.constant 0 : i32
    return %c0_i32, %c0_i32_0 : i32, i32
  }
  func.func @transform_4(%arg0: i32) -> (i32, i32) {
    %c0_i32 = arith.constant 0 : i32
    %c0_i32_0 = arith.constant 0 : i32
    %c0_i32_1 = arith.constant 0 : i32
    return %c0_i32, %c0_i32_0 : i32, i32
  }
  func.func @transform_5(%arg0: i32) -> (i32, i32) {
    %c0_i32 = arith.constant 0 : i32
    %c0_i32_0 = arith.constant 0 : i32
    %c0_i32_1 = arith.constant 0 : i32
    return %c0_i32, %c0_i32_0 : i32, i32
  }
  func.func @transform_6(%arg0: i32) -> (i32, i32) {
    %c0_i32 = arith.constant 0 : i32
    %c0_i32_0 = arith.constant 0 : i32
    %c0_i32_1 = arith.constant 0 : i32
    return %c0_i32, %c0_i32_0 : i32, i32
  }
  func.func @transform_7(%arg0: i32) -> (i32, i32) {
    %c0_i32 = arith.constant 0 : i32
    %c0_i32_0 = arith.constant 0 : i32
    %c0_i32_1 = arith.constant 0 : i32
    return %c0_i32, %c0_i32_0 : i32, i32
  }
  func.func @transform_8(%arg0: i32) -> (i32, i32) {
    %c0_i32 = arith.constant 0 : i32
    %c0_i32_0 = arith.constant 0 : i32
    %c0_i32_1 = arith.constant 0 : i32
    return %c0_i32, %c0_i32_0 : i32, i32
  }
  func.func @transform_9(%arg0: i32) -> (i32, i32) {
    %c0_i32 = arith.constant 0 : i32
    %c0_i32_0 = arith.constant 0 : i32
    return %arg0, %c0_i32 : i32, i32
  }
}

</mosaic_0001>

<llo_original>
// kernel: mlp_forward.1
$region0: #{mlp_forward.1}
  #allocation0 [shape = 'u32[]', space=smem, size = 0x4, offset = 0x4, fixed_abs, tag = 'smem constant byte address 0x4 - core index']
  #allocation1 [shape = 'u32[144,128]{1,0:T(1,128)}', space=vmem, size = 0x12000, scoped, tag = 'internal scratch']
  #allocation2 [shape = 'f32[1,1]{1,0:T(1,128)S(1)}', space=vmem, size = 0x200, scoped, tag = 'scoped memory for mlp_forward.1']
  %s0 = inlined_call_operand.hbm [shape: f32[384,2048], index: 0, kind: input, shape index: {}]
  %s1 = inlined_call_operand.hbm [shape: bf16[2048,256], index: 1, kind: input, shape index: {}]
  %s2 = inlined_call_operand.hbm [shape: f32[1,256], index: 2, kind: input, shape index: {}]
  %s3 = inlined_call_operand.hbm [shape: bf16[256,128], index: 3, kind: input, shape index: {}]
  %s4 = inlined_call_operand.hbm [shape: f32[1,128], index: 4, kind: input, shape index: {}]
  %s5 = inlined_call_operand.vmem [shape: bf16[128,32], index: 5, kind: input, shape index: {}]
  %s6 = inlined_call_operand.hbm [shape: f32[1,32], index: 6, kind: input, shape index: {}]
  %s7 = inlined_call_operand.hbm [shape: f32[1,32], index: 7, kind: input, shape index: {}]
  %s8 = inlined_call_operand.<no memory space> [shape: f32[1,1], index: 8, kind: input, shape index: {}]
  %s9 = inlined_call_operand.vmem [shape: f32[384,1], index: 9, kind: output, shape index: {}]
  %s10 = sld [smem:[#allocation0]]
  $region145: #{mlp_forward.1} parent=0
    _
  %s12 = ssub.s32 1, %s10
  %s13 = scalar_select 0, %s12, %s10
  %v14 = vstv %s8
  %15 = vst [vmem:[#allocation2] sm:$0x1] %v14
  $region1: #{mlp_forward.1} parent=0
    #allocation3 [shape = 'u8[4194304]{0}', space=vmem, size = 0x400000, scoped, tag = 'input window, operand 0']
    #allocation4 [shape = 's32[2]{0}', space=sflag, size = 0x8, scoped, tag = 'scoped memory for mlp_forward.1']
    #allocation5 [shape = 'u8[1048576]{0}', space=vmem, size = 0x100000, scoped, tag = 'input window, operand 1, single buffered']
    #allocation6 [shape = 's32[1]{0}', space=sflag, size = 0x4, scoped, tag = 'scoped memory for mlp_forward.1']
    #allocation7 [shape = 'u8[1024]{0}', space=vmem, size = 0x400, scoped, tag = 'input window, operand 2, single buffered']
    #allocation8 [shape = 'u8[65536]{0}', space=vmem, size = 0x10000, scoped, tag = 'input window, operand 3, single buffered']
    #allocation9 [shape = 's32[1]{0}', space=sflag, size = 0x4, scoped, tag = 'scoped memory for mlp_forward.1']
    #allocation10 [shape = 'u8[512]{0}', space=vmem, size = 0x400, scoped, tag = 'input window, operand 4, single buffered']
    #allocation11 [shape = 'u8[512]{0}', space=vmem, size = 0x400, scoped, tag = 'input window, operand 6, single buffered']
    #allocation12 [shape = 's32[1]{0}', space=sflag, size = 0x4, scoped, tag = 'scoped memory for mlp_forward.1']
    #allocation13 [shape = 'u8[512]{0}', space=vmem, size = 0x400, scoped, tag = 'input window, operand 7, single buffered']
    #allocation14 [shape = 'u8[262144]{0}', space=vmem, size = 0x40000, scoped, tag = 'output window, operand 0']
    %16 = vsyncpa [#allocation4], 0
    %s17 = scalar_lea.sflag [#allocation4], 1
    %18 = vsyncpa %s17, 0
    %19 = vsyncpa [#allocation6], 0
    %20 = vsyncpa [#allocation9], 0
    %21 = vsyncpa [#allocation12], 0
    loop: start=0, step=1, limit=4
    $region2: #{mlp_forward.1} parent=1 // loop_pre_header
      _
    $region3: #{mlp_forward.1} parent=1 // loop_header
      %s23 = sphi 0, %s27
      %p24 = scmp.ge.s32.totalorder %s23, 4
      %s33 = sphi 0, %s35
      %s36 = sphi 0, %s33
      %s37 = sphi 0, %s36
      %s53 = sphi 0, %s37
      %s57 = sphi 0, %s57
      %s59 = sphi 0, %s57
      %s60 = sphi 0, %s59
      %s74 = sphi 0, %s60
      %s78 = sphi 0, %s78
      %s80 = sphi 0, %s78
      %s81 = sphi 0, %s80
      %s95 = sphi 0, %s81
      %s99 = sphi 0, %s99
      %s101 = sphi 0, %s99
      %s102 = sphi 0, %s101
      %s116 = sphi 0, %s102
      %s120 = sphi 0, %s120
      %s122 = sphi 0, %s120
      %s123 = sphi 0, %s122
      %s137 = sphi 0, %s123
      %s141 = sphi 0, %s141
      %s143 = sphi 0, %s141
      %s144 = sphi 0, %s143
      %s158 = sphi 0, %s144
      %s162 = sphi 0, %s162
      %s164 = sphi 0, %s162
      %s165 = sphi 0, %s164
      %s179 = sphi 0, %s165
      %s183 = sphi 0, %s183
      %s185 = sphi 0, %s183
      %s186 = sphi 0, %s185
      %s200 = sphi 0, %s186
      %s204 = sphi 0, %s204
      %s206 = sphi 0, %s204
      %s207 = sphi 0, %s206
      %s221 = sphi 0, %s207
      %s227 = sphi 0, %s229
      %s230 = sphi 0, %s227
      %s231 = sphi 0, %s230
      %s247 = sphi 0, %s231
    $region4: #{mlp_forward.1} parent=1 // loop_header_branch
      %26 = sbr.rel (%p24) target = $region8
    $region5: #{mlp_forward.1} parent=1 // loop_body
      %s28 = ssub.s32 %s23, 1
      %s29 = ssub.s32 %s23, 2
      %s30 = sadd.s32 %s23, 1
      %s31 = ssub.s32 %s23, %s30
      %p32 = scmp.eq.s32.totalorder %s31, 0
      %s34 = sadd.s32 %s33, 1
      %s35 = scalar_select %p32, %s33, %s34
      %p38 = pneg %p32
      %p39 = scmp.eq.s32.totalorder %s23, 1
      %p40 = por %p38, %p39
      %p41 = scmp.ne.s32.totalorder %s33, %s36
      %p42 = scmp.eq.s32.totalorder %s23, 0
      %p43 = por %p41, %p42
      %p44 = scmp.ne.s32.totalorder %s33, %s36
      %p45 = scmp.eq.s32.totalorder %s28, 1
      %p46 = por %p44, %p45
      %p47 = scmp.ne.s32.totalorder %s36, %s37
      %p48 = scmp.eq.s32.totalorder %s28, 0
      %p49 = por %p47, %p48
      %p50 = scmp.ne.s32.totalorder %s36, %s37
      %p51 = scmp.eq.s32.totalorder %s29, 1
      %p52 = por %p50, %p51
      %p54 = scmp.ne.s32.totalorder %s37, %s53
      %p55 = scmp.eq.s32.totalorder %s29, 0
      %p56 = por %p54, %p55
      %s58 = sadd.s32 %s57, 1
      %p61 = scmp.eq.s32.totalorder %s23, 1
      %p62 = scmp.ne.s32.totalorder %s57, %s59
      %p63 = scmp.eq.s32.totalorder %s23, 0
      %p64 = por %p62, %p63
      %p65 = scmp.ne.s32.totalorder %s57, %s59
      %p66 = scmp.eq.s32.totalorder %s28, 1
      %p67 = por %p65, %p66
      %p68 = scmp.ne.s32.totalorder %s59, %s60
      %p69 = scmp.eq.s32.totalorder %s28, 0
      %p70 = por %p68, %p69
      %p71 = scmp.ne.s32.totalorder %s59, %s60
      %p72 = scmp.eq.s32.totalorder %s29, 1
      %p73 = por %p71, %p72
      %p75 = scmp.ne.s32.totalorder %s60, %s74
      %p76 = scmp.eq.s32.totalorder %s29, 0
      %p77 = por %p75, %p76
      %s79 = sadd.s32 %s78, 1
      %p82 = scmp.eq.s32.totalorder %s23, 1
      %p83 = scmp.ne.s32.totalorder %s78, %s80
      %p84 = scmp.eq.s32.totalorder %s23, 0
      %p85 = por %p83, %p84
      %p86 = scmp.ne.s32.totalorder %s78, %s80
      %p87 = scmp.eq.s32.totalorder %s28, 1
      %p88 = por %p86, %p87
      %p89 = scmp.ne.s32.totalorder %s80, %s81
      %p90 = scmp.eq.s32.totalorder %s28, 0
      %p91 = por %p89, %p90
      %p92 = scmp.ne.s32.totalorder %s80, %s81
      %p93 = scmp.eq.s32.totalorder %s29, 1
      %p94 = por %p92, %p93
      %p96 = scmp.ne.s32.totalorder %s81, %s95
      %p97 = scmp.eq.s32.totalorder %s29, 0
      %p98 = por %p96, %p97
      %s100 = sadd.s32 %s99, 1
      %p103 = scmp.eq.s32.totalorder %s23, 1
      %p104 = scmp.ne.s32.totalorder %s99, %s101
      %p105 = scmp.eq.s32.totalorder %s23, 0
      %p106 = por %p104, %p105
      %p107 = scmp.ne.s32.totalorder %s99, %s101
      %p108 = scmp.eq.s32.totalorder %s28, 1
      %p109 = por %p107, %p108
      %p110 = scmp.ne.s32.totalorder %s101, %s102
      %p111 = scmp.eq.s32.totalorder %s28, 0
      %p112 = por %p110, %p111
      %p113 = scmp.ne.s32.totalorder %s101, %s102
      %p114 = scmp.eq.s32.totalorder %s29, 1
      %p115 = por %p113, %p114
      %p117 = scmp.ne.s32.totalorder %s102, %s116
      %p118 = scmp.eq.s32.totalorder %s29, 0
      %p119 = por %p117, %p118
      %s121 = sadd.s32 %s120, 1
      %p124 = scmp.eq.s32.totalorder %s23, 1
      %p125 = scmp.ne.s32.totalorder %s120, %s122
      %p126 = scmp.eq.s32.totalorder %s23, 0
      %p127 = por %p125, %p126
      %p128 = scmp.ne.s32.totalorder %s120, %s122
      %p129 = scmp.eq.s32.totalorder %s28, 1
      %p130 = por %p128, %p129
      %p131 = scmp.ne.s32.totalorder %s122, %s123
      %p132 = scmp.eq.s32.totalorder %s28, 0
      %p133 = por %p131, %p132
      %p134 = scmp.ne.s32.totalorder %s122, %s123
      %p135 = scmp.eq.s32.totalorder %s29, 1
      %p136 = por %p134, %p135
      %p138 = scmp.ne.s32.totalorder %s123, %s137
      %p139 = scmp.eq.s32.totalorder %s29, 0
      %p140 = por %p138, %p139
      %s142 = sadd.s32 %s141, 1
      %p145 = scmp.eq.s32.totalorder %s23, 1
      %p146 = scmp.ne.s32.totalorder %s141, %s143
      %p147 = scmp.eq.s32.totalorder %s23, 0
      %p148 = por %p146, %p147
      %p149 = scmp.ne.s32.totalorder %s141, %s143
      %p150 = scmp.eq.s32.totalorder %s28, 1
      %p151 = por %p149, %p150
      %p152 = scmp.ne.s32.totalorder %s143, %s144
      %p153 = scmp.eq.s32.totalorder %s28, 0
      %p154 = por %p152, %p153
      %p155 = scmp.ne.s32.totalorder %s143, %s144
      %p156 = scmp.eq.s32.totalorder %s29, 1
      %p157 = por %p155, %p156
      %p159 = scmp.ne.s32.totalorder %s144, %s158
      %p160 = scmp.eq.s32.totalorder %s29, 0
      %p161 = por %p159, %p160
      %s163 = sadd.s32 %s162, 1
      %p166 = scmp.eq.s32.totalorder %s23, 1
      %p167 = scmp.ne.s32.totalorder %s162, %s164
      %p168 = scmp.eq.s32.totalorder %s23, 0
      %p169 = por %p167, %p168
      %p170 = scmp.ne.s32.totalorder %s162, %s164
      %p171 = scmp.eq.s32.totalorder %s28, 1
      %p172 = por %p170, %p171
      %p173 = scmp.ne.s32.totalorder %s164, %s165
      %p174 = scmp.eq.s32.totalorder %s28, 0
      %p175 = por %p173, %p174
      %p176 = scmp.ne.s32.totalorder %s164, %s165
      %p177 = scmp.eq.s32.totalorder %s29, 1
      %p178 = por %p176, %p177
      %p180 = scmp.ne.s32.totalorder %s165, %s179
      %p181 = scmp.eq.s32.totalorder %s29, 0
      %p182 = por %p180, %p181
      %s184 = sadd.s32 %s183, 1
      %p187 = scmp.eq.s32.totalorder %s23, 1
      %p188 = scmp.ne.s32.totalorder %s183, %s185
      %p189 = scmp.eq.s32.totalorder %s23, 0
      %p190 = por %p188, %p189
      %p191 = scmp.ne.s32.totalorder %s183, %s185
      %p192 = scmp.eq.s32.totalorder %s28, 1
      %p193 = por %p191, %p192
      %p194 = scmp.ne.s32.totalorder %s185, %s186
      %p195 = scmp.eq.s32.totalorder %s28, 0
      %p196 = por %p194, %p195
      %p197 = scmp.ne.s32.totalorder %s185, %s186
      %p198 = scmp.eq.s32.totalorder %s29, 1
      %p199 = por %p197, %p198
      %p201 = scmp.ne.s32.totalorder %s186, %s200
      %p202 = scmp.eq.s32.totalorder %s29, 0
      %p203 = por %p201, %p202
      %s205 = sadd.s32 %s204, 1
      %p208 = scmp.eq.s32.totalorder %s23, 1
      %p209 = scmp.ne.s32.totalorder %s204, %s206
      %p210 = scmp.eq.s32.totalorder %s23, 0
      %p211 = por %p209, %p210
      %p212 = scmp.ne.s32.totalorder %s204, %s206
      %p213 = scmp.eq.s32.totalorder %s28, 1
      %p214 = por %p212, %p213
      %p215 = scmp.ne.s32.totalorder %s206, %s207
      %p216 = scmp.eq.s32.totalorder %s28, 0
      %p217 = por %p215, %p216
      %p218 = scmp.ne.s32.totalorder %s206, %s207
      %p219 = scmp.eq.s32.totalorder %s29, 1
      %p220 = por %p218, %p219
      %p222 = scmp.ne.s32.totalorder %s207, %s221
      %p223 = scmp.eq.s32.totalorder %s29, 0
      %p224 = por %p222, %p223
      %s225 = ssub.s32 %s23, %s30
      %p226 = scmp.eq.s32.totalorder %s225, 0
      %s228 = sadd.s32 %s227, 1
      %s229 = scalar_select %p226, %s227, %s228
      %p232 = pneg %p226
      %p233 = scmp.eq.s32.totalorder %s23, 1
      %p234 = por %p232, %p233
      %p235 = scmp.ne.s32.totalorder %s227, %s230
      %p236 = scmp.eq.s32.totalorder %s23, 0
      %p237 = por %p235, %p236
      %p238 = scmp.ne.s32.totalorder %s227, %s230
      %p239 = scmp.eq.s32.totalorder %s28, 1
      %p240 = por %p238, %p239
      %p241 = scmp.ne.s32.totalorder %s230, %s231
      %p242 = scmp.eq.s32.totalorder %s28, 0
      %p243 = por %p241, %p242
      %p244 = scmp.ne.s32.totalorder %s230, %s231
      %p245 = scmp.eq.s32.totalorder %s29, 1
      %p246 = por %p244, %p245
      %p248 = scmp.ne.s32.totalorder %s231, %s247
      %p249 = scmp.eq.s32.totalorder %s29, 0
      %p250 = por %p248, %p249
      %p251 = scmp.le.s32.totalorder 1, %s23
      %p252 = scmp.lt.s32.totalorder %s23, 3
      %p253 = pnand %p251, %p252
      %p254 = pneg %p253
      // Predicated region
      $region9: #{mlp_forward.1} parent=5 // pred_check
        _
      $region10: #{mlp_forward.1} parent=5 // pred_check_branch
        %256 = sbr.rel (%p253) target = $region12
      $region11: #{mlp_forward.1} parent=5 // pred_region
        %s257 = ssub.s32 %s23, 1
        // Predicated region
        $region13: #{mlp_forward.1} parent=11 // pred_check
          %p258 = pneg %p70
        $region14: #{mlp_forward.1} parent=11 // pred_check_branch
          %260 = sbr.rel (%p258) target = $region16
        $region15: #{mlp_forward.1} parent=11 // pred_region
          %s262 = ssub.s32 32768, 32768
          %263 = vsyncadd [#allocation6], %s262
          %s264 = sshll.u32 [#allocation5], 4
          %s265 = int_to_ptr.vmem [resolvable:$true] %s264
          %270 = dma.hbm_to_vmem [thread:$0]  %s1, 32768, %s265, [#allocation6], 128, 128, 8
        $region16: #{mlp_forward.1} parent=11 // pred_fallthru
          _
        // Predicated region
        $region17: #{mlp_forward.1} parent=11 // pred_check
          %p271 = pneg %p91
        $region18: #{mlp_forward.1} parent=11 // pred_check_branch
          %273 = sbr.rel (%p271) target = $region20
        $region19: #{mlp_forward.1} parent=11 // pred_region
          %s275 = ssub.s32 32, 32
          %276 = vsyncadd [#allocation6], %s275
          %s278 = sshll.u32 [#allocation7], 4
          %s279 = int_to_ptr.vmem [resolvable:$true] %s278
          %281 = dma.hbm_to_vmem [thread:$0]  %s2, 32, %s279, [#allocation6]
        $region20: #{mlp_forward.1} parent=11 // pred_fallthru
          _
        // Predicated region
        $region21: #{mlp_forward.1} parent=11 // pred_check
          %p282 = pneg %p112
        $region22: #{mlp_forward.1} parent=11 // pred_check_branch
          %284 = sbr.rel (%p282) target = $region24
        $region23: #{mlp_forward.1} parent=11 // pred_region
          %s286 = ssub.s32 2048, 2048
          %287 = vsyncadd [#allocation9], %s286
          %s288 = sshll.u32 [#allocation8], 4
          %s289 = int_to_ptr.vmem [resolvable:$true] %s288
          %294 = dma.hbm_to_vmem [thread:$0]  %s3, 2048, %s289, [#allocation9], 64, 64, 4
        $region24: #{mlp_forward.1} parent=11 // pred_fallthru
          _
        // Predicated region
        $region25: #{mlp_forward.1} parent=11 // pred_check
          %p295 = pneg %p133
        $region26: #{mlp_forward.1} parent=11 // pred_check_branch
          %297 = sbr.rel (%p295) target = $region28
        $region27: #{mlp_forward.1} parent=11 // pred_region
          %s299 = ssub.s32 16, 16
          %300 = vsyncadd [#allocation9], %s299
          %s302 = sshll.u32 [#allocation10], 4
          %s303 = int_to_ptr.vmem [resolvable:$true] %s302
          %305 = dma.hbm_to_vmem [thread:$0]  %s4, 16, %s303, [#allocation9]
        $region28: #{mlp_forward.1} parent=11 // pred_fallthru
          _
        // Predicated region
        $region29: #{mlp_forward.1} parent=11 // pred_check
          %p306 = pneg %p154
        $region30: #{mlp_forward.1} parent=11 // pred_check_branch
          %308 = sbr.rel (%p306) target = $region32
        $region31: #{mlp_forward.1} parent=11 // pred_region
          _
        $region32: #{mlp_forward.1} parent=11 // pred_fallthru
          _
        // Predicated region
        $region33: #{mlp_forward.1} parent=11 // pred_check
          %p309 = pneg %p175
        $region34: #{mlp_forward.1} parent=11 // pred_check_branch
          %311 = sbr.rel (%p309) target = $region36
        $region35: #{mlp_forward.1} parent=11 // pred_region
          %s313 = ssub.s32 16, 16
          %314 = vsyncadd [#allocation12], %s313
          %s316 = sshll.u32 [#allocation11], 4
          %s317 = int_to_ptr.vmem [resolvable:$true] %s316
          %319 = dma.hbm_to_vmem [thread:$0]  %s6, 16, %s317, [#allocation12]
        $region36: #{mlp_forward.1} parent=11 // pred_fallthru
          _
        // Predicated region
        $region37: #{mlp_forward.1} parent=11 // pred_check
          %p320 = pneg %p196
        $region38: #{mlp_forward.1} parent=11 // pred_check_branch
          %322 = sbr.rel (%p320) target = $region40
        $region39: #{mlp_forward.1} parent=11 // pred_region
          %s324 = ssub.s32 16, 16
          %325 = vsyncadd [#allocation12], %s324
          %s327 = sshll.u32 [#allocation13], 4
          %s328 = int_to_ptr.vmem [resolvable:$true] %s327
          %330 = dma.hbm_to_vmem [thread:$0]  %s7, 16, %s328, [#allocation12]
        $region40: #{mlp_forward.1} parent=11 // pred_fallthru
          _
        // Predicated region
        $region41: #{mlp_forward.1} parent=11 // pred_check
          %p331 = pneg %p217
        $region42: #{mlp_forward.1} parent=11 // pred_check_branch
          %333 = sbr.rel (%p331) target = $region44
        $region43: #{mlp_forward.1} parent=11 // pred_region
          _
        $region44: #{mlp_forward.1} parent=11 // pred_fallthru
          _
      $region12: #{mlp_forward.1} parent=5 // pred_fallthru
        _
      %p334 = scmp.lt.s32.totalorder %s23, 2
      // Predicated region
      $region45: #{mlp_forward.1} parent=5 // pred_check
        %p335 = pneg %p334
      $region46: #{mlp_forward.1} parent=5 // pred_check_branch
        %337 = sbr.rel (%p335) target = $region48
      $region47: #{mlp_forward.1} parent=5 // pred_region
        // Predicated region
        $region49: #{mlp_forward.1} parent=47 // pred_check
          %p338 = pneg %p43
        $region50: #{mlp_forward.1} parent=47 // pred_check_branch
          %340 = sbr.rel (%p338) target = $region52
        $region51: #{mlp_forward.1} parent=47 // pred_region
          %s341 = sand.u32 %s33, 1
          %s342 = scalar_lea.sflag [#allocation4], %s341
          %s343 = sand.u32 %s33, 1
          %s344 = smul.addr %s343, 4096
          %s345 = scalar_lea.vmem [#allocation3], %s344
          %s346 = smul.u32 32, %s23
          %s347 = ssub.s32 48, %s346
          %p348 = scmp.lt.s32.totalorder %s347, 32
          %s349 = scalar_select %p348, %s347, 32
          %s350 = smul.u32 128, %s349
          %s351 = smul.u32 %s350, 16
          %s353 = ssub.s32 65536, %s351
          %354 = vsyncadd %s342, %s353
          %p355 = scmp.ne.s32.totalorder 0, %s351
          %s356 = smul.addr %s346, 16
          %s357 = smul.addr %s356, 128
          %s358 = scalar_lea.hbm %s0, %s357
          %s359 = smul.u32 128, %s349
          %s360 = sshll.u32 %s345, 4
          %s361 = int_to_ptr.vmem [resolvable:$true] %s360
          %s362 = sshll.u32 %s359, 4
          %366 = dma.hbm_to_vmem [thread:$0]  (%p355), %s358, %s362, %s361, %s342, 2048, 2048, 128
        $region52: #{mlp_forward.1} parent=47 // pred_fallthru
          _
      $region48: #{mlp_forward.1} parent=5 // pred_fallthru
        _
      %p367 = scmp.le.s32.totalorder 1, %s23
      %p368 = scmp.lt.s32.totalorder %s23, 3
      %p369 = pnand %p367, %p368
      %p370 = pneg %p369
      // Predicated region
      $region53: #{mlp_forward.1} parent=5 // pred_check
        _
      $region54: #{mlp_forward.1} parent=5 // pred_check_branch
        %372 = sbr.rel (%p369) target = $region56
      $region55: #{mlp_forward.1} parent=5 // pred_region
        %s373 = ssub.s32 %s23, 1
        %s374 = sand.u32 %s36, 1
        %s375 = scalar_lea.sflag [#allocation4], %s374
        %s376 = sand.u32 %s36, 1
        %s377 = smul.addr %s376, 4096
        %s378 = scalar_lea.vmem [#allocation3], %s377
        // Predicated region
        $region57: #{mlp_forward.1} parent=55 // pred_check
          %p379 = pneg %p49
        $region58: #{mlp_forward.1} parent=55 // pred_check_branch
          %381 = sbr.rel (%p379) target = $region60
        $region59: #{mlp_forward.1} parent=55 // pred_region
          %382 = dma.done %s375, 65536
        $region60: #{mlp_forward.1} parent=55 // pred_fallthru
          _
        // Predicated region
        $region61: #{mlp_forward.1} parent=55 // pred_check
          %p383 = pneg %p70
        $region62: #{mlp_forward.1} parent=55 // pred_check_branch
          %385 = sbr.rel (%p383) target = $region64
        $region63: #{mlp_forward.1} parent=55 // pred_region
          %386 = dma.done [#allocation6], 32768
        $region64: #{mlp_forward.1} parent=55 // pred_fallthru
          _
        // Predicated region
        $region65: #{mlp_forward.1} parent=55 // pred_check
          %p387 = pneg %p91
        $region66: #{mlp_forward.1} parent=55 // pred_check_branch
          %389 = sbr.rel (%p387) target = $region68
        $region67: #{mlp_forward.1} parent=55 // pred_region
          %390 = dma.done [#allocation6], 32
        $region68: #{mlp_forward.1} parent=55 // pred_fallthru
          _
        // Predicated region
        $region69: #{mlp_forward.1} parent=55 // pred_check
          %p391 = pneg %p112
        $region70: #{mlp_forward.1} parent=55 // pred_check_branch
          %393 = sbr.rel (%p391) target = $region72
        $region71: #{mlp_forward.1} parent=55 // pred_region
          %394 = dma.done [#allocation9], 2048
        $region72: #{mlp_forward.1} parent=55 // pred_fallthru
          _
        // Predicated region
        $region73: #{mlp_forward.1} parent=55 // pred_check
          %p395 = pneg %p133
        $region74: #{mlp_forward.1} parent=55 // pred_check_branch
          %397 = sbr.rel (%p395) target = $region76
        $region75: #{mlp_forward.1} parent=55 // pred_region
          %398 = dma.done [#allocation9], 16
        $region76: #{mlp_forward.1} parent=55 // pred_fallthru
          _
        // Predicated region
        $region77: #{mlp_forward.1} parent=55 // pred_check
          %p399 = pneg %p175
        $region78: #{mlp_forward.1} parent=55 // pred_check_branch
          %401 = sbr.rel (%p399) target = $region80
        $region79: #{mlp_forward.1} parent=55 // pred_region
          %402 = dma.done [#allocation12], 16
        $region80: #{mlp_forward.1} parent=55 // pred_fallthru
          _
        // Predicated region
        $region81: #{mlp_forward.1} parent=55 // pred_check
          %p403 = pneg %p196
        $region82: #{mlp_forward.1} parent=55 // pred_check_branch
          %405 = sbr.rel (%p403) target = $region84
        $region83: #{mlp_forward.1} parent=55 // pred_region
          %406 = dma.done [#allocation12], 16
        $region84: #{mlp_forward.1} parent=55 // pred_fallthru
          _
        %s407 = sand.u32 %s36, 1
        %s408 = scalar_lea.sflag [#allocation4], %s407
        %s409 = sand.u32 %s36, 1
        %s410 = smul.addr %s409, 4096
        %s411 = scalar_lea.vmem [#allocation3], %s410
        %p412 = pneg %p49
        %p413 = pneg %p46
        %p414 = pneg %p70
        %p415 = pneg %p67
        %p416 = pneg %p91
        %p417 = pneg %p88
        %p418 = pneg %p112
        %p419 = pneg %p109
        %p420 = pneg %p133
        %p421 = pneg %p130
        %p422 = pneg %p154
        %p423 = pneg %p151
        %p424 = pneg %p175
        %p425 = pneg %p172
        %p426 = pneg %p196
        %p427 = pneg %p193
        %p428 = pneg %p217
        %p429 = pneg %p214
        %p430 = pneg %p243
        %p431 = pneg %p240
        %s432 = sand.u32 %s230, 1
        %s433 = sand.u32 %s230, 1
        %s434 = smul.addr %s433, 256
        %s435 = scalar_lea.vmem [#allocation14], %s434
        %s436 = smul.u32 32, %s28
        %s437 = ssub.s32 48, %s436
        %p438 = scmp.lt.s32.totalorder %s437, 32
        %s439 = scalar_select %p438, %s437, 32
        %s440 = smul.u32 128, %s439
        %s441 = smul.u32 %s440, 16
        %s442 = smul.u32 32, %s28
        %s443 = ssub.s32 48, %s442
        %p444 = scmp.lt.s32.totalorder %s443, 32
        %s445 = scalar_select %p444, %s443, 32
        %s446 = smul.u32 128, %s445
        %v448 = vld [vmem:[%s378] sm:$0xff]
        %v449 = vld [vmem:[%s378 + $0x8] sm:$0xff]
        %v450 = vld [vmem:[%s378 + $0x10] sm:$0xff]
        %v451 = vld [vmem:[%s378 + $0x18] sm:$0xff]
        %v452 = vld [vmem:[%s378 + $0x20] sm:$0xff]
        %v453 = vld [vmem:[%s378 + $0x28] sm:$0xff]
        %v454 = vld [vmem:[%s378 + $0x30] sm:$0xff]
        %v455 = vld [vmem:[%s378 + $0x38] sm:$0xff]
        %v456 = vld [vmem:[%s378 + $0x40] sm:$0xff]
        %v457 = vld [vmem:[%s378 + $0x48] sm:$0xff]
        %v458 = vld [vmem:[%s378 + $0x50] sm:$0xff]
        %v459 = vld [vmem:[%s378 + $0x58] sm:$0xff]
        %v460 = vld [vmem:[%s378 + $0x60] sm:$0xff]
        %v461 = vld [vmem:[%s378 + $0x68] sm:$0xff]
        %v462 = vld [vmem:[%s378 + $0x70] sm:$0xff]
        %v463 = vld [vmem:[%s378 + $0x78] sm:$0xff]
        %v464 = vld [vmem:[%s378 + $0x80] sm:$0xff]
        %v465 = vld [vmem:[%s378 + $0x88] sm:$0xff]
        %v466 = vld [vmem:[%s378 + $0x90] sm:$0xff]
        %v467 = vld [vmem:[%s378 + $0x98] sm:$0xff]
        %v468 = vld [vmem:[%s378 + $0xa0] sm:$0xff]
        %v469 = vld [vmem:[%s378 + $0xa8] sm:$0xff]
        %v470 = vld [vmem:[%s378 + $0xb0] sm:$0xff]
        %v471 = vld [vmem:[%s378 + $0xb8] sm:$0xff]
        %v472 = vld [vmem:[%s378 + $0xc0] sm:$0xff]
        %v473 = vld [vmem:[%s378 + $0xc8] sm:$0xff]
        %v474 = vld [vmem:[%s378 + $0xd0] sm:$0xff]
        %v475 = vld [vmem:[%s378 + $0xd8] sm:$0xff]
        %v476 = vld [vmem:[%s378 + $0xe0] sm:$0xff]
        %v477 = vld [vmem:[%s378 + $0xe8] sm:$0xff]
        %v478 = vld [vmem:[%s378 + $0xf0] sm:$0xff]
        %v479 = vld [vmem:[%s378 + $0xf8] sm:$0xff]
        %v480 = vld [vmem:[%s378 + $0x100] sm:$0xff]
        %v481 = vld [vmem:[%s378 + $0x108] sm:$0xff]
        %v482 = vld [vmem:[%s378 + $0x110] sm:$0xff]
        %v483 = vld [vmem:[%s378 + $0x118] sm:$0xff]
        %v484 = vld [vmem:[%s378 + $0x120] sm:$0xff]
        %v485 = vld [vmem:[%s378 + $0x128] sm:$0xff]
        %v486 = vld [vmem:[%s378 + $0x130] sm:$0xff]
        %v487 = vld [vmem:[%s378 + $0x138] sm:$0xff]
        %v488 = vld [vmem:[%s378 + $0x140] sm:$0xff]
        %v489 = vld [vmem:[%s378 + $0x148] sm:$0xff]
        %v490 = vld [vmem:[%s378 + $0x150] sm:$0xff]
        %v491 = vld [vmem:[%s378 + $0x158] sm:$0xff]
        %v492 = vld [vmem:[%s378 + $0x160] sm:$0xff]
        %v493 = vld [vmem:[%s378 + $0x168] sm:$0xff]
        %v494 = vld [vmem:[%s378 + $0x170] sm:$0xff]
        %v495 = vld [vmem:[%s378 + $0x178] sm:$0xff]
        %v496 = vld [vmem:[%s378 + $0x180] sm:$0xff]
        %v497 = vld [vmem:[%s378 + $0x188] sm:$0xff]
        %v498 = vld [vmem:[%s378 + $0x190] sm:$0xff]
        %v499 = vld [vmem:[%s378 + $0x198] sm:$0xff]
        %v500 = vld [vmem:[%s378 + $0x1a0] sm:$0xff]
        %v501 = vld [vmem:[%s378 + $0x1a8] sm:$0xff]
        %v502 = vld [vmem:[%s378 + $0x1b0] sm:$0xff]
        %v503 = vld [vmem:[%s378 + $0x1b8] sm:$0xff]
        %v504 = vld [vmem:[%s378 + $0x1c0] sm:$0xff]
        %v505 = vld [vmem:[%s378 + $0x1c8] sm:$0xff]
        %v506 = vld [vmem:[%s378 + $0x1d0] sm:$0xff]
        %v507 = vld [vmem:[%s378 + $0x1d8] sm:$0xff]
        %v508 = vld [vmem:[%s378 + $0x1e0] sm:$0xff]
        %v509 = vld [vmem:[%s378 + $0x1e8] sm:$0xff]
        %v510 = vld [vmem:[%s378 + $0x1f0] sm:$0xff]
        %v511 = vld [vmem:[%s378 + $0x1f8] sm:$0xff]
        %v512 = vld [vmem:[%s378 + $0x200] sm:$0xff]
        %v513 = vld [vmem:[%s378 + $0x208] sm:$0xff]
        %v514 = vld [vmem:[%s378 + $0x210] sm:$0xff]
        %v515 = vld [vmem:[%s378 + $0x218] sm:$0xff]
        %v516 = vld [vmem:[%s378 + $0x220] sm:$0xff]
        %v517 = vld [vmem:[%s378 + $0x228] sm:$0xff]
        %v518 = vld [vmem:[%s378 + $0x230] sm:$0xff]
        %v519 = vld [vmem:[%s378 + $0x238] sm:$0xff]
        %v520 = vld [vmem:[%s378 + $0x240] sm:$0xff]
        %v521 = vld [vmem:[%s378 + $0x248] sm:$0xff]
        %v522 = vld [vmem:[%s378 + $0x250] sm:$0xff]
        %v523 = vld [vmem:[%s378 + $0x258] sm:$0xff]
        %v524 = vld [vmem:[%s378 + $0x260] sm:$0xff]
        %v525 = vld [vmem:[%s378 + $0x268] sm:$0xff]
        %v526 = vld [vmem:[%s378 + $0x270] sm:$0xff]
        %v527 = vld [vmem:[%s378 + $0x278] sm:$0xff]
        %v528 = vld [vmem:[%s378 + $0x280] sm:$0xff]
        %v529 = vld [vmem:[%s378 + $0x288] sm:$0xff]
        %v530 = vld [vmem:[%s378 + $0x290] sm:$0xff]
        %v531 = vld [vmem:[%s378 + $0x298] sm:$0xff]
        %v532 = vld [vmem:[%s378 + $0x2a0] sm:$0xff]
        %v533 = vld [vmem:[%s378 + $0x2a8] sm:$0xff]
        %v534 = vld [vmem:[%s378 + $0x2b0] sm:$0xff]
        %v535 = vld [vmem:[%s378 + $0x2b8] sm:$0xff]
        %v536 = vld [vmem:[%s378 + $0x2c0] sm:$0xff]
        %v537 = vld [vmem:[%s378 + $0x2c8] sm:$0xff]
        %v538 = vld [vmem:[%s378 + $0x2d0] sm:$0xff]
        %v539 = vld [vmem:[%s378 + $0x2d8] sm:$0xff]
        %v540 = vld [vmem:[%s378 + $0x2e0] sm:$0xff]
        %v541 = vld [vmem:[%s378 + $0x2e8] sm:$0xff]
        %v542 = vld [vmem:[%s378 + $0x2f0] sm:$0xff]
        %v543 = vld [vmem:[%s378 + $0x2f8] sm:$0xff]
        %v544 = vld [vmem:[%s378 + $0x300] sm:$0xff]
        %v545 = vld [vmem:[%s378 + $0x308] sm:$0xff]
        %v546 = vld [vmem:[%s378 + $0x310] sm:$0xff]
        %v547 = vld [vmem:[%s378 + $0x318] sm:$0xff]
        %v548 = vld [vmem:[%s378 + $0x320] sm:$0xff]
        %v549 = vld [vmem:[%s378 + $0x328] sm:$0xff]
        %v550 = vld [vmem:[%s378 + $0x330] sm:$0xff]
        %v551 = vld [vmem:[%s378 + $0x338] sm:$0xff]
        %v552 = vld [vmem:[%s378 + $0x340] sm:$0xff]
        %v553 = vld [vmem:[%s378 + $0x348] sm:$0xff]
        %v554 = vld [vmem:[%s378 + $0x350] sm:$0xff]
        %v555 = vld [vmem:[%s378 + $0x358] sm:$0xff]
        %v556 = vld [vmem:[%s378 + $0x360] sm:$0xff]
        %v557 = vld [vmem:[%s378 + $0x368] sm:$0xff]
        %v558 = vld [vmem:[%s378 + $0x370] sm:$0xff]
        %v559 = vld [vmem:[%s378 + $0x378] sm:$0xff]
        %v560 = vld [vmem:[%s378 + $0x380] sm:$0xff]
        %v561 = vld [vmem:[%s378 + $0x388] sm:$0xff]
        %v562 = vld [vmem:[%s378 + $0x390] sm:$0xff]
        %v563 = vld [vmem:[%s378 + $0x398] sm:$0xff]
        %v564 = vld [vmem:[%s378 + $0x3a0] sm:$0xff]
        %v565 = vld [vmem:[%s378 + $0x3a8] sm:$0xff]
        %v566 = vld [vmem:[%s378 + $0x3b0] sm:$0xff]
        %v567 = vld [vmem:[%s378 + $0x3b8] sm:$0xff]
        %v568 = vld [vmem:[%s378 + $0x3c0] sm:$0xff]
        %v569 = vld [vmem:[%s378 + $0x3c8] sm:$0xff]
        %v570 = vld [vmem:[%s378 + $0x3d0] sm:$0xff]
        %v571 = vld [vmem:[%s378 + $0x3d8] sm:$0xff]
        %v572 = vld [vmem:[%s378 + $0x3e0] sm:$0xff]
        %v573 = vld [vmem:[%s378 + $0x3e8] sm:$0xff]
        %v574 = vld [vmem:[%s378 + $0x3f0] sm:$0xff]
        %v575 = vld [vmem:[%s378 + $0x3f8] sm:$0xff]
        %v576 = vld [vmem:[%s378 + $0x400] sm:$0xff]
        %v577 = vld [vmem:[%s378 + $0x408] sm:$0xff]
        %v578 = vld [vmem:[%s378 + $0x410] sm:$0xff]
        %v579 = vld [vmem:[%s378 + $0x418] sm:$0xff]
        %v580 = vld [vmem:[%s378 + $0x420] sm:$0xff]
        %v581 = vld [vmem:[%s378 + $0x428] sm:$0xff]
        %v582 = vld [vmem:[%s378 + $0x430] sm:$0xff]
        %v583 = vld [vmem:[%s378 + $0x438] sm:$0xff]
        %v584 = vld [vmem:[%s378 + $0x440] sm:$0xff]
        %v585 = vld [vmem:[%s378 + $0x448] sm:$0xff]
        %v586 = vld [vmem:[%s378 + $0x450] sm:$0xff]
        %v587 = vld [vmem:[%s378 + $0x458] sm:$0xff]
        %v588 = vld [vmem:[%s378 + $0x460] sm:$0xff]
        %v589 = vld [vmem:[%s378 + $0x468] sm:$0xff]
        %v590 = vld [vmem:[%s378 + $0x470] sm:$0xff]
        %v591 = vld [vmem:[%s378 + $0x478] sm:$0xff]
        %v592 = vld [vmem:[%s378 + $0x480] sm:$0xff]
        %v593 = vld [vmem:[%s378 + $0x488] sm:$0xff]
        %v594 = vld [vmem:[%s378 + $0x490] sm:$0xff]
        %v595 = vld [vmem:[%s378 + $0x498] sm:$0xff]
        %v596 = vld [vmem:[%s378 + $0x4a0] sm:$0xff]
        %v597 = vld [vmem:[%s378 + $0x4a8] sm:$0xff]
        %v598 = vld [vmem:[%s378 + $0x4b0] sm:$0xff]
        %v599 = vld [vmem:[%s378 + $0x4b8] sm:$0xff]
        %v600 = vld [vmem:[%s378 + $0x4c0] sm:$0xff]
        %v601 = vld [vmem:[%s378 + $0x4c8] sm:$0xff]
        %v602 = vld [vmem:[%s378 + $0x4d0] sm:$0xff]
        %v603 = vld [vmem:[%s378 + $0x4d8] sm:$0xff]
        %v604 = vld [vmem:[%s378 + $0x4e0] sm:$0xff]
        %v605 = vld [vmem:[%s378 + $0x4e8] sm:$0xff]
        %v606 = vld [vmem:[%s378 + $0x4f0] sm:$0xff]
        %v607 = vld [vmem:[%s378 + $0x4f8] sm:$0xff]
        %v608 = vld [vmem:[%s378 + $0x500] sm:$0xff]
        %v609 = vld [vmem:[%s378 + $0x508] sm:$0xff]
        %v610 = vld [vmem:[%s378 + $0x510] sm:$0xff]
        %v611 = vld [vmem:[%s378 + $0x518] sm:$0xff]
        %v612 = vld [vmem:[%s378 + $0x520] sm:$0xff]
        %v613 = vld [vmem:[%s378 + $0x528] sm:$0xff]
        %v614 = vld [vmem:[%s378 + $0x530] sm:$0xff]
        %v615 = vld [vmem:[%s378 + $0x538] sm:$0xff]
        %v616 = vld [vmem:[%s378 + $0x540] sm:$0xff]
        %v617 = vld [vmem:[%s378 + $0x548] sm:$0xff]
        %v618 = vld [vmem:[%s378 + $0x550] sm:$0xff]
        %v619 = vld [vmem:[%s378 + $0x558] sm:$0xff]
        %v620 = vld [vmem:[%s378 + $0x560] sm:$0xff]
        %v621 = vld [vmem:[%s378 + $0x568] sm:$0xff]
        %v622 = vld [vmem:[%s378 + $0x570] sm:$0xff]
        %v623 = vld [vmem:[%s378 + $0x578] sm:$0xff]
        %v624 = vld [vmem:[%s378 + $0x580] sm:$0xff]
        %v625 = vld [vmem:[%s378 + $0x588] sm:$0xff]
        %v626 = vld [vmem:[%s378 + $0x590] sm:$0xff]
        %v627 = vld [vmem:[%s378 + $0x598] sm:$0xff]
        %v628 = vld [vmem:[%s378 + $0x5a0] sm:$0xff]
        %v629 = vld [vmem:[%s378 + $0x5a8] sm:$0xff]
        %v630 = vld [vmem:[%s378 + $0x5b0] sm:$0xff]
        %v631 = vld [vmem:[%s378 + $0x5b8] sm:$0xff]
        %v632 = vld [vmem:[%s378 + $0x5c0] sm:$0xff]
        %v633 = vld [vmem:[%s378 + $0x5c8] sm:$0xff]
        %v634 = vld [vmem:[%s378 + $0x5d0] sm:$0xff]
        %v635 = vld [vmem:[%s378 + $0x5d8] sm:$0xff]
        %v636 = vld [vmem:[%s378 + $0x5e0] sm:$0xff]
        %v637 = vld [vmem:[%s378 + $0x5e8] sm:$0xff]
        %v638 = vld [vmem:[%s378 + $0x5f0] sm:$0xff]
        %v639 = vld [vmem:[%s378 + $0x5f8] sm:$0xff]
        %v640 = vld [vmem:[%s378 + $0x600] sm:$0xff]
        %v641 = vld [vmem:[%s378 + $0x608] sm:$0xff]
        %v642 = vld [vmem:[%s378 + $0x610] sm:$0xff]
        %v643 = vld [vmem:[%s378 + $0x618] sm:$0xff]
        %v644 = vld [vmem:[%s378 + $0x620] sm:$0xff]
        %v645 = vld [vmem:[%s378 + $0x628] sm:$0xff]
        %v646 = vld [vmem:[%s378 + $0x630] sm:$0xff]
        %v647 = vld [vmem:[%s378 + $0x638] sm:$0xff]
        %v648 = vld [vmem:[%s378 + $0x640] sm:$0xff]
        %v649 = vld [vmem:[%s378 + $0x648] sm:$0xff]
        %v650 = vld [vmem:[%s378 + $0x650] sm:$0xff]
        %v651 = vld [vmem:[%s378 + $0x658] sm:$0xff]
        %v652 = vld [vmem:[%s378 + $0x660] sm:$0xff]
        %v653 = vld [vmem:[%s378 + $0x668] sm:$0xff]
        %v654 = vld [vmem:[%s378 + $0x670] sm:$0xff]
        %v655 = vld [vmem:[%s378 + $0x678] sm:$0xff]
        %v656 = vld [vmem:[%s378 + $0x680] sm:$0xff]
        %v657 = vld [vmem:[%s378 + $0x688] sm:$0xff]
        %v658 = vld [vmem:[%s378 + $0x690] sm:$0xff]
        %v659 = vld [vmem:[%s378 + $0x698] sm:$0xff]
        %v660 = vld [vmem:[%s378 + $0x6a0] sm:$0xff]
        %v661 = vld [vmem:[%s378 + $0x6a8] sm:$0xff]
        %v662 = vld [vmem:[%s378 + $0x6b0] sm:$0xff]
        %v663 = vld [vmem:[%s378 + $0x6b8] sm:$0xff]
        %v664 = vld [vmem:[%s378 + $0x6c0] sm:$0xff]
        %v665 = vld [vmem:[%s378 + $0x6c8] sm:$0xff]
        %v666 = vld [vmem:[%s378 + $0x6d0] sm:$0xff]
        %v667 = vld [vmem:[%s378 + $0x6d8] sm:$0xff]
        %v668 = vld [vmem:[%s378 + $0x6e0] sm:$0xff]
        %v669 = vld [vmem:[%s378 + $0x6e8] sm:$0xff]
        %v670 = vld [vmem:[%s378 + $0x6f0] sm:$0xff]
        %v671 = vld [vmem:[%s378 + $0x6f8] sm:$0xff]
        %v672 = vld [vmem:[%s378 + $0x700] sm:$0xff]
        %v673 = vld [vmem:[%s378 + $0x708] sm:$0xff]
        %v674 = vld [vmem:[%s378 + $0x710] sm:$0xff]
        %v675 = vld [vmem:[%s378 + $0x718] sm:$0xff]
        %v676 = vld [vmem:[%s378 + $0x720] sm:$0xff]
        %v677 = vld [vmem:[%s378 + $0x728] sm:$0xff]
        %v678 = vld [vmem:[%s378 + $0x730] sm:$0xff]
        %v679 = vld [vmem:[%s378 + $0x738] sm:$0xff]
        %v680 = vld [vmem:[%s378 + $0x740] sm:$0xff]
        %v681 = vld [vmem:[%s378 + $0x748] sm:$0xff]
        %v682 = vld [vmem:[%s378 + $0x750] sm:$0xff]
        %v683 = vld [vmem:[%s378 + $0x758] sm:$0xff]
        %v684 = vld [vmem:[%s378 + $0x760] sm:$0xff]
        %v685 = vld [vmem:[%s378 + $0x768] sm:$0xff]
        %v686 = vld [vmem:[%s378 + $0x770] sm:$0xff]
        %v687 = vld [vmem:[%s378 + $0x778] sm:$0xff]
        %v688 = vld [vmem:[%s378 + $0x780] sm:$0xff]
        %v689 = vld [vmem:[%s378 + $0x788] sm:$0xff]
        %v690 = vld [vmem:[%s378 + $0x790] sm:$0xff]
        %v691 = vld [vmem:[%s378 + $0x798] sm:$0xff]
        %v692 = vld [vmem:[%s378 + $0x7a0] sm:$0xff]
        %v693 = vld [vmem:[%s378 + $0x7a8] sm:$0xff]
        %v694 = vld [vmem:[%s378 + $0x7b0] sm:$0xff]
        %v695 = vld [vmem:[%s378 + $0x7b8] sm:$0xff]
        %v696 = vld [vmem:[%s378 + $0x7c0] sm:$0xff]
        %v697 = vld [vmem:[%s378 + $0x7c8] sm:$0xff]
        %v698 = vld [vmem:[%s378 + $0x7d0] sm:$0xff]
        %v699 = vld [vmem:[%s378 + $0x7d8] sm:$0xff]
        %v700 = vld [vmem:[%s378 + $0x7e0] sm:$0xff]
        %v701 = vld [vmem:[%s378 + $0x7e8] sm:$0xff]
        %v702 = vld [vmem:[%s378 + $0x7f0] sm:$0xff]
        %v703 = vld [vmem:[%s378 + $0x7f8] sm:$0xff]
        %v704 = vld [vmem:[%s378 + $0x800] sm:$0xff]
        %v705 = vld [vmem:[%s378 + $0x808] sm:$0xff]
        %v706 = vld [vmem:[%s378 + $0x810] sm:$0xff]
        %v707 = vld [vmem:[%s378 + $0x818] sm:$0xff]
        %v708 = vld [vmem:[%s378 + $0x820] sm:$0xff]
        %v709 = vld [vmem:[%s378 + $0x828] sm:$0xff]
        %v710 = vld [vmem:[%s378 + $0x830] sm:$0xff]
        %v711 = vld [vmem:[%s378 + $0x838] sm:$0xff]
        %v712 = vld [vmem:[%s378 + $0x840] sm:$0xff]
        %v713 = vld [vmem:[%s378 + $0x848] sm:$0xff]
        %v714 = vld [vmem:[%s378 + $0x850] sm:$0xff]
        %v715 = vld [vmem:[%s378 + $0x858] sm:$0xff]
        %v716 = vld [vmem:[%s378 + $0x860] sm:$0xff]
        %v717 = vld [vmem:[%s378 + $0x868] sm:$0xff]
        %v718 = vld [vmem:[%s378 + $0x870] sm:$0xff]
        %v719 = vld [vmem:[%s378 + $0x878] sm:$0xff]
        %v720 = vld [vmem:[%s378 + $0x880] sm:$0xff]
        %v721 = vld [vmem:[%s378 + $0x888] sm:$0xff]
        %v722 = vld [vmem:[%s378 + $0x890] sm:$0xff]
        %v723 = vld [vmem:[%s378 + $0x898] sm:$0xff]
        %v724 = vld [vmem:[%s378 + $0x8a0] sm:$0xff]
        %v725 = vld [vmem:[%s378 + $0x8a8] sm:$0xff]
        %v726 = vld [vmem:[%s378 + $0x8b0] sm:$0xff]
        %v727 = vld [vmem:[%s378 + $0x8b8] sm:$0xff]
        %v728 = vld [vmem:[%s378 + $0x8c0] sm:$0xff]
        %v729 = vld [vmem:[%s378 + $0x8c8] sm:$0xff]
        %v730 = vld [vmem:[%s378 + $0x8d0] sm:$0xff]
        %v731 = vld [vmem:[%s378 + $0x8d8] sm:$0xff]
        %v732 = vld [vmem:[%s378 + $0x8e0] sm:$0xff]
        %v733 = vld [vmem:[%s378 + $0x8e8] sm:$0xff]
        %v734 = vld [vmem:[%s378 + $0x8f0] sm:$0xff]
        %v735 = vld [vmem:[%s378 + $0x8f8] sm:$0xff]
        %v736 = vld [vmem:[%s378 + $0x900] sm:$0xff]
        %v737 = vld [vmem:[%s378 + $0x908] sm:$0xff]
        %v738 = vld [vmem:[%s378 + $0x910] sm:$0xff]
        %v739 = vld [vmem:[%s378 + $0x918] sm:$0xff]
        %v740 = vld [vmem:[%s378 + $0x920] sm:$0xff]
        %v741 = vld [vmem:[%s378 + $0x928] sm:$0xff]
        %v742 = vld [vmem:[%s378 + $0x930] sm:$0xff]
        %v743 = vld [vmem:[%s378 + $0x938] sm:$0xff]
        %v744 = vld [vmem:[%s378 + $0x940] sm:$0xff]
        %v745 = vld [vmem:[%s378 + $0x948] sm:$0xff]
        %v746 = vld [vmem:[%s378 + $0x950] sm:$0xff]
        %v747 = vld [vmem:[%s378 + $0x958] sm:$0xff]
        %v748 = vld [vmem:[%s378 + $0x960] sm:$0xff]
        %v749 = vld [vmem:[%s378 + $0x968] sm:$0xff]
        %v750 = vld [vmem:[%s378 + $0x970] sm:$0xff]
        %v751 = vld [vmem:[%s378 + $0x978] sm:$0xff]
        %v752 = vld [vmem:[%s378 + $0x980] sm:$0xff]
        %v753 = vld [vmem:[%s378 + $0x988] sm:$0xff]
        %v754 = vld [vmem:[%s378 + $0x990] sm:$0xff]
        %v755 = vld [vmem:[%s378 + $0x998] sm:$0xff]
        %v756 = vld [vmem:[%s378 + $0x9a0] sm:$0xff]
        %v757 = vld [vmem:[%s378 + $0x9a8] sm:$0xff]
        %v758 = vld [vmem:[%s378 + $0x9b0] sm:$0xff]
        %v759 = vld [vmem:[%s378 + $0x9b8] sm:$0xff]
        %v760 = vld [vmem:[%s378 + $0x9c0] sm:$0xff]
        %v761 = vld [vmem:[%s378 + $0x9c8] sm:$0xff]
        %v762 = vld [vmem:[%s378 + $0x9d0] sm:$0xff]
        %v763 = vld [vmem:[%s378 + $0x9d8] sm:$0xff]
        %v764 = vld [vmem:[%s378 + $0x9e0] sm:$0xff]
        %v765 = vld [vmem:[%s378 + $0x9e8] sm:$0xff]
        %v766 = vld [vmem:[%s378 + $0x9f0] sm:$0xff]
        %v767 = vld [vmem:[%s378 + $0x9f8] sm:$0xff]
        %v768 = vld [vmem:[%s378 + $0xa00] sm:$0xff]
        %v769 = vld [vmem:[%s378 + $0xa08] sm:$0xff]
        %v770 = vld [vmem:[%s378 + $0xa10] sm:$0xff]
        %v771 = vld [vmem:[%s378 + $0xa18] sm:$0xff]
        %v772 = vld [vmem:[%s378 + $0xa20] sm:$0xff]
        %v773 = vld [vmem:[%s378 + $0xa28] sm:$0xff]
        %v774 = vld [vmem:[%s378 + $0xa30] sm:$0xff]
        %v775 = vld [vmem:[%s378 + $0xa38] sm:$0xff]
        %v776 = vld [vmem:[%s378 + $0xa40] sm:$0xff]
        %v777 = vld [vmem:[%s378 + $0xa48] sm:$0xff]
        %v778 = vld [vmem:[%s378 + $0xa50] sm:$0xff]
        %v779 = vld [vmem:[%s378 + $0xa58] sm:$0xff]
        %v780 = vld [vmem:[%s378 + $0xa60] sm:$0xff]
        %v781 = vld [vmem:[%s378 + $0xa68] sm:$0xff]
        %v782 = vld [vmem:[%s378 + $0xa70] sm:$0xff]
        %v783 = vld [vmem:[%s378 + $0xa78] sm:$0xff]
        %v784 = vld [vmem:[%s378 + $0xa80] sm:$0xff]
        %v785 = vld [vmem:[%s378 + $0xa88] sm:$0xff]
        %v786 = vld [vmem:[%s378 + $0xa90] sm:$0xff]
        %v787 = vld [vmem:[%s378 + $0xa98] sm:$0xff]
        %v788 = vld [vmem:[%s378 + $0xaa0] sm:$0xff]
        %v789 = vld [vmem:[%s378 + $0xaa8] sm:$0xff]
        %v790 = vld [vmem:[%s378 + $0xab0] sm:$0xff]
        %v791 = vld [vmem:[%s378 + $0xab8] sm:$0xff]
        %v792 = vld [vmem:[%s378 + $0xac0] sm:$0xff]
        %v793 = vld [vmem:[%s378 + $0xac8] sm:$0xff]
        %v794 = vld [vmem:[%s378 + $0xad0] sm:$0xff]
        %v795 = vld [vmem:[%s378 + $0xad8] sm:$0xff]
        %v796 = vld [vmem:[%s378 + $0xae0] sm:$0xff]
        %v797 = vld [vmem:[%s378 + $0xae8] sm:$0xff]
        %v798 = vld [vmem:[%s378 + $0xaf0] sm:$0xff]
        %v799 = vld [vmem:[%s378 + $0xaf8] sm:$0xff]
        %v800 = vld [vmem:[%s378 + $0xb00] sm:$0xff]
        %v801 = vld [vmem:[%s378 + $0xb08] sm:$0xff]
        %v802 = vld [vmem:[%s378 + $0xb10] sm:$0xff]
        %v803 = vld [vmem:[%s378 + $0xb18] sm:$0xff]
        %v804 = vld [vmem:[%s378 + $0xb20] sm:$0xff]
        %v805 = vld [vmem:[%s378 + $0xb28] sm:$0xff]
        %v806 = vld [vmem:[%s378 + $0xb30] sm:$0xff]
        %v807 = vld [vmem:[%s378 + $0xb38] sm:$0xff]
        %v808 = vld [vmem:[%s378 + $0xb40] sm:$0xff]
        %v809 = vld [vmem:[%s378 + $0xb48] sm:$0xff]
        %v810 = vld [vmem:[%s378 + $0xb50] sm:$0xff]
        %v811 = vld [vmem:[%s378 + $0xb58] sm:$0xff]
        %v812 = vld [vmem:[%s378 + $0xb60] sm:$0xff]
        %v813 = vld [vmem:[%s378 + $0xb68] sm:$0xff]
        %v814 = vld [vmem:[%s378 + $0xb70] sm:$0xff]
        %v815 = vld [vmem:[%s378 + $0xb78] sm:$0xff]
        %v816 = vld [vmem:[%s378 + $0xb80] sm:$0xff]
        %v817 = vld [vmem:[%s378 + $0xb88] sm:$0xff]
        %v818 = vld [vmem:[%s378 + $0xb90] sm:$0xff]
        %v819 = vld [vmem:[%s378 + $0xb98] sm:$0xff]
        %v820 = vld [vmem:[%s378 + $0xba0] sm:$0xff]
        %v821 = vld [vmem:[%s378 + $0xba8] sm:$0xff]
        %v822 = vld [vmem:[%s378 + $0xbb0] sm:$0xff]
        %v823 = vld [vmem:[%s378 + $0xbb8] sm:$0xff]
        %v824 = vld [vmem:[%s378 + $0xbc0] sm:$0xff]
        %v825 = vld [vmem:[%s378 + $0xbc8] sm:$0xff]
        %v826 = vld [vmem:[%s378 + $0xbd0] sm:$0xff]
        %v827 = vld [vmem:[%s378 + $0xbd8] sm:$0xff]
        %v828 = vld [vmem:[%s378 + $0xbe0] sm:$0xff]
        %v829 = vld [vmem:[%s378 + $0xbe8] sm:$0xff]
        %v830 = vld [vmem:[%s378 + $0xbf0] sm:$0xff]
        %v831 = vld [vmem:[%s378 + $0xbf8] sm:$0xff]
        %v832 = vld [vmem:[%s378 + $0xc00] sm:$0xff]
        %v833 = vld [vmem:[%s378 + $0xc08] sm:$0xff]
        %v834 = vld [vmem:[%s378 + $0xc10] sm:$0xff]
        %v835 = vld [vmem:[%s378 + $0xc18] sm:$0xff]
        %v836 = vld [vmem:[%s378 + $0xc20] sm:$0xff]
        %v837 = vld [vmem:[%s378 + $0xc28] sm:$0xff]
        %v838 = vld [vmem:[%s378 + $0xc30] sm:$0xff]
        %v839 = vld [vmem:[%s378 + $0xc38] sm:$0xff]
        %v840 = vld [vmem:[%s378 + $0xc40] sm:$0xff]
        %v841 = vld [vmem:[%s378 + $0xc48] sm:$0xff]
        %v842 = vld [vmem:[%s378 + $0xc50] sm:$0xff]
        %v843 = vld [vmem:[%s378 + $0xc58] sm:$0xff]
        %v844 = vld [vmem:[%s378 + $0xc60] sm:$0xff]
        %v845 = vld [vmem:[%s378 + $0xc68] sm:$0xff]
        %v846 = vld [vmem:[%s378 + $0xc70] sm:$0xff]
        %v847 = vld [vmem:[%s378 + $0xc78] sm:$0xff]
        %v848 = vld [vmem:[%s378 + $0xc80] sm:$0xff]
        %v849 = vld [vmem:[%s378 + $0xc88] sm:$0xff]
        %v850 = vld [vmem:[%s378 + $0xc90] sm:$0xff]
        %v851 = vld [vmem:[%s378 + $0xc98] sm:$0xff]
        %v852 = vld [vmem:[%s378 + $0xca0] sm:$0xff]
        %v853 = vld [vmem:[%s378 + $0xca8] sm:$0xff]
        %v854 = vld [vmem:[%s378 + $0xcb0] sm:$0xff]
        %v855 = vld [vmem:[%s378 + $0xcb8] sm:$0xff]
        %v856 = vld [vmem:[%s378 + $0xcc0] sm:$0xff]
        %v857 = vld [vmem:[%s378 + $0xcc8] sm:$0xff]
        %v858 = vld [vmem:[%s378 + $0xcd0] sm:$0xff]
        %v859 = vld [vmem:[%s378 + $0xcd8] sm:$0xff]
        %v860 = vld [vmem:[%s378 + $0xce0] sm:$0xff]
        %v861 = vld [vmem:[%s378 + $0xce8] sm:$0xff]
        %v862 = vld [vmem:[%s378 + $0xcf0] sm:$0xff]
        %v863 = vld [vmem:[%s378 + $0xcf8] sm:$0xff]
        %v864 = vld [vmem:[%s378 + $0xd00] sm:$0xff]
        %v865 = vld [vmem:[%s378 + $0xd08] sm:$0xff]
        %v866 = vld [vmem:[%s378 + $0xd10] sm:$0xff]
        %v867 = vld [vmem:[%s378 + $0xd18] sm:$0xff]
        %v868 = vld [vmem:[%s378 + $0xd20] sm:$0xff]
        %v869 = vld [vmem:[%s378 + $0xd28] sm:$0xff]
        %v870 = vld [vmem:[%s378 + $0xd30] sm:$0xff]
        %v871 = vld [vmem:[%s378 + $0xd38] sm:$0xff]
        %v872 = vld [vmem:[%s378 + $0xd40] sm:$0xff]
        %v873 = vld [vmem:[%s378 + $0xd48] sm:$0xff]
        %v874 = vld [vmem:[%s378 + $0xd50] sm:$0xff]
        %v875 = vld [vmem:[%s378 + $0xd58] sm:$0xff]
        %v876 = vld [vmem:[%s378 + $0xd60] sm:$0xff]
        %v877 = vld [vmem:[%s378 + $0xd68] sm:$0xff]
        %v878 = vld [vmem:[%s378 + $0xd70] sm:$0xff]
        %v879 = vld [vmem:[%s378 + $0xd78] sm:$0xff]
        %v880 = vld [vmem:[%s378 + $0xd80] sm:$0xff]
        %v881 = vld [vmem:[%s378 + $0xd88] sm:$0xff]
        %v882 = vld [vmem:[%s378 + $0xd90] sm:$0xff]
        %v883 = vld [vmem:[%s378 + $0xd98] sm:$0xff]
        %v884 = vld [vmem:[%s378 + $0xda0] sm:$0xff]
        %v885 = vld [vmem:[%s378 + $0xda8] sm:$0xff]
        %v886 = vld [vmem:[%s378 + $0xdb0] sm:$0xff]
        %v887 = vld [vmem:[%s378 + $0xdb8] sm:$0xff]
        %v888 = vld [vmem:[%s378 + $0xdc0] sm:$0xff]
        %v889 = vld [vmem:[%s378 + $0xdc8] sm:$0xff]
        %v890 = vld [vmem:[%s378 + $0xdd0] sm:$0xff]
        %v891 = vld [vmem:[%s378 + $0xdd8] sm:$0xff]
        %v892 = vld [vmem:[%s378 + $0xde0] sm:$0xff]
        %v893 = vld [vmem:[%s378 + $0xde8] sm:$0xff]
        %v894 = vld [vmem:[%s378 + $0xdf0] sm:$0xff]
        %v895 = vld [vmem:[%s378 + $0xdf8] sm:$0xff]
        %v896 = vld [vmem:[%s378 + $0xe00] sm:$0xff]
        %v897 = vld [vmem:[%s378 + $0xe08] sm:$0xff]
        %v898 = vld [vmem:[%s378 + $0xe10] sm:$0xff]
        %v899 = vld [vmem:[%s378 + $0xe18] sm:$0xff]
        %v900 = vld [vmem:[%s378 + $0xe20] sm:$0xff]
        %v901 = vld [vmem:[%s378 + $0xe28] sm:$0xff]
        %v902 = vld [vmem:[%s378 + $0xe30] sm:$0xff]
        %v903 = vld [vmem:[%s378 + $0xe38] sm:$0xff]
        %v904 = vld [vmem:[%s378 + $0xe40] sm:$0xff]
        %v905 = vld [vmem:[%s378 + $0xe48] sm:$0xff]
        %v906 = vld [vmem:[%s378 + $0xe50] sm:$0xff]
        %v907 = vld [vmem:[%s378 + $0xe58] sm:$0xff]
        %v908 = vld [vmem:[%s378 + $0xe60] sm:$0xff]
        %v909 = vld [vmem:[%s378 + $0xe68] sm:$0xff]
        %v910 = vld [vmem:[%s378 + $0xe70] sm:$0xff]
        %v911 = vld [vmem:[%s378 + $0xe78] sm:$0xff]
        %v912 = vld [vmem:[%s378 + $0xe80] sm:$0xff]
        %v913 = vld [vmem:[%s378 + $0xe88] sm:$0xff]
        %v914 = vld [vmem:[%s378 + $0xe90] sm:$0xff]
        %v915 = vld [vmem:[%s378 + $0xe98] sm:$0xff]
        %v916 = vld [vmem:[%s378 + $0xea0] sm:$0xff]
        %v917 = vld [vmem:[%s378 + $0xea8] sm:$0xff]
        %v918 = vld [vmem:[%s378 + $0xeb0] sm:$0xff]
        %v919 = vld [vmem:[%s378 + $0xeb8] sm:$0xff]
        %v920 = vld [vmem:[%s378 + $0xec0] sm:$0xff]
        %v921 = vld [vmem:[%s378 + $0xec8] sm:$0xff]
        %v922 = vld [vmem:[%s378 + $0xed0] sm:$0xff]
        %v923 = vld [vmem:[%s378 + $0xed8] sm:$0xff]
        %v924 = vld [vmem:[%s378 + $0xee0] sm:$0xff]
        %v925 = vld [vmem:[%s378 + $0xee8] sm:$0xff]
        %v926 = vld [vmem:[%s378 + $0xef0] sm:$0xff]
        %v927 = vld [vmem:[%s378 + $0xef8] sm:$0xff]
        %v928 = vld [vmem:[%s378 + $0xf00] sm:$0xff]
        %v929 = vld [vmem:[%s378 + $0xf08] sm:$0xff]
        %v930 = vld [vmem:[%s378 + $0xf10] sm:$0xff]
        %v931 = vld [vmem:[%s378 + $0xf18] sm:$0xff]
        %v932 = vld [vmem:[%s378 + $0xf20] sm:$0xff]
        %v933 = vld [vmem:[%s378 + $0xf28] sm:$0xff]
        %v934 = vld [vmem:[%s378 + $0xf30] sm:$0xff]
        %v935 = vld [vmem:[%s378 + $0xf38] sm:$0xff]
        %v936 = vld [vmem:[%s378 + $0xf40] sm:$0xff]
        %v937 = vld [vmem:[%s378 + $0xf48] sm:$0xff]
        %v938 = vld [vmem:[%s378 + $0xf50] sm:$0xff]
        %v939 = vld [vmem:[%s378 + $0xf58] sm:$0xff]
        %v940 = vld [vmem:[%s378 + $0xf60] sm:$0xff]
        %v941 = vld [vmem:[%s378 + $0xf68] sm:$0xff]
        %v942 = vld [vmem:[%s378 + $0xf70] sm:$0xff]
        %v943 = vld [vmem:[%s378 + $0xf78] sm:$0xff]
        %v944 = vld [vmem:[%s378 + $0xf80] sm:$0xff]
        %v945 = vld [vmem:[%s378 + $0xf88] sm:$0xff]
        %v946 = vld [vmem:[%s378 + $0xf90] sm:$0xff]
        %v947 = vld [vmem:[%s378 + $0xf98] sm:$0xff]
        %v948 = vld [vmem:[%s378 + $0xfa0] sm:$0xff]
        %v949 = vld [vmem:[%s378 + $0xfa8] sm:$0xff]
        %v950 = vld [vmem:[%s378 + $0xfb0] sm:$0xff]
        %v951 = vld [vmem:[%s378 + $0xfb8] sm:$0xff]
        %v952 = vld [vmem:[%s378 + $0xfc0] sm:$0xff]
        %v953 = vld [vmem:[%s378 + $0xfc8] sm:$0xff]
        %v954 = vld [vmem:[%s378 + $0xfd0] sm:$0xff]
        %v955 = vld [vmem:[%s378 + $0xfd8] sm:$0xff]
        %v956 = vld [vmem:[%s378 + $0xfe0] sm:$0xff]
        %v957 = vld [vmem:[%s378 + $0xfe8] sm:$0xff]
        %v958 = vld [vmem:[%s378 + $0xff0] sm:$0xff]
        %v959 = vld [vmem:[%s378 + $0xff8] sm:$0xff]
        %v960 = vpack.c.bf16 %v464, %v448
        %v961 = vpack.c.bf16 %v465, %v449
        %v962 = vpack.c.bf16 %v466, %v450
        %v963 = vpack.c.bf16 %v467, %v451
        %v964 = vpack.c.bf16 %v468, %v452
        %v965 = vpack.c.bf16 %v469, %v453
        %v966 = vpack.c.bf16 %v470, %v454
        %v967 = vpack.c.bf16 %v471, %v455
        %v968 = vpack.c.bf16 %v472, %v456
        %v969 = vpack.c.bf16 %v473, %v457
        %v970 = vpack.c.bf16 %v474, %v458
        %v971 = vpack.c.bf16 %v475, %v459
        %v972 = vpack.c.bf16 %v476, %v460
        %v973 = vpack.c.bf16 %v477, %v461
        %v974 = vpack.c.bf16 %v478, %v462
        %v975 = vpack.c.bf16 %v479, %v463
        %v976 = vpack.c.bf16 %v496, %v480
        %v977 = vpack.c.bf16 %v497, %v481
        %v978 = vpack.c.bf16 %v498, %v482
        %v979 = vpack.c.bf16 %v499, %v483
        %v980 = vpack.c.bf16 %v500, %v484
        %v981 = vpack.c.bf16 %v501, %v485
        %v982 = vpack.c.bf16 %v502, %v486
        %v983 = vpack.c.bf16 %v503, %v487
        %v984 = vpack.c.bf16 %v504, %v488
        %v985 = vpack.c.bf16 %v505, %v489
        %v986 = vpack.c.bf16 %v506, %v490
        %v987 = vpack.c.bf16 %v507, %v491
        %v988 = vpack.c.bf16 %v508, %v492
        %v989 = vpack.c.bf16 %v509, %v493
        %v990 = vpack.c.bf16 %v510, %v494
        %v991 = vpack.c.bf16 %v511, %v495
        %v992 = vpack.c.bf16 %v528, %v512
        %v993 = vpack.c.bf16 %v529, %v513
        %v994 = vpack.c.bf16 %v530, %v514
        %v995 = vpack.c.bf16 %v531, %v515
        %v996 = vpack.c.bf16 %v532, %v516
        %v997 = vpack.c.bf16 %v533, %v517
        %v998 = vpack.c.bf16 %v534, %v518
        %v999 = vpack.c.bf16 %v535, %v519
        %v1000 = vpack.c.bf16 %v536, %v520
        %v1001 = vpack.c.bf16 %v537, %v521
        %v1002 = vpack.c.bf16 %v538, %v522
        %v1003 = vpack.c.bf16 %v539, %v523
        %v1004 = vpack.c.bf16 %v540, %v524
        %v1005 = vpack.c.bf16 %v541, %v525
        %v1006 = vpack.c.bf16 %v542, %v526
        %v1007 = vpack.c.bf16 %v543, %v527
        %v1008 = vpack.c.bf16 %v560, %v544
        %v1009 = vpack.c.bf16 %v561, %v545
        %v1010 = vpack.c.bf16 %v562, %v546
        %v1011 = vpack.c.bf16 %v563, %v547
        %v1012 = vpack.c.bf16 %v564, %v548
        %v1013 = vpack.c.bf16 %v565, %v549
        %v1014 = vpack.c.bf16 %v566, %v550
        %v1015 = vpack.c.bf16 %v567, %v551
        %v1016 = vpack.c.bf16 %v568, %v552
        %v1017 = vpack.c.bf16 %v569, %v553
        %v1018 = vpack.c.bf16 %v570, %v554
        %v1019 = vpack.c.bf16 %v571, %v555
        %v1020 = vpack.c.bf16 %v572, %v556
        %v1021 = vpack.c.bf16 %v573, %v557
        %v1022 = vpack.c.bf16 %v574, %v558
        %v1023 = vpack.c.bf16 %v575, %v559
        %v1024 = vpack.c.bf16 %v592, %v576
        %v1025 = vpack.c.bf16 %v593, %v577
        %v1026 = vpack.c.bf16 %v594, %v578
        %v1027 = vpack.c.bf16 %v595, %v579
        %v1028 = vpack.c.bf16 %v596, %v580
        %v1029 = vpack.c.bf16 %v597, %v581
        %v1030 = vpack.c.bf16 %v598, %v582
        %v1031 = vpack.c.bf16 %v599, %v583
        %v1032 = vpack.c.bf16 %v600, %v584
        %v1033 = vpack.c.bf16 %v601, %v585
        %v1034 = vpack.c.bf16 %v602, %v586
        %v1035 = vpack.c.bf16 %v603, %v587
        %v1036 = vpack.c.bf16 %v604, %v588
        %v1037 = vpack.c.bf16 %v605, %v589
        %v1038 = vpack.c.bf16 %v606, %v590
        %v1039 = vpack.c.bf16 %v607, %v591
        %v1040 = vpack.c.bf16 %v624, %v608
        %v1041 = vpack.c.bf16 %v625, %v609
        %v1042 = vpack.c.bf16 %v626, %v610
        %v1043 = vpack.c.bf16 %v627, %v611
        %v1044 = vpack.c.bf16 %v628, %v612
        %v1045 = vpack.c.bf16 %v629, %v613
        %v1046 = vpack.c.bf16 %v630, %v614
        %v1047 = vpack.c.bf16 %v631, %v615
        %v1048 = vpack.c.bf16 %v632, %v616
        %v1049 = vpack.c.bf16 %v633, %v617
        %v1050 = vpack.c.bf16 %v634, %v618
        %v1051 = vpack.c.bf16 %v635, %v619
        %v1052 = vpack.c.bf16 %v636, %v620
        %v1053 = vpack.c.bf16 %v637, %v621
        %v1054 = vpack.c.bf16 %v638, %v622
        %v1055 = vpack.c.bf16 %v639, %v623
        %v1056 = vpack.c.bf16 %v656, %v640
        %v1057 = vpack.c.bf16 %v657, %v641
        %v1058 = vpack.c.bf16 %v658, %v642
        %v1059 = vpack.c.bf16 %v659, %v643
        %v1060 = vpack.c.bf16 %v660, %v644
        %v1061 = vpack.c.bf16 %v661, %v645
        %v1062 = vpack.c.bf16 %v662, %v646
        %v1063 = vpack.c.bf16 %v663, %v647
        %v1064 = vpack.c.bf16 %v664, %v648
        %v1065 = vpack.c.bf16 %v665, %v649
        %v1066 = vpack.c.bf16 %v666, %v650
        %v1067 = vpack.c.bf16 %v667, %v651
        %v1068 = vpack.c.bf16 %v668, %v652
        %v1069 = vpack.c.bf16 %v669, %v653
        %v1070 = vpack.c.bf16 %v670, %v654
        %v1071 = vpack.c.bf16 %v671, %v655
        %v1072 = vpack.c.bf16 %v688, %v672
        %v1073 = vpack.c.bf16 %v689, %v673
        %v1074 = vpack.c.bf16 %v690, %v674
        %v1075 = vpack.c.bf16 %v691, %v675
        %v1076 = vpack.c.bf16 %v692, %v676
        %v1077 = vpack.c.bf16 %v693, %v677
        %v1078 = vpack.c.bf16 %v694, %v678
        %v1079 = vpack.c.bf16 %v695, %v679
        %v1080 = vpack.c.bf16 %v696, %v680
        %v1081 = vpack.c.bf16 %v697, %v681
        %v1082 = vpack.c.bf16 %v698, %v682
        %v1083 = vpack.c.bf16 %v699, %v683
        %v1084 = vpack.c.bf16 %v700, %v684
        %v1085 = vpack.c.bf16 %v701, %v685
        %v1086 = vpack.c.bf16 %v702, %v686
        %v1087 = vpack.c.bf16 %v703, %v687
        %v1088 = vpack.c.bf16 %v720, %v704
        %v1089 = vpack.c.bf16 %v721, %v705
        %v1090 = vpack.c.bf16 %v722, %v706
        %v1091 = vpack.c.bf16 %v723, %v707
        %v1092 = vpack.c.bf16 %v724, %v708
        %v1093 = vpack.c.bf16 %v725, %v709
        %v1094 = vpack.c.bf16 %v726, %v710
        %v1095 = vpack.c.bf16 %v727, %v711
        %v1096 = vpack.c.bf16 %v728, %v712
        %v1097 = vpack.c.bf16 %v729, %v713
        %v1098 = vpack.c.bf16 %v730, %v714
        %v1099 = vpack.c.bf16 %v731, %v715
        %v1100 = vpack.c.bf16 %v732, %v716
        %v1101 = vpack.c.bf16 %v733, %v717
        %v1102 = vpack.c.bf16 %v734, %v718
        %v1103 = vpack.c.bf16 %v735, %v719
        %v1104 = vpack.c.bf16 %v752, %v736
        %v1105 = vpack.c.bf16 %v753, %v737
        %v1106 = vpack.c.bf16 %v754, %v738
        %v1107 = vpack.c.bf16 %v755, %v739
        %v1108 = vpack.c.bf16 %v756, %v740
        %v1109 = vpack.c.bf16 %v757, %v741
        %v1110 = vpack.c.bf16 %v758, %v742
        %v1111 = vpack.c.bf16 %v759, %v743
        %v1112 = vpack.c.bf16 %v760, %v744
        %v1113 = vpack.c.bf16 %v761, %v745
        %v1114 = vpack.c.bf16 %v762, %v746
        %v1115 = vpack.c.bf16 %v763, %v747
        %v1116 = vpack.c.bf16 %v764, %v748
        %v1117 = vpack.c.bf16 %v765, %v749
        %v1118 = vpack.c.bf16 %v766, %v750
        %v1119 = vpack.c.bf16 %v767, %v751
        %v1120 = vpack.c.bf16 %v784, %v768
        %v1121 = vpack.c.bf16 %v785, %v769
        %v1122 = vpack.c.bf16 %v786, %v770
        %v1123 = vpack.c.bf16 %v787, %v771
        %v1124 = vpack.c.bf16 %v788, %v772
        %v1125 = vpack.c.bf16 %v789, %v773
        %v1126 = vpack.c.bf16 %v790, %v774
        %v1127 = vpack.c.bf16 %v791, %v775
        %v1128 = vpack.c.bf16 %v792, %v776
        %v1129 = vpack.c.bf16 %v793, %v777
        %v1130 = vpack.c.bf16 %v794, %v778
        %v1131 = vpack.c.bf16 %v795, %v779
        %v1132 = vpack.c.bf16 %v796, %v780
        %v1133 = vpack.c.bf16 %v797, %v781
        %v1134 = vpack.c.bf16 %v798, %v782
        %v1135 = vpack.c.bf16 %v799, %v783
        %v1136 = vpack.c.bf16 %v816, %v800
        %v1137 = vpack.c.bf16 %v817, %v801
        %v1138 = vpack.c.bf16 %v818, %v802
        %v1139 = vpack.c.bf16 %v819, %v803
        %v1140 = vpack.c.bf16 %v820, %v804
        %v1141 = vpack.c.bf16 %v821, %v805
        %v1142 = vpack.c.bf16 %v822, %v806
        %v1143 = vpack.c.bf16 %v823, %v807
        %v1144 = vpack.c.bf16 %v824, %v808
        %v1145 = vpack.c.bf16 %v825, %v809
        %v1146 = vpack.c.bf16 %v826, %v810
        %v1147 = vpack.c.bf16 %v827, %v811
        %v1148 = vpack.c.bf16 %v828, %v812
        %v1149 = vpack.c.bf16 %v829, %v813
        %v1150 = vpack.c.bf16 %v830, %v814
        %v1151 = vpack.c.bf16 %v831, %v815
        %v1152 = vpack.c.bf16 %v848, %v832
        %v1153 = vpack.c.bf16 %v849, %v833
        %v1154 = vpack.c.bf16 %v850, %v834
        %v1155 = vpack.c.bf16 %v851, %v835
        %v1156 = vpack.c.bf16 %v852, %v836
        %v1157 = vpack.c.bf16 %v853, %v837
        %v1158 = vpack.c.bf16 %v854, %v838
        %v1159 = vpack.c.bf16 %v855, %v839
        %v1160 = vpack.c.bf16 %v856, %v840
        %v1161 = vpack.c.bf16 %v857, %v841
        %v1162 = vpack.c.bf16 %v858, %v842
        %v1163 = vpack.c.bf16 %v859, %v843
        %v1164 = vpack.c.bf16 %v860, %v844
        %v1165 = vpack.c.bf16 %v861, %v845
        %v1166 = vpack.c.bf16 %v862, %v846
        %v1167 = vpack.c.bf16 %v863, %v847
        %v1168 = vpack.c.bf16 %v880, %v864
        %v1169 = vpack.c.bf16 %v881, %v865
        %v1170 = vpack.c.bf16 %v882, %v866
        %v1171 = vpack.c.bf16 %v883, %v867
        %v1172 = vpack.c.bf16 %v884, %v868
        %v1173 = vpack.c.bf16 %v885, %v869
        %v1174 = vpack.c.bf16 %v886, %v870
        %v1175 = vpack.c.bf16 %v887, %v871
        %v1176 = vpack.c.bf16 %v888, %v872
        %v1177 = vpack.c.bf16 %v889, %v873
        %v1178 = vpack.c.bf16 %v890, %v874
        %v1179 = vpack.c.bf16 %v891, %v875
        %v1180 = vpack.c.bf16 %v892, %v876
        %v1181 = vpack.c.bf16 %v893, %v877
        %v1182 = vpack.c.bf16 %v894, %v878
        %v1183 = vpack.c.bf16 %v895, %v879
        %v1184 = vpack.c.bf16 %v912, %v896
        %v1185 = vpack.c.bf16 %v913, %v897
        %v1186 = vpack.c.bf16 %v914, %v898
        %v1187 = vpack.c.bf16 %v915, %v899
        %v1188 = vpack.c.bf16 %v916, %v900
        %v1189 = vpack.c.bf16 %v917, %v901
        %v1190 = vpack.c.bf16 %v918, %v902
        %v1191 = vpack.c.bf16 %v919, %v903
        %v1192 = vpack.c.bf16 %v920, %v904
        %v1193 = vpack.c.bf16 %v921, %v905
        %v1194 = vpack.c.bf16 %v922, %v906
        %v1195 = vpack.c.bf16 %v923, %v907
        %v1196 = vpack.c.bf16 %v924, %v908
        %v1197 = vpack.c.bf16 %v925, %v909
        %v1198 = vpack.c.bf16 %v926, %v910
        %v1199 = vpack.c.bf16 %v927, %v911
        %v1200 = vpack.c.bf16 %v944, %v928
        %v1201 = vpack.c.bf16 %v945, %v929
        %v1202 = vpack.c.bf16 %v946, %v930
        %v1203 = vpack.c.bf16 %v947, %v931
        %v1204 = vpack.c.bf16 %v948, %v932
        %v1205 = vpack.c.bf16 %v949, %v933
        %v1206 = vpack.c.bf16 %v950, %v934
        %v1207 = vpack.c.bf16 %v951, %v935
        %v1208 = vpack.c.bf16 %v952, %v936
        %v1209 = vpack.c.bf16 %v953, %v937
        %v1210 = vpack.c.bf16 %v954, %v938
        %v1211 = vpack.c.bf16 %v955, %v939
        %v1212 = vpack.c.bf16 %v956, %v940
        %v1213 = vpack.c.bf16 %v957, %v941
        %v1214 = vpack.c.bf16 %v958, %v942
        %v1215 = vpack.c.bf16 %v959, %v943
        %v1216 = vld [vmem:[#allocation5] sm:$0xff]
        %v1217 = vld [vmem:[#allocation5 + $0x8] sm:$0xff]
        %v1218 = vld [vmem:[#allocation5 + $0x10] sm:$0xff]
        %v1219 = vld [vmem:[#allocation5 + $0x18] sm:$0xff]
        %v1220 = vld [vmem:[#allocation5 + $0x20] sm:$0xff]
        %v1221 = vld [vmem:[#allocation5 + $0x28] sm:$0xff]
        %v1222 = vld [vmem:[#allocation5 + $0x30] sm:$0xff]
        %v1223 = vld [vmem:[#allocation5 + $0x38] sm:$0xff]
        %v1224 = vld [vmem:[#allocation5 + $0x40] sm:$0xff]
        %v1225 = vld [vmem:[#allocation5 + $0x48] sm:$0xff]
        %v1226 = vld [vmem:[#allocation5 + $0x50] sm:$0xff]
        %v1227 = vld [vmem:[#allocation5 + $0x58] sm:$0xff]
        %v1228 = vld [vmem:[#allocation5 + $0x60] sm:$0xff]
        %v1229 = vld [vmem:[#allocation5 + $0x68] sm:$0xff]
        %v1230 = vld [vmem:[#allocation5 + $0x70] sm:$0xff]
        %v1231 = vld [vmem:[#allocation5 + $0x78] sm:$0xff]
        %v1232 = vld [vmem:[#allocation5 + $0x80] sm:$0xff]
        %v1233 = vld [vmem:[#allocation5 + $0x88] sm:$0xff]
        %v1234 = vld [vmem:[#allocation5 + $0x90] sm:$0xff]
        %v1235 = vld [vmem:[#allocation5 + $0x98] sm:$0xff]
        %v1236 = vld [vmem:[#allocation5 + $0xa0] sm:$0xff]
        %v1237 = vld [vmem:[#allocation5 + $0xa8] sm:$0xff]
        %v1238 = vld [vmem:[#allocation5 + $0xb0] sm:$0xff]
        %v1239 = vld [vmem:[#allocation5 + $0xb8] sm:$0xff]
        %v1240 = vld [vmem:[#allocation5 + $0xc0] sm:$0xff]
        %v1241 = vld [vmem:[#allocation5 + $0xc8] sm:$0xff]
        %v1242 = vld [vmem:[#allocation5 + $0xd0] sm:$0xff]
        %v1243 = vld [vmem:[#allocation5 + $0xd8] sm:$0xff]
        %v1244 = vld [vmem:[#allocation5 + $0xe0] sm:$0xff]
        %v1245 = vld [vmem:[#allocation5 + $0xe8] sm:$0xff]
        %v1246 = vld [vmem:[#allocation5 + $0xf0] sm:$0xff]
        %v1247 = vld [vmem:[#allocation5 + $0xf8] sm:$0xff]
        %v1248 = vld [vmem:[#allocation5 + $0x100] sm:$0xff]
        %v1249 = vld [vmem:[#allocation5 + $0x108] sm:$0xff]
        %v1250 = vld [vmem:[#allocation5 + $0x110] sm:$0xff]
        %v1251 = vld [vmem:[#allocation5 + $0x118] sm:$0xff]
        %v1252 = vld [vmem:[#allocation5 + $0x120] sm:$0xff]
        %v1253 = vld [vmem:[#allocation5 + $0x128] sm:$0xff]
        %v1254 = vld [vmem:[#allocation5 + $0x130] sm:$0xff]
        %v1255 = vld [vmem:[#allocation5 + $0x138] sm:$0xff]
        %v1256 = vld [vmem:[#allocation5 + $0x140] sm:$0xff]
        %v1257 = vld [vmem:[#allocation5 + $0x148] sm:$0xff]
        %v1258 = vld [vmem:[#allocation5 + $0x150] sm:$0xff]
        %v1259 = vld [vmem:[#allocation5 + $0x158] sm:$0xff]
        %v1260 = vld [vmem:[#allocation5 + $0x160] sm:$0xff]
        %v1261 = vld [vmem:[#allocation5 + $0x168] sm:$0xff]
        %v1262 = vld [vmem:[#allocation5 + $0x170] sm:$0xff]
        %v1263 = vld [vmem:[#allocation5 + $0x178] sm:$0xff]
        %v1264 = vld [vmem:[#allocation5 + $0x180] sm:$0xff]
        %v1265 = vld [vmem:[#allocation5 + $0x188] sm:$0xff]
        %v1266 = vld [vmem:[#allocation5 + $0x190] sm:$0xff]
        %v1267 = vld [vmem:[#allocation5 + $0x198] sm:$0xff]
        %v1268 = vld [vmem:[#allocation5 + $0x1a0] sm:$0xff]
        %v1269 = vld [vmem:[#allocation5 + $0x1a8] sm:$0xff]
        %v1270 = vld [vmem:[#allocation5 + $0x1b0] sm:$0xff]
        %v1271 = vld [vmem:[#allocation5 + $0x1b8] sm:$0xff]
        %v1272 = vld [vmem:[#allocation5 + $0x1c0] sm:$0xff]
        %v1273 = vld [vmem:[#allocation5 + $0x1c8] sm:$0xff]
        %v1274 = vld [vmem:[#allocation5 + $0x1d0] sm:$0xff]
        %v1275 = vld [vmem:[#allocation5 + $0x1d8] sm:$0xff]
        %v1276 = vld [vmem:[#allocation5 + $0x1e0] sm:$0xff]
        %v1277 = vld [vmem:[#allocation5 + $0x1e8] sm:$0xff]
        %v1278 = vld [vmem:[#allocation5 + $0x1f0] sm:$0xff]
        %v1279 = vld [vmem:[#allocation5 + $0x1f8] sm:$0xff]
        %v1280 = vld [vmem:[#allocation5 + $0x200] sm:$0xff]
        %v1281 = vld [vmem:[#allocation5 + $0x208] sm:$0xff]
        %v1282 = vld [vmem:[#allocation5 + $0x210] sm:$0xff]
        %v1283 = vld [vmem:[#allocation5 + $0x218] sm:$0xff]
        %v1284 = vld [vmem:[#allocation5 + $0x220] sm:$0xff]
        %v1285 = vld [vmem:[#allocation5 + $0x228] sm:$0xff]
        %v1286 = vld [vmem:[#allocation5 + $0x230] sm:$0xff]
        %v1287 = vld [vmem:[#allocation5 + $0x238] sm:$0xff]
        %v1288 = vld [vmem:[#allocation5 + $0x240] sm:$0xff]
        %v1289 = vld [vmem:[#allocation5 + $0x248] sm:$0xff]
        %v1290 = vld [vmem:[#allocation5 + $0x250] sm:$0xff]
        %v1291 = vld [vmem:[#allocation5 + $0x258] sm:$0xff]
        %v1292 = vld [vmem:[#allocation5 + $0x260] sm:$0xff]
        %v1293 = vld [vmem:[#allocation5 + $0x268] sm:$0xff]
        %v1294 = vld [vmem:[#allocation5 + $0x270] sm:$0xff]
        %v1295 = vld [vmem:[#allocation5 + $0x278] sm:$0xff]
        %v1296 = vld [vmem:[#allocation5 + $0x280] sm:$0xff]
        %v1297 = vld [vmem:[#allocation5 + $0x288] sm:$0xff]
        %v1298 = vld [vmem:[#allocation5 + $0x290] sm:$0xff]
        %v1299 = vld [vmem:[#allocation5 + $0x298] sm:$0xff]
        %v1300 = vld [vmem:[#allocation5 + $0x2a0] sm:$0xff]
        %v1301 = vld [vmem:[#allocation5 + $0x2a8] sm:$0xff]
        %v1302 = vld [vmem:[#allocation5 + $0x2b0] sm:$0xff]
        %v1303 = vld [vmem:[#allocation5 + $0x2b8] sm:$0xff]
        %v1304 = vld [vmem:[#allocation5 + $0x2c0] sm:$0xff]
        %v1305 = vld [vmem:[#allocation5 + $0x2c8] sm:$0xff]
        %v1306 = vld [vmem:[#allocation5 + $0x2d0] sm:$0xff]
        %v1307 = vld [vmem:[#allocation5 + $0x2d8] sm:$0xff]
        %v1308 = vld [vmem:[#allocation5 + $0x2e0] sm:$0xff]
        %v1309 = vld [vmem:[#allocation5 + $0x2e8] sm:$0xff]
        %v1310 = vld [vmem:[#allocation5 + $0x2f0] sm:$0xff]
        %v1311 = vld [vmem:[#allocation5 + $0x2f8] sm:$0xff]
        %v1312 = vld [vmem:[#allocation5 + $0x300] sm:$0xff]
        %v1313 = vld [vmem:[#allocation5 + $0x308] sm:$0xff]
        %v1314 = vld [vmem:[#allocation5 + $0x310] sm:$0xff]
        %v1315 = vld [vmem:[#allocation5 + $0x318] sm:$0xff]
        %v1316 = vld [vmem:[#allocation5 + $0x320] sm:$0xff]
        %v1317 = vld [vmem:[#allocation5 + $0x328] sm:$0xff]
        %v1318 = vld [vmem:[#allocation5 + $0x330] sm:$0xff]
        %v1319 = vld [vmem:[#allocation5 + $0x338] sm:$0xff]
        %v1320 = vld [vmem:[#allocation5 + $0x340] sm:$0xff]
        %v1321 = vld [vmem:[#allocation5 + $0x348] sm:$0xff]
        %v1322 = vld [vmem:[#allocation5 + $0x350] sm:$0xff]
        %v1323 = vld [vmem:[#allocation5 + $0x358] sm:$0xff]
        %v1324 = vld [vmem:[#allocation5 + $0x360] sm:$0xff]
        %v1325 = vld [vmem:[#allocation5 + $0x368] sm:$0xff]
        %v1326 = vld [vmem:[#allocation5 + $0x370] sm:$0xff]
        %v1327 = vld [vmem:[#allocation5 + $0x378] sm:$0xff]
        %v1328 = vld [vmem:[#allocation5 + $0x380] sm:$0xff]
        %v1329 = vld [vmem:[#allocation5 + $0x388] sm:$0xff]
        %v1330 = vld [vmem:[#allocation5 + $0x390] sm:$0xff]
        %v1331 = vld [vmem:[#allocation5 + $0x398] sm:$0xff]
        %v1332 = vld [vmem:[#allocation5 + $0x3a0] sm:$0xff]
        %v1333 = vld [vmem:[#allocation5 + $0x3a8] sm:$0xff]
        %v1334 = vld [vmem:[#allocation5 + $0x3b0] sm:$0xff]
        %v1335 = vld [vmem:[#allocation5 + $0x3b8] sm:$0xff]
        %v1336 = vld [vmem:[#allocation5 + $0x3c0] sm:$0xff]
        %v1337 = vld [vmem:[#allocation5 + $0x3c8] sm:$0xff]
        %v1338 = vld [vmem:[#allocation5 + $0x3d0] sm:$0xff]
        %v1339 = vld [vmem:[#allocation5 + $0x3d8] sm:$0xff]
        %v1340 = vld [vmem:[#allocation5 + $0x3e0] sm:$0xff]
        %v1341 = vld [vmem:[#allocation5 + $0x3e8] sm:$0xff]
        %v1342 = vld [vmem:[#allocation5 + $0x3f0] sm:$0xff]
        %v1343 = vld [vmem:[#allocation5 + $0x3f8] sm:$0xff]
        %v1344 = vld [vmem:[#allocation5 + $0x400] sm:$0xff]
        %v1345 = vld [vmem:[#allocation5 + $0x408] sm:$0xff]
        %v1346 = vld [vmem:[#allocation5 + $0x410] sm:$0xff]
        %v1347 = vld [vmem:[#allocation5 + $0x418] sm:$0xff]
        %v1348 = vld [vmem:[#allocation5 + $0x420] sm:$0xff]
        %v1349 = vld [vmem:[#allocation5 + $0x428] sm:$0xff]
        %v1350 = vld [vmem:[#allocation5 + $0x430] sm:$0xff]
        %v1351 = vld [vmem:[#allocation5 + $0x438] sm:$0xff]
        %v1352 = vld [vmem:[#allocation5 + $0x440] sm:$0xff]
        %v1353 = vld [vmem:[#allocation5 + $0x448] sm:$0xff]
        %v1354 = vld [vmem:[#allocation5 + $0x450] sm:$0xff]
        %v1355 = vld [vmem:[#allocation5 + $0x458] sm:$0xff]
        %v1356 = vld [vmem:[#allocation5 + $0x460] sm:$0xff]
        %v1357 = vld [vmem:[#allocation5 + $0x468] sm:$0xff]
        %v1358 = vld [vmem:[#allocation5 + $0x470] sm:$0xff]
        %v1359 = vld [vmem:[#allocation5 + $0x478] sm:$0xff]
        %v1360 = vld [vmem:[#allocation5 + $0x480] sm:$0xff]
        %v1361 = vld [vmem:[#allocation5 + $0x488] sm:$0xff]
        %v1362 = vld [vmem:[#allocation5 + $0x490] sm:$0xff]
        %v1363 = vld [vmem:[#allocation5 + $0x498] sm:$0xff]
        %v1364 = vld [vmem:[#allocation5 + $0x4a0] sm:$0xff]
        %v1365 = vld [vmem:[#allocation5 + $0x4a8] sm:$0xff]
        %v1366 = vld [vmem:[#allocation5 + $0x4b0] sm:$0xff]
        %v1367 = vld [vmem:[#allocation5 + $0x4b8] sm:$0xff]
        %v1368 = vld [vmem:[#allocation5 + $0x4c0] sm:$0xff]
        %v1369 = vld [vmem:[#allocation5 + $0x4c8] sm:$0xff]
        %v1370 = vld [vmem:[#allocation5 + $0x4d0] sm:$0xff]
        %v1371 = vld [vmem:[#allocation5 + $0x4d8] sm:$0xff]
        %v1372 = vld [vmem:[#allocation5 + $0x4e0] sm:$0xff]
        %v1373 = vld [vmem:[#allocation5 + $0x4e8] sm:$0xff]
        %v1374 = vld [vmem:[#allocation5 + $0x4f0] sm:$0xff]
        %v1375 = vld [vmem:[#allocation5 + $0x4f8] sm:$0xff]
        %v1376 = vld [vmem:[#allocation5 + $0x500] sm:$0xff]
        %v1377 = vld [vmem:[#allocation5 + $0x508] sm:$0xff]
        %v1378 = vld [vmem:[#allocation5 + $0x510] sm:$0xff]
        %v1379 = vld [vmem:[#allocation5 + $0x518] sm:$0xff]
        %v1380 = vld [vmem:[#allocation5 + $0x520] sm:$0xff]
        %v1381 = vld [vmem:[#allocation5 + $0x528] sm:$0xff]
        %v1382 = vld [vmem:[#allocation5 + $0x530] sm:$0xff]
        %v1383 = vld [vmem:[#allocation5 + $0x538] sm:$0xff]
        %v1384 = vld [vmem:[#allocation5 + $0x540] sm:$0xff]
        %v1385 = vld [vmem:[#allocation5 + $0x548] sm:$0xff]
        %v1386 = vld [vmem:[#allocation5 + $0x550] sm:$0xff]
        %v1387 = vld [vmem:[#allocation5 + $0x558] sm:$0xff]
        %v1388 = vld [vmem:[#allocation5 + $0x560] sm:$0xff]
        %v1389 = vld [vmem:[#allocation5 + $0x568] sm:$0xff]
        %v1390 = vld [vmem:[#allocation5 + $0x570] sm:$0xff]
        %v1391 = vld [vmem:[#allocation5 + $0x578] sm:$0xff]
        %v1392 = vld [vmem:[#allocation5 + $0x580] sm:$0xff]
        %v1393 = vld [vmem:[#allocation5 + $0x588] sm:$0xff]
        %v1394 = vld [vmem:[#allocation5 + $0x590] sm:$0xff]
        %v1395 = vld [vmem:[#allocation5 + $0x598] sm:$0xff]
        %v1396 = vld [vmem:[#allocation5 + $0x5a0] sm:$0xff]
        %v1397 = vld [vmem:[#allocation5 + $0x5a8] sm:$0xff]
        %v1398 = vld [vmem:[#allocation5 + $0x5b0] sm:$0xff]
        %v1399 = vld [vmem:[#allocation5 + $0x5b8] sm:$0xff]
        %v1400 = vld [vmem:[#allocation5 + $0x5c0] sm:$0xff]
        %v1401 = vld [vmem:[#allocation5 + $0x5c8] sm:$0xff]
        %v1402 = vld [vmem:[#allocation5 + $0x5d0] sm:$0xff]
        %v1403 = vld [vmem:[#allocation5 + $0x5d8] sm:$0xff]
        %v1404 = vld [vmem:[#allocation5 + $0x5e0] sm:$0xff]
        %v1405 = vld [vmem:[#allocation5 + $0x5e8] sm:$0xff]
        %v1406 = vld [vmem:[#allocation5 + $0x5f0] sm:$0xff]
        %v1407 = vld [vmem:[#allocation5 + $0x5f8] sm:$0xff]
        %v1408 = vld [vmem:[#allocation5 + $0x600] sm:$0xff]
        %v1409 = vld [vmem:[#allocation5 + $0x608] sm:$0xff]
        %v1410 = vld [vmem:[#allocation5 + $0x610] sm:$0xff]
        %v1411 = vld [vmem:[#allocation5 + $0x618] sm:$0xff]
        %v1412 = vld [vmem:[#allocation5 + $0x620] sm:$0xff]
        %v1413 = vld [vmem:[#allocation5 + $0x628] sm:$0xff]
        %v1414 = vld [vmem:[#allocation5 + $0x630] sm:$0xff]
        %v1415 = vld [vmem:[#allocation5 + $0x638] sm:$0xff]
        %v1416 = vld [vmem:[#allocation5 + $0x640] sm:$0xff]
        %v1417 = vld [vmem:[#allocation5 + $0x648] sm:$0xff]
        %v1418 = vld [vmem:[#allocation5 + $0x650] sm:$0xff]
        %v1419 = vld [vmem:[#allocation5 + $0x658] sm:$0xff]
        %v1420 = vld [vmem:[#allocation5 + $0x660] sm:$0xff]
        %v1421 = vld [vmem:[#allocation5 + $0x668] sm:$0xff]
        %v1422 = vld [vmem:[#allocation5 + $0x670] sm:$0xff]
        %v1423 = vld [vmem:[#allocation5 + $0x678] sm:$0xff]
        %v1424 = vld [vmem:[#allocation5 + $0x680] sm:$0xff]
        %v1425 = vld [vmem:[#allocation5 + $0x688] sm:$0xff]
        %v1426 = vld [vmem:[#allocation5 + $0x690] sm:$0xff]
        %v1427 = vld [vmem:[#allocation5 + $0x698] sm:$0xff]
        %v1428 = vld [vmem:[#allocation5 + $0x6a0] sm:$0xff]
        %v1429 = vld [vmem:[#allocation5 + $0x6a8] sm:$0xff]
        %v1430 = vld [vmem:[#allocation5 + $0x6b0] sm:$0xff]
        %v1431 = vld [vmem:[#allocation5 + $0x6b8] sm:$0xff]
        %v1432 = vld [vmem:[#allocation5 + $0x6c0] sm:$0xff]
        %v1433 = vld [vmem:[#allocation5 + $0x6c8] sm:$0xff]
        %v1434 = vld [vmem:[#allocation5 + $0x6d0] sm:$0xff]
        %v1435 = vld [vmem:[#allocation5 + $0x6d8] sm:$0xff]
        %v1436 = vld [vmem:[#allocation5 + $0x6e0] sm:$0xff]
        %v1437 = vld [vmem:[#allocation5 + $0x6e8] sm:$0xff]
        %v1438 = vld [vmem:[#allocation5 + $0x6f0] sm:$0xff]
        %v1439 = vld [vmem:[#allocation5 + $0x6f8] sm:$0xff]
        %v1440 = vld [vmem:[#allocation5 + $0x700] sm:$0xff]
        %v1441 = vld [vmem:[#allocation5 + $0x708] sm:$0xff]
        %v1442 = vld [vmem:[#allocation5 + $0x710] sm:$0xff]
        %v1443 = vld [vmem:[#allocation5 + $0x718] sm:$0xff]
        %v1444 = vld [vmem:[#allocation5 + $0x720] sm:$0xff]
        %v1445 = vld [vmem:[#allocation5 + $0x728] sm:$0xff]
        %v1446 = vld [vmem:[#allocation5 + $0x730] sm:$0xff]
        %v1447 = vld [vmem:[#allocation5 + $0x738] sm:$0xff]
        %v1448 = vld [vmem:[#allocation5 + $0x740] sm:$0xff]
        %v1449 = vld [vmem:[#allocation5 + $0x748] sm:$0xff]
        %v1450 = vld [vmem:[#allocation5 + $0x750] sm:$0xff]
        %v1451 = vld [vmem:[#allocation5 + $0x758] sm:$0xff]
        %v1452 = vld [vmem:[#allocation5 + $0x760] sm:$0xff]
        %v1453 = vld [vmem:[#allocation5 + $0x768] sm:$0xff]
        %v1454 = vld [vmem:[#allocation5 + $0x770] sm:$0xff]
        %v1455 = vld [vmem:[#allocation5 + $0x778] sm:$0xff]
        %v1456 = vld [vmem:[#allocation5 + $0x780] sm:$0xff]
        %v1457 = vld [vmem:[#allocation5 + $0x788] sm:$0xff]
        %v1458 = vld [vmem:[#allocation5 + $0x790] sm:$0xff]
        %v1459 = vld [vmem:[#allocation5 + $0x798] sm:$0xff]
        %v1460 = vld [vmem:[#allocation5 + $0x7a0] sm:$0xff]
        %v1461 = vld [vmem:[#allocation5 + $0x7a8] sm:$0xff]
        %v1462 = vld [vmem:[#allocation5 + $0x7b0] sm:$0xff]
        %v1463 = vld [vmem:[#allocation5 + $0x7b8] sm:$0xff]
        %v1464 = vld [vmem:[#allocation5 + $0x7c0] sm:$0xff]
        %v1465 = vld [vmem:[#allocation5 + $0x7c8] sm:$0xff]
        %v1466 = vld [vmem:[#allocation5 + $0x7d0] sm:$0xff]
        %v1467 = vld [vmem:[#allocation5 + $0x7d8] sm:$0xff]
        %v1468 = vld [vmem:[#allocation5 + $0x7e0] sm:$0xff]
        %v1469 = vld [vmem:[#allocation5 + $0x7e8] sm:$0xff]
        %v1470 = vld [vmem:[#allocation5 + $0x7f0] sm:$0xff]
        %v1471 = vld [vmem:[#allocation5 + $0x7f8] sm:$0xff]
        %v1472 = vld [vmem:[#allocation7] sm:$0x3]
        %v1474 = vlaneseq
        %v1475 = vshrl.u32 %v1474, 7
        %v1476 = vsub.s32 0, %v1475
        %v1477 = vrot.slane %v1472, %v1476
        %v1478 = vlaneseq
        %v1479 = vshrl.u32 %v1478, 7
        %v1480 = vsub.s32 1, %v1479
        %v1481 = vrot.slane %v1472, %v1480
        %v1740 = vunpack.c.l.b16 %v1216
        %v1741 = vunpack.c.h.b16 %v1216
        %v1742 = vunpack.c.l.b16 %v1217
        %v1743 = vunpack.c.h.b16 %v1217
        %v1744 = vunpack.c.l.b16 %v1218
        %v1745 = vunpack.c.h.b16 %v1218
        %v1746 = vunpack.c.l.b16 %v1219
        %v1747 = vunpack.c.h.b16 %v1219
        %v1748 = vunpack.c.l.b16 %v1220
        %v1749 = vunpack.c.h.b16 %v1220
        %v1750 = vunpack.c.l.b16 %v1221
        %v1751 = vunpack.c.h.b16 %v1221
        %v1752 = vunpack.c.l.b16 %v1222
        %v1753 = vunpack.c.h.b16 %v1222
        %v1754 = vunpack.c.l.b16 %v1223
        %v1755 = vunpack.c.h.b16 %v1223
        %v1756 = vunpack.c.l.b16 %v1224
        %v1757 = vunpack.c.h.b16 %v1224
        %v1758 = vunpack.c.l.b16 %v1225
        %v1759 = vunpack.c.h.b16 %v1225
        %v1760 = vunpack.c.l.b16 %v1226
        %v1761 = vunpack.c.h.b16 %v1226
        %v1762 = vunpack.c.l.b16 %v1227
        %v1763 = vunpack.c.h.b16 %v1227
        %v1764 = vunpack.c.l.b16 %v1228
        %v1765 = vunpack.c.h.b16 %v1228
        %v1766 = vunpack.c.l.b16 %v1229
        %v1767 = vunpack.c.h.b16 %v1229
        %v1768 = vunpack.c.l.b16 %v1230
        %v1769 = vunpack.c.h.b16 %v1230
        %v1770 = vunpack.c.l.b16 %v1231
        %v1771 = vunpack.c.h.b16 %v1231
        %v1772 = vunpack.c.l.b16 %v1232
        %v1773 = vunpack.c.h.b16 %v1232
        %v1774 = vunpack.c.l.b16 %v1233
        %v1775 = vunpack.c.h.b16 %v1233
        %v1776 = vunpack.c.l.b16 %v1234
        %v1777 = vunpack.c.h.b16 %v1234
        %v1778 = vunpack.c.l.b16 %v1235
        %v1779 = vunpack.c.h.b16 %v1235
        %v1780 = vunpack.c.l.b16 %v1236
        %v1781 = vunpack.c.h.b16 %v1236
        %v1782 = vunpack.c.l.b16 %v1237
        %v1783 = vunpack.c.h.b16 %v1237
        %v1784 = vunpack.c.l.b16 %v1238
        %v1785 = vunpack.c.h.b16 %v1238
        %v1786 = vunpack.c.l.b16 %v1239
        %v1787 = vunpack.c.h.b16 %v1239
        %v1788 = vunpack.c.l.b16 %v1240
        %v1789 = vunpack.c.h.b16 %v1240
        %v1790 = vunpack.c.l.b16 %v1241
        %v1791 = vunpack.c.h.b16 %v1241
        %v1792 = vunpack.c.l.b16 %v1242
        %v1793 = vunpack.c.h.b16 %v1242
        %v1794 = vunpack.c.l.b16 %v1243
        %v1795 = vunpack.c.h.b16 %v1243
        %v1796 = vunpack.c.l.b16 %v1244
        %v1797 = vunpack.c.h.b16 %v1244
        %v1798 = vunpack.c.l.b16 %v1245
        %v1799 = vunpack.c.h.b16 %v1245
        %v1800 = vunpack.c.l.b16 %v1246
        %v1801 = vunpack.c.h.b16 %v1246
        %v1802 = vunpack.c.l.b16 %v1247
        %v1803 = vunpack.c.h.b16 %v1247
        %v1804 = vunpack.c.l.b16 %v1248
        %v1805 = vunpack.c.h.b16 %v1248
        %v1806 = vunpack.c.l.b16 %v1249
        %v1807 = vunpack.c.h.b16 %v1249
        %v1808 = vunpack.c.l.b16 %v1250
        %v1809 = vunpack.c.h.b16 %v1250
        %v1810 = vunpack.c.l.b16 %v1251
        %v1811 = vunpack.c.h.b16 %v1251
        %v1812 = vunpack.c.l.b16 %v1252
        %v1813 = vunpack.c.h.b16 %v1252
        %v1814 = vunpack.c.l.b16 %v1253
        %v1815 = vunpack.c.h.b16 %v1253
        %v1816 = vunpack.c.l.b16 %v1254
        %v1817 = vunpack.c.h.b16 %v1254
        %v1818 = vunpack.c.l.b16 %v1255
        %v1819 = vunpack.c.h.b16 %v1255
        %v1820 = vunpack.c.l.b16 %v1256
        %v1821 = vunpack.c.h.b16 %v1256
        %v1822 = vunpack.c.l.b16 %v1257
        %v1823 = vunpack.c.h.b16 %v1257
        %v1824 = vunpack.c.l.b16 %v1258
        %v1825 = vunpack.c.h.b16 %v1258
        %v1826 = vunpack.c.l.b16 %v1259
        %v1827 = vunpack.c.h.b16 %v1259
        %v1828 = vunpack.c.l.b16 %v1260
        %v1829 = vunpack.c.h.b16 %v1260
        %v1830 = vunpack.c.l.b16 %v1261
        %v1831 = vunpack.c.h.b16 %v1261
        %v1832 = vunpack.c.l.b16 %v1262
        %v1833 = vunpack.c.h.b16 %v1262
        %v1834 = vunpack.c.l.b16 %v1263
        %v1835 = vunpack.c.h.b16 %v1263
        %v1836 = vunpack.c.l.b16 %v1264
        %v1837 = vunpack.c.h.b16 %v1264
        %v1838 = vunpack.c.l.b16 %v1265
        %v1839 = vunpack.c.h.b16 %v1265
        %v1840 = vunpack.c.l.b16 %v1266
        %v1841 = vunpack.c.h.b16 %v1266
        %v1842 = vunpack.c.l.b16 %v1267
        %v1843 = vunpack.c.h.b16 %v1267
        %v1844 = vunpack.c.l.b16 %v1268
        %v1845 = vunpack.c.h.b16 %v1268
        %v1846 = vunpack.c.l.b16 %v1269
        %v1847 = vunpack.c.h.b16 %v1269
        %v1848 = vunpack.c.l.b16 %v1270
        %v1849 = vunpack.c.h.b16 %v1270
        %v1850 = vunpack.c.l.b16 %v1271
        %v1851 = vunpack.c.h.b16 %v1271
        %v1852 = vunpack.c.l.b16 %v1272
        %v1853 = vunpack.c.h.b16 %v1272
        %v1854 = vunpack.c.l.b16 %v1273
        %v1855 = vunpack.c.h.b16 %v1273
        %v1856 = vunpack.c.l.b16 %v1274
        %v1857 = vunpack.c.h.b16 %v1274
        %v1858 = vunpack.c.l.b16 %v1275
        %v1859 = vunpack.c.h.b16 %v1275
        %v1860 = vunpack.c.l.b16 %v1276
        %v1861 = vunpack.c.h.b16 %v1276
        %v1862 = vunpack.c.l.b16 %v1277
        %v1863 = vunpack.c.h.b16 %v1277
        %v1864 = vunpack.c.l.b16 %v1278
        %v1865 = vunpack.c.h.b16 %v1278
        %v1866 = vunpack.c.l.b16 %v1279
        %v1867 = vunpack.c.h.b16 %v1279
        %v1868 = vunpack.c.l.b16 %v1280
        %v1869 = vunpack.c.h.b16 %v1280
        %v1870 = vunpack.c.l.b16 %v1281
        %v1871 = vunpack.c.h.b16 %v1281
        %v1872 = vunpack.c.l.b16 %v1282
        %v1873 = vunpack.c.h.b16 %v1282
        %v1874 = vunpack.c.l.b16 %v1283
        %v1875 = vunpack.c.h.b16 %v1283
        %v1876 = vunpack.c.l.b16 %v1284
        %v1877 = vunpack.c.h.b16 %v1284
        %v1878 = vunpack.c.l.b16 %v1285
        %v1879 = vunpack.c.h.b16 %v1285
        %v1880 = vunpack.c.l.b16 %v1286
        %v1881 = vunpack.c.h.b16 %v1286
        %v1882 = vunpack.c.l.b16 %v1287
        %v1883 = vunpack.c.h.b16 %v1287
        %v1884 = vunpack.c.l.b16 %v1288
        %v1885 = vunpack.c.h.b16 %v1288
        %v1886 = vunpack.c.l.b16 %v1289
        %v1887 = vunpack.c.h.b16 %v1289
        %v1888 = vunpack.c.l.b16 %v1290
        %v1889 = vunpack.c.h.b16 %v1290
        %v1890 = vunpack.c.l.b16 %v1291
        %v1891 = vunpack.c.h.b16 %v1291
        %v1892 = vunpack.c.l.b16 %v1292
        %v1893 = vunpack.c.h.b16 %v1292
        %v1894 = vunpack.c.l.b16 %v1293
        %v1895 = vunpack.c.h.b16 %v1293
        %v1896 = vunpack.c.l.b16 %v1294
        %v1897 = vunpack.c.h.b16 %v1294
        %v1898 = vunpack.c.l.b16 %v1295
        %v1899 = vunpack.c.h.b16 %v1295
        %v1900 = vunpack.c.l.b16 %v1296
        %v1901 = vunpack.c.h.b16 %v1296
        %v1902 = vunpack.c.l.b16 %v1297
        %v1903 = vunpack.c.h.b16 %v1297
        %v1904 = vunpack.c.l.b16 %v1298
        %v1905 = vunpack.c.h.b16 %v1298
        %v1906 = vunpack.c.l.b16 %v1299
        %v1907 = vunpack.c.h.b16 %v1299
        %v1908 = vunpack.c.l.b16 %v1300
        %v1909 = vunpack.c.h.b16 %v1300
        %v1910 = vunpack.c.l.b16 %v1301
        %v1911 = vunpack.c.h.b16 %v1301
        %v1912 = vunpack.c.l.b16 %v1302
        %v1913 = vunpack.c.h.b16 %v1302
        %v1914 = vunpack.c.l.b16 %v1303
        %v1915 = vunpack.c.h.b16 %v1303
        %v1916 = vunpack.c.l.b16 %v1304
        %v1917 = vunpack.c.h.b16 %v1304
        %v1918 = vunpack.c.l.b16 %v1305
        %v1919 = vunpack.c.h.b16 %v1305
        %v1920 = vunpack.c.l.b16 %v1306
        %v1921 = vunpack.c.h.b16 %v1306
        %v1922 = vunpack.c.l.b16 %v1307
        %v1923 = vunpack.c.h.b16 %v1307
        %v1924 = vunpack.c.l.b16 %v1308
        %v1925 = vunpack.c.h.b16 %v1308
        %v1926 = vunpack.c.l.b16 %v1309
        %v1927 = vunpack.c.h.b16 %v1309
        %v1928 = vunpack.c.l.b16 %v1310
        %v1929 = vunpack.c.h.b16 %v1310
        %v1930 = vunpack.c.l.b16 %v1311
        %v1931 = vunpack.c.h.b16 %v1311
        %v1932 = vunpack.c.l.b16 %v1312
        %v1933 = vunpack.c.h.b16 %v1312
        %v1934 = vunpack.c.l.b16 %v1313
        %v1935 = vunpack.c.h.b16 %v1313
        %v1936 = vunpack.c.l.b16 %v1314
        %v1937 = vunpack.c.h.b16 %v1314
        %v1938 = vunpack.c.l.b16 %v1315
        %v1939 = vunpack.c.h.b16 %v1315
        %v1940 = vunpack.c.l.b16 %v1316
        %v1941 = vunpack.c.h.b16 %v1316
        %v1942 = vunpack.c.l.b16 %v1317
        %v1943 = vunpack.c.h.b16 %v1317
        %v1944 = vunpack.c.l.b16 %v1318
        %v1945 = vunpack.c.h.b16 %v1318
        %v1946 = vunpack.c.l.b16 %v1319
        %v1947 = vunpack.c.h.b16 %v1319
        %v1948 = vunpack.c.l.b16 %v1320
        %v1949 = vunpack.c.h.b16 %v1320
        %v1950 = vunpack.c.l.b16 %v1321
        %v1951 = vunpack.c.h.b16 %v1321
        %v1952 = vunpack.c.l.b16 %v1322
        %v1953 = vunpack.c.h.b16 %v1322
        %v1954 = vunpack.c.l.b16 %v1323
        %v1955 = vunpack.c.h.b16 %v1323
        %v1956 = vunpack.c.l.b16 %v1324
        %v1957 = vunpack.c.h.b16 %v1324
        %v1958 = vunpack.c.l.b16 %v1325
        %v1959 = vunpack.c.h.b16 %v1325
        %v1960 = vunpack.c.l.b16 %v1326
        %v1961 = vunpack.c.h.b16 %v1326
        %v1962 = vunpack.c.l.b16 %v1327
        %v1963 = vunpack.c.h.b16 %v1327
        %v1964 = vunpack.c.l.b16 %v1328
        %v1965 = vunpack.c.h.b16 %v1328
        %v1966 = vunpack.c.l.b16 %v1329
        %v1967 = vunpack.c.h.b16 %v1329
        %v1968 = vunpack.c.l.b16 %v1330
        %v1969 = vunpack.c.h.b16 %v1330
        %v1970 = vunpack.c.l.b16 %v1331
        %v1971 = vunpack.c.h.b16 %v1331
        %v1972 = vunpack.c.l.b16 %v1332
        %v1973 = vunpack.c.h.b16 %v1332
        %v1974 = vunpack.c.l.b16 %v1333
        %v1975 = vunpack.c.h.b16 %v1333
        %v1976 = vunpack.c.l.b16 %v1334
        %v1977 = vunpack.c.h.b16 %v1334
        %v1978 = vunpack.c.l.b16 %v1335
        %v1979 = vunpack.c.h.b16 %v1335
        %v1980 = vunpack.c.l.b16 %v1336
        %v1981 = vunpack.c.h.b16 %v1336
        %v1982 = vunpack.c.l.b16 %v1337
        %v1983 = vunpack.c.h.b16 %v1337
        %v1984 = vunpack.c.l.b16 %v1338
        %v1985 = vunpack.c.h.b16 %v1338
        %v1986 = vunpack.c.l.b16 %v1339
        %v1987 = vunpack.c.h.b16 %v1339
        %v1988 = vunpack.c.l.b16 %v1340
        %v1989 = vunpack.c.h.b16 %v1340
        %v1990 = vunpack.c.l.b16 %v1341
        %v1991 = vunpack.c.h.b16 %v1341
        %v1992 = vunpack.c.l.b16 %v1342
        %v1993 = vunpack.c.h.b16 %v1342
        %v1994 = vunpack.c.l.b16 %v1343
        %v1995 = vunpack.c.h.b16 %v1343
        %v1996 = vunpack.c.l.b16 %v1344
        %v1997 = vunpack.c.h.b16 %v1344
        %v1998 = vunpack.c.l.b16 %v1345
        %v1999 = vunpack.c.h.b16 %v1345
        %v2000 = vunpack.c.l.b16 %v1346
        %v2001 = vunpack.c.h.b16 %v1346
        %v2002 = vunpack.c.l.b16 %v1347
        %v2003 = vunpack.c.h.b16 %v1347
        %v2004 = vunpack.c.l.b16 %v1348
        %v2005 = vunpack.c.h.b16 %v1348
        %v2006 = vunpack.c.l.b16 %v1349
        %v2007 = vunpack.c.h.b16 %v1349
        %v2008 = vunpack.c.l.b16 %v1350
        %v2009 = vunpack.c.h.b16 %v1350
        %v2010 = vunpack.c.l.b16 %v1351
        %v2011 = vunpack.c.h.b16 %v1351
        %v2012 = vunpack.c.l.b16 %v1352
        %v2013 = vunpack.c.h.b16 %v1352
        %v2014 = vunpack.c.l.b16 %v1353
        %v2015 = vunpack.c.h.b16 %v1353
        %v2016 = vunpack.c.l.b16 %v1354
        %v2017 = vunpack.c.h.b16 %v1354
        %v2018 = vunpack.c.l.b16 %v1355
        %v2019 = vunpack.c.h.b16 %v1355
        %v2020 = vunpack.c.l.b16 %v1356
        %v2021 = vunpack.c.h.b16 %v1356
        %v2022 = vunpack.c.l.b16 %v1357
        %v2023 = vunpack.c.h.b16 %v1357
        %v2024 = vunpack.c.l.b16 %v1358
        %v2025 = vunpack.c.h.b16 %v1358
        %v2026 = vunpack.c.l.b16 %v1359
        %v2027 = vunpack.c.h.b16 %v1359
        %v2028 = vunpack.c.l.b16 %v1360
        %v2029 = vunpack.c.h.b16 %v1360
        %v2030 = vunpack.c.l.b16 %v1361
        %v2031 = vunpack.c.h.b16 %v1361
        %v2032 = vunpack.c.l.b16 %v1362
        %v2033 = vunpack.c.h.b16 %v1362
        %v2034 = vunpack.c.l.b16 %v1363
        %v2035 = vunpack.c.h.b16 %v1363
        %v2036 = vunpack.c.l.b16 %v1364
        %v2037 = vunpack.c.h.b16 %v1364
        %v2038 = vunpack.c.l.b16 %v1365
        %v2039 = vunpack.c.h.b16 %v1365
        %v2040 = vunpack.c.l.b16 %v1366
        %v2041 = vunpack.c.h.b16 %v1366
        %v2042 = vunpack.c.l.b16 %v1367
        %v2043 = vunpack.c.h.b16 %v1367
        %v2044 = vunpack.c.l.b16 %v1368
        %v2045 = vunpack.c.h.b16 %v1368
        %v2046 = vunpack.c.l.b16 %v1369
        %v2047 = vunpack.c.h.b16 %v1369
        %v2048 = vunpack.c.l.b16 %v1370
        %v2049 = vunpack.c.h.b16 %v1370
        %v2050 = vunpack.c.l.b16 %v1371
        %v2051 = vunpack.c.h.b16 %v1371
        %v2052 = vunpack.c.l.b16 %v1372
        %v2053 = vunpack.c.h.b16 %v1372
        %v2054 = vunpack.c.l.b16 %v1373
        %v2055 = vunpack.c.h.b16 %v1373
        %v2056 = vunpack.c.l.b16 %v1374
        %v2057 = vunpack.c.h.b16 %v1374
        %v2058 = vunpack.c.l.b16 %v1375
        %v2059 = vunpack.c.h.b16 %v1375
        %v2060 = vunpack.c.l.b16 %v1376
        %v2061 = vunpack.c.h.b16 %v1376
        %v2062 = vunpack.c.l.b16 %v1377
        %v2063 = vunpack.c.h.b16 %v1377
        %v2064 = vunpack.c.l.b16 %v1378
        %v2065 = vunpack.c.h.b16 %v1378
        %v2066 = vunpack.c.l.b16 %v1379
        %v2067 = vunpack.c.h.b16 %v1379
        %v2068 = vunpack.c.l.b16 %v1380
        %v2069 = vunpack.c.h.b16 %v1380
        %v2070 = vunpack.c.l.b16 %v1381
        %v2071 = vunpack.c.h.b16 %v1381
        %v2072 = vunpack.c.l.b16 %v1382
        %v2073 = vunpack.c.h.b16 %v1382
        %v2074 = vunpack.c.l.b16 %v1383
        %v2075 = vunpack.c.h.b16 %v1383
        %v2076 = vunpack.c.l.b16 %v1384
        %v2077 = vunpack.c.h.b16 %v1384
        %v2078 = vunpack.c.l.b16 %v1385
        %v2079 = vunpack.c.h.b16 %v1385
        %v2080 = vunpack.c.l.b16 %v1386
        %v2081 = vunpack.c.h.b16 %v1386
        %v2082 = vunpack.c.l.b16 %v1387
        %v2083 = vunpack.c.h.b16 %v1387
        %v2084 = vunpack.c.l.b16 %v1388
        %v2085 = vunpack.c.h.b16 %v1388
        %v2086 = vunpack.c.l.b16 %v1389
        %v2087 = vunpack.c.h.b16 %v1389
        %v2088 = vunpack.c.l.b16 %v1390
        %v2089 = vunpack.c.h.b16 %v1390
        %v2090 = vunpack.c.l.b16 %v1391
        %v2091 = vunpack.c.h.b16 %v1391
        %v2092 = vunpack.c.l.b16 %v1392
        %v2093 = vunpack.c.h.b16 %v1392
        %v2094 = vunpack.c.l.b16 %v1393
        %v2095 = vunpack.c.h.b16 %v1393
        %v2096 = vunpack.c.l.b16 %v1394
        %v2097 = vunpack.c.h.b16 %v1394
        %v2098 = vunpack.c.l.b16 %v1395
        %v2099 = vunpack.c.h.b16 %v1395
        %v2100 = vunpack.c.l.b16 %v1396
        %v2101 = vunpack.c.h.b16 %v1396
        %v2102 = vunpack.c.l.b16 %v1397
        %v2103 = vunpack.c.h.b16 %v1397
        %v2104 = vunpack.c.l.b16 %v1398
        %v2105 = vunpack.c.h.b16 %v1398
        %v2106 = vunpack.c.l.b16 %v1399
        %v2107 = vunpack.c.h.b16 %v1399
        %v2108 = vunpack.c.l.b16 %v1400
        %v2109 = vunpack.c.h.b16 %v1400
        %v2110 = vunpack.c.l.b16 %v1401
        %v2111 = vunpack.c.h.b16 %v1401
        %v2112 = vunpack.c.l.b16 %v1402
        %v2113 = vunpack.c.h.b16 %v1402
        %v2114 = vunpack.c.l.b16 %v1403
        %v2115 = vunpack.c.h.b16 %v1403
        %v2116 = vunpack.c.l.b16 %v1404
        %v2117 = vunpack.c.h.b16 %v1404
        %v2118 = vunpack.c.l.b16 %v1405
        %v2119 = vunpack.c.h.b16 %v1405
        %v2120 = vunpack.c.l.b16 %v1406
        %v2121 = vunpack.c.h.b16 %v1406
        %v2122 = vunpack.c.l.b16 %v1407
        %v2123 = vunpack.c.h.b16 %v1407
        %v2124 = vunpack.c.l.b16 %v1408
        %v2125 = vunpack.c.h.b16 %v1408
        %v2126 = vunpack.c.l.b16 %v1409
        %v2127 = vunpack.c.h.b16 %v1409
        %v2128 = vunpack.c.l.b16 %v1410
        %v2129 = vunpack.c.h.b16 %v1410
        %v2130 = vunpack.c.l.b16 %v1411
        %v2131 = vunpack.c.h.b16 %v1411
        %v2132 = vunpack.c.l.b16 %v1412
        %v2133 = vunpack.c.h.b16 %v1412
        %v2134 = vunpack.c.l.b16 %v1413
        %v2135 = vunpack.c.h.b16 %v1413
        %v2136 = vunpack.c.l.b16 %v1414
        %v2137 = vunpack.c.h.b16 %v1414
        %v2138 = vunpack.c.l.b16 %v1415
        %v2139 = vunpack.c.h.b16 %v1415
        %v2140 = vunpack.c.l.b16 %v1416
        %v2141 = vunpack.c.h.b16 %v1416
        %v2142 = vunpack.c.l.b16 %v1417
        %v2143 = vunpack.c.h.b16 %v1417
        %v2144 = vunpack.c.l.b16 %v1418
        %v2145 = vunpack.c.h.b16 %v1418
        %v2146 = vunpack.c.l.b16 %v1419
        %v2147 = vunpack.c.h.b16 %v1419
        %v2148 = vunpack.c.l.b16 %v1420
        %v2149 = vunpack.c.h.b16 %v1420
        %v2150 = vunpack.c.l.b16 %v1421
        %v2151 = vunpack.c.h.b16 %v1421
        %v2152 = vunpack.c.l.b16 %v1422
        %v2153 = vunpack.c.h.b16 %v1422
        %v2154 = vunpack.c.l.b16 %v1423
        %v2155 = vunpack.c.h.b16 %v1423
        %v2156 = vunpack.c.l.b16 %v1424
        %v2157 = vunpack.c.h.b16 %v1424
        %v2158 = vunpack.c.l.b16 %v1425
        %v2159 = vunpack.c.h.b16 %v1425
        %v2160 = vunpack.c.l.b16 %v1426
        %v2161 = vunpack.c.h.b16 %v1426
        %v2162 = vunpack.c.l.b16 %v1427
        %v2163 = vunpack.c.h.b16 %v1427
        %v2164 = vunpack.c.l.b16 %v1428
        %v2165 = vunpack.c.h.b16 %v1428
        %v2166 = vunpack.c.l.b16 %v1429
        %v2167 = vunpack.c.h.b16 %v1429
        %v2168 = vunpack.c.l.b16 %v1430
        %v2169 = vunpack.c.h.b16 %v1430
        %v2170 = vunpack.c.l.b16 %v1431
        %v2171 = vunpack.c.h.b16 %v1431
        %v2172 = vunpack.c.l.b16 %v1432
        %v2173 = vunpack.c.h.b16 %v1432
        %v2174 = vunpack.c.l.b16 %v1433
        %v2175 = vunpack.c.h.b16 %v1433
        %v2176 = vunpack.c.l.b16 %v1434
        %v2177 = vunpack.c.h.b16 %v1434
        %v2178 = vunpack.c.l.b16 %v1435
        %v2179 = vunpack.c.h.b16 %v1435
        %v2180 = vunpack.c.l.b16 %v1436
        %v2181 = vunpack.c.h.b16 %v1436
        %v2182 = vunpack.c.l.b16 %v1437
        %v2183 = vunpack.c.h.b16 %v1437
        %v2184 = vunpack.c.l.b16 %v1438
        %v2185 = vunpack.c.h.b16 %v1438
        %v2186 = vunpack.c.l.b16 %v1439
        %v2187 = vunpack.c.h.b16 %v1439
        %v2188 = vunpack.c.l.b16 %v1440
        %v2189 = vunpack.c.h.b16 %v1440
        %v2190 = vunpack.c.l.b16 %v1441
        %v2191 = vunpack.c.h.b16 %v1441
        %v2192 = vunpack.c.l.b16 %v1442
        %v2193 = vunpack.c.h.b16 %v1442
        %v2194 = vunpack.c.l.b16 %v1443
        %v2195 = vunpack.c.h.b16 %v1443
        %v2196 = vunpack.c.l.b16 %v1444
        %v2197 = vunpack.c.h.b16 %v1444
        %v2198 = vunpack.c.l.b16 %v1445
        %v2199 = vunpack.c.h.b16 %v1445
        %v2200 = vunpack.c.l.b16 %v1446
        %v2201 = vunpack.c.h.b16 %v1446
        %v2202 = vunpack.c.l.b16 %v1447
        %v2203 = vunpack.c.h.b16 %v1447
        %v2204 = vunpack.c.l.b16 %v1448
        %v2205 = vunpack.c.h.b16 %v1448
        %v2206 = vunpack.c.l.b16 %v1449
        %v2207 = vunpack.c.h.b16 %v1449
        %v2208 = vunpack.c.l.b16 %v1450
        %v2209 = vunpack.c.h.b16 %v1450
        %v2210 = vunpack.c.l.b16 %v1451
        %v2211 = vunpack.c.h.b16 %v1451
        %v2212 = vunpack.c.l.b16 %v1452
        %v2213 = vunpack.c.h.b16 %v1452
        %v2214 = vunpack.c.l.b16 %v1453
        %v2215 = vunpack.c.h.b16 %v1453
        %v2216 = vunpack.c.l.b16 %v1454
        %v2217 = vunpack.c.h.b16 %v1454
        %v2218 = vunpack.c.l.b16 %v1455
        %v2219 = vunpack.c.h.b16 %v1455
        %v2220 = vunpack.c.l.b16 %v1456
        %v2221 = vunpack.c.h.b16 %v1456
        %v2222 = vunpack.c.l.b16 %v1457
        %v2223 = vunpack.c.h.b16 %v1457
        %v2224 = vunpack.c.l.b16 %v1458
        %v2225 = vunpack.c.h.b16 %v1458
        %v2226 = vunpack.c.l.b16 %v1459
        %v2227 = vunpack.c.h.b16 %v1459
        %v2228 = vunpack.c.l.b16 %v1460
        %v2229 = vunpack.c.h.b16 %v1460
        %v2230 = vunpack.c.l.b16 %v1461
        %v2231 = vunpack.c.h.b16 %v1461
        %v2232 = vunpack.c.l.b16 %v1462
        %v2233 = vunpack.c.h.b16 %v1462
        %v2234 = vunpack.c.l.b16 %v1463
        %v2235 = vunpack.c.h.b16 %v1463
        %v2236 = vunpack.c.l.b16 %v1464
        %v2237 = vunpack.c.h.b16 %v1464
        %v2238 = vunpack.c.l.b16 %v1465
        %v2239 = vunpack.c.h.b16 %v1465
        %v2240 = vunpack.c.l.b16 %v1466
        %v2241 = vunpack.c.h.b16 %v1466
        %v2242 = vunpack.c.l.b16 %v1467
        %v2243 = vunpack.c.h.b16 %v1467
        %v2244 = vunpack.c.l.b16 %v1468
        %v2245 = vunpack.c.h.b16 %v1468
        %v2246 = vunpack.c.l.b16 %v1469
        %v2247 = vunpack.c.h.b16 %v1469
        %v2248 = vunpack.c.l.b16 %v1470
        %v2249 = vunpack.c.h.b16 %v1470
        %v2250 = vunpack.c.l.b16 %v1471
        %v2251 = vunpack.c.h.b16 %v1471
        %v2252 = vpack.c.b16 %v1742, %v1740
        %v2253 = vpack.c.b16 %v1743, %v1741
        %v2254 = vpack.c.b16 %v1746, %v1744
        %v2255 = vpack.c.b16 %v1747, %v1745
        %v2256 = vpack.c.b16 %v1750, %v1748
        %v2257 = vpack.c.b16 %v1751, %v1749
        %v2258 = vpack.c.b16 %v1754, %v1752
        %v2259 = vpack.c.b16 %v1755, %v1753
        %v2260 = vpack.c.b16 %v1758, %v1756
        %v2261 = vpack.c.b16 %v1759, %v1757
        %v2262 = vpack.c.b16 %v1762, %v1760
        %v2263 = vpack.c.b16 %v1763, %v1761
        %v2264 = vpack.c.b16 %v1766, %v1764
        %v2265 = vpack.c.b16 %v1767, %v1765
        %v2266 = vpack.c.b16 %v1770, %v1768
        %v2267 = vpack.c.b16 %v1771, %v1769
        %v2268 = vpack.c.b16 %v1774, %v1772
        %v2269 = vpack.c.b16 %v1775, %v1773
        %v2270 = vpack.c.b16 %v1778, %v1776
        %v2271 = vpack.c.b16 %v1779, %v1777
        %v2272 = vpack.c.b16 %v1782, %v1780
        %v2273 = vpack.c.b16 %v1783, %v1781
        %v2274 = vpack.c.b16 %v1786, %v1784
        %v2275 = vpack.c.b16 %v1787, %v1785
        %v2276 = vpack.c.b16 %v1790, %v1788
        %v2277 = vpack.c.b16 %v1791, %v1789
        %v2278 = vpack.c.b16 %v1794, %v1792
        %v2279 = vpack.c.b16 %v1795, %v1793
        %v2280 = vpack.c.b16 %v1798, %v1796
        %v2281 = vpack.c.b16 %v1799, %v1797
        %v2282 = vpack.c.b16 %v1802, %v1800
        %v2283 = vpack.c.b16 %v1803, %v1801
        %v2284 = vpack.c.b16 %v1806, %v1804
        %v2285 = vpack.c.b16 %v1807, %v1805
        %v2286 = vpack.c.b16 %v1810, %v1808
        %v2287 = vpack.c.b16 %v1811, %v1809
        %v2288 = vpack.c.b16 %v1814, %v1812
        %v2289 = vpack.c.b16 %v1815, %v1813
        %v2290 = vpack.c.b16 %v1818, %v1816
        %v2291 = vpack.c.b16 %v1819, %v1817
        %v2292 = vpack.c.b16 %v1822, %v1820
        %v2293 = vpack.c.b16 %v1823, %v1821
        %v2294 = vpack.c.b16 %v1826, %v1824
        %v2295 = vpack.c.b16 %v1827, %v1825
        %v2296 = vpack.c.b16 %v1830, %v1828
        %v2297 = vpack.c.b16 %v1831, %v1829
        %v2298 = vpack.c.b16 %v1834, %v1832
        %v2299 = vpack.c.b16 %v1835, %v1833
        %v2300 = vpack.c.b16 %v1838, %v1836
        %v2301 = vpack.c.b16 %v1839, %v1837
        %v2302 = vpack.c.b16 %v1842, %v1840
        %v2303 = vpack.c.b16 %v1843, %v1841
        %v2304 = vpack.c.b16 %v1846, %v1844
        %v2305 = vpack.c.b16 %v1847, %v1845
        %v2306 = vpack.c.b16 %v1850, %v1848
        %v2307 = vpack.c.b16 %v1851, %v1849
        %v2308 = vpack.c.b16 %v1854, %v1852
        %v2309 = vpack.c.b16 %v1855, %v1853
        %v2310 = vpack.c.b16 %v1858, %v1856
        %v2311 = vpack.c.b16 %v1859, %v1857
        %v2312 = vpack.c.b16 %v1862, %v1860
        %v2313 = vpack.c.b16 %v1863, %v1861
        %v2314 = vpack.c.b16 %v1866, %v1864
        %v2315 = vpack.c.b16 %v1867, %v1865
        %v2316 = vpack.c.b16 %v1870, %v1868
        %v2317 = vpack.c.b16 %v1871, %v1869
        %v2318 = vpack.c.b16 %v1874, %v1872
        %v2319 = vpack.c.b16 %v1875, %v1873
        %v2320 = vpack.c.b16 %v1878, %v1876
        %v2321 = vpack.c.b16 %v1879, %v1877
        %v2322 = vpack.c.b16 %v1882, %v1880
        %v2323 = vpack.c.b16 %v1883, %v1881
        %v2324 = vpack.c.b16 %v1886, %v1884
        %v2325 = vpack.c.b16 %v1887, %v1885
        %v2326 = vpack.c.b16 %v1890, %v1888
        %v2327 = vpack.c.b16 %v1891, %v1889
        %v2328 = vpack.c.b16 %v1894, %v1892
        %v2329 = vpack.c.b16 %v1895, %v1893
        %v2330 = vpack.c.b16 %v1898, %v1896
        %v2331 = vpack.c.b16 %v1899, %v1897
        %v2332 = vpack.c.b16 %v1902, %v1900
        %v2333 = vpack.c.b16 %v1903, %v1901
        %v2334 = vpack.c.b16 %v1906, %v1904
        %v2335 = vpack.c.b16 %v1907, %v1905
        %v2336 = vpack.c.b16 %v1910, %v1908
        %v2337 = vpack.c.b16 %v1911, %v1909
        %v2338 = vpack.c.b16 %v1914, %v1912
        %v2339 = vpack.c.b16 %v1915, %v1913
        %v2340 = vpack.c.b16 %v1918, %v1916
        %v2341 = vpack.c.b16 %v1919, %v1917
        %v2342 = vpack.c.b16 %v1922, %v1920
        %v2343 = vpack.c.b16 %v1923, %v1921
        %v2344 = vpack.c.b16 %v1926, %v1924
        %v2345 = vpack.c.b16 %v1927, %v1925
        %v2346 = vpack.c.b16 %v1930, %v1928
        %v2347 = vpack.c.b16 %v1931, %v1929
        %v2348 = vpack.c.b16 %v1934, %v1932
        %v2349 = vpack.c.b16 %v1935, %v1933
        %v2350 = vpack.c.b16 %v1938, %v1936
        %v2351 = vpack.c.b16 %v1939, %v1937
        %v2352 = vpack.c.b16 %v1942, %v1940
        %v2353 = vpack.c.b16 %v1943, %v1941
        %v2354 = vpack.c.b16 %v1946, %v1944
        %v2355 = vpack.c.b16 %v1947, %v1945
        %v2356 = vpack.c.b16 %v1950, %v1948
        %v2357 = vpack.c.b16 %v1951, %v1949
        %v2358 = vpack.c.b16 %v1954, %v1952
        %v2359 = vpack.c.b16 %v1955, %v1953
        %v2360 = vpack.c.b16 %v1958, %v1956
        %v2361 = vpack.c.b16 %v1959, %v1957
        %v2362 = vpack.c.b16 %v1962, %v1960
        %v2363 = vpack.c.b16 %v1963, %v1961
        %v2364 = vpack.c.b16 %v1966, %v1964
        %v2365 = vpack.c.b16 %v1967, %v1965
        %v2366 = vpack.c.b16 %v1970, %v1968
        %v2367 = vpack.c.b16 %v1971, %v1969
        %v2368 = vpack.c.b16 %v1974, %v1972
        %v2369 = vpack.c.b16 %v1975, %v1973
        %v2370 = vpack.c.b16 %v1978, %v1976
        %v2371 = vpack.c.b16 %v1979, %v1977
        %v2372 = vpack.c.b16 %v1982, %v1980
        %v2373 = vpack.c.b16 %v1983, %v1981
        %v2374 = vpack.c.b16 %v1986, %v1984
        %v2375 = vpack.c.b16 %v1987, %v1985
        %v2376 = vpack.c.b16 %v1990, %v1988
        %v2377 = vpack.c.b16 %v1991, %v1989
        %v2378 = vpack.c.b16 %v1994, %v1992
        %v2379 = vpack.c.b16 %v1995, %v1993
        %v2380 = vpack.c.b16 %v1998, %v1996
        %v2381 = vpack.c.b16 %v1999, %v1997
        %v2382 = vpack.c.b16 %v2002, %v2000
        %v2383 = vpack.c.b16 %v2003, %v2001
        %v2384 = vpack.c.b16 %v2006, %v2004
        %v2385 = vpack.c.b16 %v2007, %v2005
        %v2386 = vpack.c.b16 %v2010, %v2008
        %v2387 = vpack.c.b16 %v2011, %v2009
        %v2388 = vpack.c.b16 %v2014, %v2012
        %v2389 = vpack.c.b16 %v2015, %v2013
        %v2390 = vpack.c.b16 %v2018, %v2016
        %v2391 = vpack.c.b16 %v2019, %v2017
        %v2392 = vpack.c.b16 %v2022, %v2020
        %v2393 = vpack.c.b16 %v2023, %v2021
        %v2394 = vpack.c.b16 %v2026, %v2024
        %v2395 = vpack.c.b16 %v2027, %v2025
        %v2396 = vpack.c.b16 %v2030, %v2028
        %v2397 = vpack.c.b16 %v2031, %v2029
        %v2398 = vpack.c.b16 %v2034, %v2032
        %v2399 = vpack.c.b16 %v2035, %v2033
        %v2400 = vpack.c.b16 %v2038, %v2036
        %v2401 = vpack.c.b16 %v2039, %v2037
        %v2402 = vpack.c.b16 %v2042, %v2040
        %v2403 = vpack.c.b16 %v2043, %v2041
        %v2404 = vpack.c.b16 %v2046, %v2044
        %v2405 = vpack.c.b16 %v2047, %v2045
        %v2406 = vpack.c.b16 %v2050, %v2048
        %v2407 = vpack.c.b16 %v2051, %v2049
        %v2408 = vpack.c.b16 %v2054, %v2052
        %v2409 = vpack.c.b16 %v2055, %v2053
        %v2410 = vpack.c.b16 %v2058, %v2056
        %v2411 = vpack.c.b16 %v2059, %v2057
        %v2412 = vpack.c.b16 %v2062, %v2060
        %v2413 = vpack.c.b16 %v2063, %v2061
        %v2414 = vpack.c.b16 %v2066, %v2064
        %v2415 = vpack.c.b16 %v2067, %v2065
        %v2416 = vpack.c.b16 %v2070, %v2068
        %v2417 = vpack.c.b16 %v2071, %v2069
        %v2418 = vpack.c.b16 %v2074, %v2072
        %v2419 = vpack.c.b16 %v2075, %v2073
        %v2420 = vpack.c.b16 %v2078, %v2076
        %v2421 = vpack.c.b16 %v2079, %v2077
        %v2422 = vpack.c.b16 %v2082, %v2080
        %v2423 = vpack.c.b16 %v2083, %v2081
        %v2424 = vpack.c.b16 %v2086, %v2084
        %v2425 = vpack.c.b16 %v2087, %v2085
        %v2426 = vpack.c.b16 %v2090, %v2088
        %v2427 = vpack.c.b16 %v2091, %v2089
        %v2428 = vpack.c.b16 %v2094, %v2092
        %v2429 = vpack.c.b16 %v2095, %v2093
        %v2430 = vpack.c.b16 %v2098, %v2096
        %v2431 = vpack.c.b16 %v2099, %v2097
        %v2432 = vpack.c.b16 %v2102, %v2100
        %v2433 = vpack.c.b16 %v2103, %v2101
        %v2434 = vpack.c.b16 %v2106, %v2104
        %v2435 = vpack.c.b16 %v2107, %v2105
        %v2436 = vpack.c.b16 %v2110, %v2108
        %v2437 = vpack.c.b16 %v2111, %v2109
        %v2438 = vpack.c.b16 %v2114, %v2112
        %v2439 = vpack.c.b16 %v2115, %v2113
        %v2440 = vpack.c.b16 %v2118, %v2116
        %v2441 = vpack.c.b16 %v2119, %v2117
        %v2442 = vpack.c.b16 %v2122, %v2120
        %v2443 = vpack.c.b16 %v2123, %v2121
        %v2444 = vpack.c.b16 %v2126, %v2124
        %v2445 = vpack.c.b16 %v2127, %v2125
        %v2446 = vpack.c.b16 %v2130, %v2128
        %v2447 = vpack.c.b16 %v2131, %v2129
        %v2448 = vpack.c.b16 %v2134, %v2132
        %v2449 = vpack.c.b16 %v2135, %v2133
        %v2450 = vpack.c.b16 %v2138, %v2136
        %v2451 = vpack.c.b16 %v2139, %v2137
        %v2452 = vpack.c.b16 %v2142, %v2140
        %v2453 = vpack.c.b16 %v2143, %v2141
        %v2454 = vpack.c.b16 %v2146, %v2144
        %v2455 = vpack.c.b16 %v2147, %v2145
        %v2456 = vpack.c.b16 %v2150, %v2148
        %v2457 = vpack.c.b16 %v2151, %v2149
        %v2458 = vpack.c.b16 %v2154, %v2152
        %v2459 = vpack.c.b16 %v2155, %v2153
        %v2460 = vpack.c.b16 %v2158, %v2156
        %v2461 = vpack.c.b16 %v2159, %v2157
        %v2462 = vpack.c.b16 %v2162, %v2160
        %v2463 = vpack.c.b16 %v2163, %v2161
        %v2464 = vpack.c.b16 %v2166, %v2164
        %v2465 = vpack.c.b16 %v2167, %v2165
        %v2466 = vpack.c.b16 %v2170, %v2168
        %v2467 = vpack.c.b16 %v2171, %v2169
        %v2468 = vpack.c.b16 %v2174, %v2172
        %v2469 = vpack.c.b16 %v2175, %v2173
        %v2470 = vpack.c.b16 %v2178, %v2176
        %v2471 = vpack.c.b16 %v2179, %v2177
        %v2472 = vpack.c.b16 %v2182, %v2180
        %v2473 = vpack.c.b16 %v2183, %v2181
        %v2474 = vpack.c.b16 %v2186, %v2184
        %v2475 = vpack.c.b16 %v2187, %v2185
        %v2476 = vpack.c.b16 %v2190, %v2188
        %v2477 = vpack.c.b16 %v2191, %v2189
        %v2478 = vpack.c.b16 %v2194, %v2192
        %v2479 = vpack.c.b16 %v2195, %v2193
        %v2480 = vpack.c.b16 %v2198, %v2196
        %v2481 = vpack.c.b16 %v2199, %v2197
        %v2482 = vpack.c.b16 %v2202, %v2200
        %v2483 = vpack.c.b16 %v2203, %v2201
        %v2484 = vpack.c.b16 %v2206, %v2204
        %v2485 = vpack.c.b16 %v2207, %v2205
        %v2486 = vpack.c.b16 %v2210, %v2208
        %v2487 = vpack.c.b16 %v2211, %v2209
        %v2488 = vpack.c.b16 %v2214, %v2212
        %v2489 = vpack.c.b16 %v2215, %v2213
        %v2490 = vpack.c.b16 %v2218, %v2216
        %v2491 = vpack.c.b16 %v2219, %v2217
        %v2492 = vpack.c.b16 %v2222, %v2220
        %v2493 = vpack.c.b16 %v2223, %v2221
        %v2494 = vpack.c.b16 %v2226, %v2224
        %v2495 = vpack.c.b16 %v2227, %v2225
        %v2496 = vpack.c.b16 %v2230, %v2228
        %v2497 = vpack.c.b16 %v2231, %v2229
        %v2498 = vpack.c.b16 %v2234, %v2232
        %v2499 = vpack.c.b16 %v2235, %v2233
        %v2500 = vpack.c.b16 %v2238, %v2236
        %v2501 = vpack.c.b16 %v2239, %v2237
        %v2502 = vpack.c.b16 %v2242, %v2240
        %v2503 = vpack.c.b16 %v2243, %v2241
        %v2504 = vpack.c.b16 %v2246, %v2244
        %v2505 = vpack.c.b16 %v2247, %v2245
        %v2506 = vpack.c.b16 %v2250, %v2248
        %v2507 = vpack.c.b16 %v2251, %v2249
        %2764 = vmatprep.subr.bf16.mxu0 %v2253
        %2765 = vmatpush1.bf16.msra.mxu0 %v2252
        %2766 = vmatprep.subr.bf16.mxu0 %v2255
        %2767 = vmatpush1.bf16.msra.mxu0 %v2254
        %2768 = vmatprep.subr.bf16.mxu0 %v2257
        %2769 = vmatpush1.bf16.msra.mxu0 %v2256
        %2770 = vmatprep.subr.bf16.mxu0 %v2259
        %2771 = vmatpush1.bf16.msra.mxu0 %v2258
        %2772 = vmatprep.subr.bf16.mxu0 %v2261
        %2773 = vmatpush1.bf16.msra.mxu0 %v2260
        %2774 = vmatprep.subr.bf16.mxu0 %v2263
        %2775 = vmatpush1.bf16.msra.mxu0 %v2262
        %2776 = vmatprep.subr.bf16.mxu0 %v2265
        %2777 = vmatpush1.bf16.msra.mxu0 %v2264
        %2778 = vmatprep.subr.bf16.mxu0 %v2267
        %2779 = vmatpush1.bf16.msra.mxu0 %v2266
        %2780 = vmatprep.subr.bf16.mxu0 %v2269
        %2781 = vmatpush1.bf16.msra.mxu0 %v2268
        %2782 = vmatprep.subr.bf16.mxu0 %v2271
        %2783 = vmatpush1.bf16.msra.mxu0 %v2270
        %2784 = vmatprep.subr.bf16.mxu0 %v2273
        %2785 = vmatpush1.bf16.msra.mxu0 %v2272
        %2786 = vmatprep.subr.bf16.mxu0 %v2275
        %2787 = vmatpush1.bf16.msra.mxu0 %v2274
        %2788 = vmatprep.subr.bf16.mxu0 %v2277
        %2789 = vmatpush1.bf16.msra.mxu0 %v2276
        %2790 = vmatprep.subr.bf16.mxu0 %v2279
        %2791 = vmatpush1.bf16.msra.mxu0 %v2278
        %2792 = vmatprep.subr.bf16.mxu0 %v2281
        %2793 = vmatpush1.bf16.msra.mxu0 %v2280
        %2794 = vmatprep.subr.bf16.mxu0 %v2283
        %2795 = vmatpush1.bf16.msra.mxu0 %v2282
        %2796 = vmatprep.mubr.bf16.mxu0 %v961
        %2797 = vmatmul.mubr.bf16.gmra.mrb[0].mxu0 %v960
        %v2798 = vpop.f32.mrb[0].mxu0
        %v2799 = vadd.f32 %v1477, %v2798
        %v2800 = vpop.f32.mrb[0].mxu0
        %v2801 = vadd.f32 %v1481, %v2800
        %v2802 = vpop.f32.mrb[0].mxu0
        %v2803 = vadd.f32 %v1477, %v2802
        %v2804 = vpop.f32.mrb[0].mxu0
        %v2805 = vadd.f32 %v1481, %v2804
        %2806 = vmatprep.mubr.bf16.mxu0 %v977
        %2807 = vmatmul.mubr.bf16.gmra.mrb[0].mxu0 %v976
        %v2808 = vpop.f32.mrb[0].mxu0
        %v2809 = vadd.f32 %v1477, %v2808
        %v2810 = vpop.f32.mrb[0].mxu0
        %v2811 = vadd.f32 %v1481, %v2810
        %v2812 = vpop.f32.mrb[0].mxu0
        %v2813 = vadd.f32 %v1477, %v2812
        %v2814 = vpop.f32.mrb[0].mxu0
        %v2815 = vadd.f32 %v1481, %v2814
        %2816 = vmatprep.mubr.bf16.mxu0 %v993
        %2817 = vmatmul.mubr.bf16.gmra.mrb[0].mxu0 %v992
        %v2818 = vpop.f32.mrb[0].mxu0
        %v2819 = vadd.f32 %v1477, %v2818
        %v2820 = vpop.f32.mrb[0].mxu0
        %v2821 = vadd.f32 %v1481, %v2820
        %v2822 = vpop.f32.mrb[0].mxu0
        %v2823 = vadd.f32 %v1477, %v2822
        %v2824 = vpop.f32.mrb[0].mxu0
        %v2825 = vadd.f32 %v1481, %v2824
        %2826 = vmatprep.mubr.bf16.mxu0 %v1009
        %2827 = vmatmul.mubr.bf16.gmra.mrb[0].mxu0 %v1008
        %v2828 = vpop.f32.mrb[0].mxu0
        %v2829 = vadd.f32 %v1477, %v2828
        %v2830 = vpop.f32.mrb[0].mxu0
        %v2831 = vadd.f32 %v1481, %v2830
        %v2832 = vpop.f32.mrb[0].mxu0
        %v2833 = vadd.f32 %v1477, %v2832
        %v2834 = vpop.f32.mrb[0].mxu0
        %v2835 = vadd.f32 %v1481, %v2834
        %2836 = vmatprep.mubr.bf16.mxu0 %v1025
        %2837 = vmatmul.mubr.bf16.gmra.mrb[0].mxu0 %v1024
        %v2838 = vpop.f32.mrb[0].mxu0
        %v2839 = vadd.f32 %v1477, %v2838
        %v2840 = vpop.f32.mrb[0].mxu0
        %v2841 = vadd.f32 %v1481, %v2840
        %v2842 = vpop.f32.mrb[0].mxu0
        %v2843 = vadd.f32 %v1477, %v2842
        %v2844 = vpop.f32.mrb[0].mxu0
        %v2845 = vadd.f32 %v1481, %v2844
        %2846 = vmatprep.mubr.bf16.mxu0 %v1041
        %2847 = vmatmul.mubr.bf16.gmra.mrb[0].mxu0 %v1040
        %v2848 = vpop.f32.mrb[0].mxu0
        %v2849 = vadd.f32 %v1477, %v2848
        %v2850 = vpop.f32.mrb[0].mxu0
        %v2851 = vadd.f32 %v1481, %v2850
        %v2852 = vpop.f32.mrb[0].mxu0
        %v2853 = vadd.f32 %v1477, %v2852
        %v2854 = vpop.f32.mrb[0].mxu0
        %v2855 = vadd.f32 %v1481, %v2854
        %2856 = vmatprep.mubr.bf16.mxu0 %v1057
        %2857 = vmatmul.mubr.bf16.gmra.mrb[0].mxu0 %v1056
        %v2858 = vpop.f32.mrb[0].mxu0
        %v2859 = vadd.f32 %v1477, %v2858
        %v2860 = vpop.f32.mrb[0].mxu0
        %v2861 = vadd.f32 %v1481, %v2860
        %v2862 = vpop.f32.mrb[0].mxu0
        %v2863 = vadd.f32 %v1477, %v2862
        %v2864 = vpop.f32.mrb[0].mxu0
        %v2865 = vadd.f32 %v1481, %v2864
        %2866 = vmatprep.mubr.bf16.mxu0 %v1073
        %2867 = vmatmul.mubr.bf16.gmra.mrb[0].mxu0 %v1072
        %v2868 = vpop.f32.mrb[0].mxu0
        %v2869 = vadd.f32 %v1477, %v2868
        %v2870 = vpop.f32.mrb[0].mxu0
        %v2871 = vadd.f32 %v1481, %v2870
        %v2872 = vpop.f32.mrb[0].mxu0
        %v2873 = vadd.f32 %v1477, %v2872
        %v2874 = vpop.f32.mrb[0].mxu0
        %v2875 = vadd.f32 %v1481, %v2874
        %2876 = vmatprep.mubr.bf16.mxu0 %v1089
        %2877 = vmatmul.mubr.bf16.gmra.mrb[0].mxu0 %v1088
        %v2878 = vpop.f32.mrb[0].mxu0
        %v2879 = vadd.f32 %v1477, %v2878
        %v2880 = vpop.f32.mrb[0].mxu0
        %v2881 = vadd.f32 %v1481, %v2880
        %v2882 = vpop.f32.mrb[0].mxu0
        %v2883 = vadd.f32 %v1477, %v2882
        %v2884 = vpop.f32.mrb[0].mxu0
        %v2885 = vadd.f32 %v1481, %v2884
        %2886 = vmatprep.mubr.bf16.mxu0 %v1105
        %2887 = vmatmul.mubr.bf16.gmra.mrb[0].mxu0 %v1104
        %v2888 = vpop.f32.mrb[0].mxu0
        %v2889 = vadd.f32 %v1477, %v2888
        %v2890 = vpop.f32.mrb[0].mxu0
        %v2891 = vadd.f32 %v1481, %v2890
        %v2892 = vpop.f32.mrb[0].mxu0
        %v2893 = vadd.f32 %v1477, %v2892
        %v2894 = vpop.f32.mrb[0].mxu0
        %v2895 = vadd.f32 %v1481, %v2894
        %2896 = vmatprep.mubr.bf16.mxu0 %v1121
        %2897 = vmatmul.mubr.bf16.gmra.mrb[0].mxu0 %v1120
        %v2898 = vpop.f32.mrb[0].mxu0
        %v2899 = vadd.f32 %v1477, %v2898
        %v2900 = vpop.f32.mrb[0].mxu0
        %v2901 = vadd.f32 %v1481, %v2900
        %v2902 = vpop.f32.mrb[0].mxu0
        %v2903 = vadd.f32 %v1477, %v2902
        %v2904 = vpop.f32.mrb[0].mxu0
        %v2905 = vadd.f32 %v1481, %v2904
        %2906 = vmatprep.mubr.bf16.mxu0 %v1137
        %2907 = vmatmul.mubr.bf16.gmra.mrb[0].mxu0 %v1136
        %v2908 = vpop.f32.mrb[0].mxu0
        %v2909 = vadd.f32 %v1477, %v2908
        %v2910 = vpop.f32.mrb[0].mxu0
        %v2911 = vadd.f32 %v1481, %v2910
        %v2912 = vpop.f32.mrb[0].mxu0
        %v2913 = vadd.f32 %v1477, %v2912
        %v2914 = vpop.f32.mrb[0].mxu0
        %v2915 = vadd.f32 %v1481, %v2914
        %2916 = vmatprep.mubr.bf16.mxu0 %v1153
        %2917 = vmatmul.mubr.bf16.gmra.mrb[0].mxu0 %v1152
        %v2918 = vpop.f32.mrb[0].mxu0
        %v2919 = vadd.f32 %v1477, %v2918
        %v2920 = vpop.f32.mrb[0].mxu0
        %v2921 = vadd.f32 %v1481, %v2920
        %v2922 = vpop.f32.mrb[0].mxu0
        %v2923 = vadd.f32 %v1477, %v2922
        %v2924 = vpop.f32.mrb[0].mxu0
        %v2925 = vadd.f32 %v1481, %v2924
        %2926 = vmatprep.mubr.bf16.mxu0 %v1169
        %2927 = vmatmul.mubr.bf16.gmra.mrb[0].mxu0 %v1168
        %v2928 = vpop.f32.mrb[0].mxu0
        %v2929 = vadd.f32 %v1477, %v2928
        %v2930 = vpop.f32.mrb[0].mxu0
        %v2931 = vadd.f32 %v1481, %v2930
        %v2932 = vpop.f32.mrb[0].mxu0
        %v2933 = vadd.f32 %v1477, %v2932
        %v2934 = vpop.f32.mrb[0].mxu0
        %v2935 = vadd.f32 %v1481, %v2934
        %2936 = vmatprep.mubr.bf16.mxu0 %v1185
        %2937 = vmatmul.mubr.bf16.gmra.mrb[0].mxu0 %v1184
        %v2938 = vpop.f32.mrb[0].mxu0
        %v2939 = vadd.f32 %v1477, %v2938
        %v2940 = vpop.f32.mrb[0].mxu0
        %v2941 = vadd.f32 %v1481, %v2940
        %v2942 = vpop.f32.mrb[0].mxu0
        %v2943 = vadd.f32 %v1477, %v2942
        %v2944 = vpop.f32.mrb[0].mxu0
        %v2945 = vadd.f32 %v1481, %v2944
        %2946 = vmatprep.mubr.bf16.mxu0 %v1201
        %2947 = vmatmul.mubr.bf16.gmra.mrb[0].mxu0 %v1200
        %v2948 = vpop.f32.mrb[0].mxu0
        %v2949 = vadd.f32 %v1477, %v2948
        %v2950 = vpop.f32.mrb[0].mxu0
        %v2951 = vadd.f32 %v1481, %v2950
        %v2952 = vpop.f32.mrb[0].mxu0
        %v2953 = vadd.f32 %v1477, %v2952
        %v2954 = vpop.f32.mrb[0].mxu0
        %v2955 = vadd.f32 %v1481, %v2954
        %2956 = vdwg.mxu0
        %2957 = vmatprep.subr.bf16.mxu0 %v2285
        %2958 = vmatpush1.bf16.msra.mxu0 %v2284
        %2959 = vmatprep.subr.bf16.mxu0 %v2287
        %2960 = vmatpush1.bf16.msra.mxu0 %v2286
        %2961 = vmatprep.subr.bf16.mxu0 %v2289
        %2962 = vmatpush1.bf16.msra.mxu0 %v2288
        %2963 = vmatprep.subr.bf16.mxu0 %v2291
        %2964 = vmatpush1.bf16.msra.mxu0 %v2290
        %2965 = vmatprep.subr.bf16.mxu0 %v2293
        %2966 = vmatpush1.bf16.msra.mxu0 %v2292
        %2967 = vmatprep.subr.bf16.mxu0 %v2295
        %2968 = vmatpush1.bf16.msra.mxu0 %v2294
        %2969 = vmatprep.subr.bf16.mxu0 %v2297
        %2970 = vmatpush1.bf16.msra.mxu0 %v2296
        %2971 = vmatprep.subr.bf16.mxu0 %v2299
        %2972 = vmatpush1.bf16.msra.mxu0 %v2298
        %2973 = vmatprep.subr.bf16.mxu0 %v2301
        %2974 = vmatpush1.bf16.msra.mxu0 %v2300
        %2975 = vmatprep.subr.bf16.mxu0 %v2303
        %2976 = vmatpush1.bf16.msra.mxu0 %v2302
        %2977 = vmatprep.subr.bf16.mxu0 %v2305
        %2978 = vmatpush1.bf16.msra.mxu0 %v2304
        %2979 = vmatprep.subr.bf16.mxu0 %v2307
        %2980 = vmatpush1.bf16.msra.mxu0 %v2306
        %2981 = vmatprep.subr.bf16.mxu0 %v2309
        %2982 = vmatpush1.bf16.msra.mxu0 %v2308
        %2983 = vmatprep.subr.bf16.mxu0 %v2311
        %2984 = vmatpush1.bf16.msra.mxu0 %v2310
        %2985 = vmatprep.subr.bf16.mxu0 %v2313
        %2986 = vmatpush1.bf16.msra.mxu0 %v2312
        %2987 = vmatprep.subr.bf16.mxu0 %v2315
        %2988 = vmatpush1.bf16.msra.mxu0 %v2314
        %2989 = vmatprep.mubr.bf16.mxu0 %v963
        %2990 = vmatmul.mubr.bf16.gmra.mrb[0].mxu0 %v962
        %v2991 = vpop.f32.mrb[0].mxu0
        %v2992 = vadd.f32 %v2799, %v2991
        %v2993 = vpop.f32.mrb[0].mxu0
        %v2994 = vadd.f32 %v2801, %v2993
        %v2995 = vpop.f32.mrb[0].mxu0
        %v2996 = vadd.f32 %v2803, %v2995
        %v2997 = vpop.f32.mrb[0].mxu0
        %v2998 = vadd.f32 %v2805, %v2997
        %2999 = vmatprep.mubr.bf16.mxu0 %v979
        %3000 = vmatmul.mubr.bf16.gmra.mrb[0].mxu0 %v978
        %v3001 = vpop.f32.mrb[0].mxu0
        %v3002 = vadd.f32 %v2809, %v3001
        %v3003 = vpop.f32.mrb[0].mxu0
        %v3004 = vadd.f32 %v2811, %v3003
        %v3005 = vpop.f32.mrb[0].mxu0
        %v3006 = vadd.f32 %v2813, %v3005
        %v3007 = vpop.f32.mrb[0].mxu0
        %v3008 = vadd.f32 %v2815, %v3007
        %3009 = vmatprep.mubr.bf16.mxu0 %v995
        %3010 = vmatmul.mubr.bf16.gmra.mrb[0].mxu0 %v994
        %v3011 = vpop.f32.mrb[0].mxu0
        %v3012 = vadd.f32 %v2819, %v3011
        %v3013 = vpop.f32.mrb[0].mxu0
        %v3014 = vadd.f32 %v2821, %v3013
        %v3015 = vpop.f32.mrb[0].mxu0
        %v3016 = vadd.f32 %v2823, %v3015
        %v3017 = vpop.f32.mrb[0].mxu0
        %v3018 = vadd.f32 %v2825, %v3017
        %3019 = vmatprep.mubr.bf16.mxu0 %v1011
        %3020 = vmatmul.mubr.bf16.gmra.mrb[0].mxu0 %v1010
        %v3021 = vpop.f32.mrb[0].mxu0
        %v3022 = vadd.f32 %v2829, %v3021
        %v3023 = vpop.f32.mrb[0].mxu0
        %v3024 = vadd.f32 %v2831, %v3023
        %v3025 = vpop.f32.mrb[0].mxu0
        %v3026 = vadd.f32 %v2833, %v3025
        %v3027 = vpop.f32.mrb[0].mxu0
        %v3028 = vadd.f32 %v2835, %v3027
        %3029 = vmatprep.mubr.bf16.mxu0 %v1027
        %3030 = vmatmul.mubr.bf16.gmra.mrb[0].mxu0 %v1026
        %v3031 = vpop.f32.mrb[0].mxu0
        %v3032 = vadd.f32 %v2839, %v3031
        %v3033 = vpop.f32.mrb[0].mxu0
        %v3034 = vadd.f32 %v2841, %v3033
        %v3035 = vpop.f32.mrb[0].mxu0
        %v3036 = vadd.f32 %v2843, %v3035
        %v3037 = vpop.f32.mrb[0].mxu0
        %v3038 = vadd.f32 %v2845, %v3037
        %3039 = vmatprep.mubr.bf16.mxu0 %v1043
        %3040 = vmatmul.mubr.bf16.gmra.mrb[0].mxu0 %v1042
        %v3041 = vpop.f32.mrb[0].mxu0
        %v3042 = vadd.f32 %v2849, %v3041
        %v3043 = vpop.f32.mrb[0].mxu0
        %v3044 = vadd.f32 %v2851, %v3043
        %v3045 = vpop.f32.mrb[0].mxu0
        %v3046 = vadd.f32 %v2853, %v3045
        %v3047 = vpop.f32.mrb[0].mxu0
        %v3048 = vadd.f32 %v2855, %v3047
        %3049 = vmatprep.mubr.bf16.mxu0 %v1059
        %3050 = vmatmul.mubr.bf16.gmra.mrb[0].mxu0 %v1058
        %v3051 = vpop.f32.mrb[0].mxu0
        %v3052 = vadd.f32 %v2859, %v3051
        %v3053 = vpop.f32.mrb[0].mxu0
        %v3054 = vadd.f32 %v2861, %v3053
        %v3055 = vpop.f32.mrb[0].mxu0
        %v3056 = vadd.f32 %v2863, %v3055
        %v3057 = vpop.f32.mrb[0].mxu0
        %v3058 = vadd.f32 %v2865, %v3057
        %3059 = vmatprep.mubr.bf16.mxu0 %v1075
        %3060 = vmatmul.mubr.bf16.gmra.mrb[0].mxu0 %v1074
        %v3061 = vpop.f32.mrb[0].mxu0
        %v3062 = vadd.f32 %v2869, %v3061
        %v3063 = vpop.f32.mrb[0].mxu0
        %v3064 = vadd.f32 %v2871, %v3063
        %v3065 = vpop.f32.mrb[0].mxu0
        %v3066 = vadd.f32 %v2873, %v3065
        %v3067 = vpop.f32.mrb[0].mxu0
        %v3068 = vadd.f32 %v2875, %v3067
        %3069 = vmatprep.mubr.bf16.mxu0 %v1091
        %3070 = vmatmul.mubr.bf16.gmra.mrb[0].mxu0 %v1090
        %v3071 = vpop.f32.mrb[0].mxu0
        %v3072 = vadd.f32 %v2879, %v3071
        %v3073 = vpop.f32.mrb[0].mxu0
        %v3074 = vadd.f32 %v2881, %v3073
        %v3075 = vpop.f32.mrb[0].mxu0
        %v3076 = vadd.f32 %v2883, %v3075
        %v3077 = vpop.f32.mrb[0].mxu0
        %v3078 = vadd.f32 %v2885, %v3077
        %3079 = vmatprep.mubr.bf16.mxu0 %v1107
        %3080 = vmatmul.mubr.bf16.gmra.mrb[0].mxu0 %v1106
        %v3081 = vpop.f32.mrb[0].mxu0
        %v3082 = vadd.f32 %v2889, %v3081
        %v3083 = vpop.f32.mrb[0].mxu0
        %v3084 = vadd.f32 %v2891, %v3083
        %v3085 = vpop.f32.mrb[0].mxu0
        %v3086 = vadd.f32 %v2893, %v3085
        %v3087 = vpop.f32.mrb[0].mxu0
        %v3088 = vadd.f32 %v2895, %v3087
        %3089 = vmatprep.mubr.bf16.mxu0 %v1123
        %3090 = vmatmul.mubr.bf16.gmra.mrb[0].mxu0 %v1122
        %v3091 = vpop.f32.mrb[0].mxu0
        %v3092 = vadd.f32 %v2899, %v3091
        %v3093 = vpop.f32.mrb[0].mxu0
        %v3094 = vadd.f32 %v2901, %v3093
        %v3095 = vpop.f32.mrb[0].mxu0
        %v3096 = vadd.f32 %v2903, %v3095
        %v3097 = vpop.f32.mrb[0].mxu0
        %v3098 = vadd.f32 %v2905, %v3097
        %3099 = vmatprep.mubr.bf16.mxu0 %v1139
        %3100 = vmatmul.mubr.bf16.gmra.mrb[0].mxu0 %v1138
        %v3101 = vpop.f32.mrb[0].mxu0
        %v3102 = vadd.f32 %v2909, %v3101
        %v3103 = vpop.f32.mrb[0].mxu0
        %v3104 = vadd.f32 %v2911, %v3103
        %v3105 = vpop.f32.mrb[0].mxu0
        %v3106 = vadd.f32 %v2913, %v3105
        %v3107 = vpop.f32.mrb[0].mxu0
        %v3108 = vadd.f32 %v2915, %v3107
        %3109 = vmatprep.mubr.bf16.mxu0 %v1155
        %3110 = vmatmul.mubr.bf16.gmra.mrb[0].mxu0 %v1154
        %v3111 = vpop.f32.mrb[0].mxu0
        %v3112 = vadd.f32 %v2919, %v3111
        %v3113 = vpop.f32.mrb[0].mxu0
        %v3114 = vadd.f32 %v2921, %v3113
        %v3115 = vpop.f32.mrb[0].mxu0
        %v3116 = vadd.f32 %v2923, %v3115
        %v3117 = vpop.f32.mrb[0].mxu0
        %v3118 = vadd.f32 %v2925, %v3117
        %3119 = vmatprep.mubr.bf16.mxu0 %v1171
        %3120 = vmatmul.mubr.bf16.gmra.mrb[0].mxu0 %v1170
        %v3121 = vpop.f32.mrb[0].mxu0
        %v3122 = vadd.f32 %v2929, %v3121
        %v3123 = vpop.f32.mrb[0].mxu0
        %v3124 = vadd.f32 %v2931, %v3123
        %v3125 = vpop.f32.mrb[0].mxu0
        %v3126 = vadd.f32 %v2933, %v3125
        %v3127 = vpop.f32.mrb[0].mxu0
        %v3128 = vadd.f32 %v2935, %v3127
        %3129 = vmatprep.mubr.bf16.mxu0 %v1187
        %3130 = vmatmul.mubr.bf16.gmra.mrb[0].mxu0 %v1186
        %v3131 = vpop.f32.mrb[0].mxu0
        %v3132 = vadd.f32 %v2939, %v3131
        %v3133 = vpop.f32.mrb[0].mxu0
        %v3134 = vadd.f32 %v2941, %v3133
        %v3135 = vpop.f32.mrb[0].mxu0
        %v3136 = vadd.f32 %v2943, %v3135
        %v3137 = vpop.f32.mrb[0].mxu0
        %v3138 = vadd.f32 %v2945, %v3137
        %3139 = vmatprep.mubr.bf16.mxu0 %v1203
        %3140 = vmatmul.mubr.bf16.gmra.mrb[0].mxu0 %v1202
        %v3141 = vpop.f32.mrb[0].mxu0
        %v3142 = vadd.f32 %v2949, %v3141
        %v3143 = vpop.f32.mrb[0].mxu0
        %v3144 = vadd.f32 %v2951, %v3143
        %v3145 = vpop.f32.mrb[0].mxu0
        %v3146 = vadd.f32 %v2953, %v3145
        %v3147 = vpop.f32.mrb[0].mxu0
        %v3148 = vadd.f32 %v2955, %v3147
        %3149 = vdwg.mxu0
        %3150 = vmatprep.subr.bf16.mxu0 %v2317
        %3151 = vmatpush1.bf16.msra.mxu0 %v2316
        %3152 = vmatprep.subr.bf16.mxu0 %v2319
        %3153 = vmatpush1.bf16.msra.mxu0 %v2318
        %3154 = vmatprep.subr.bf16.mxu0 %v2321
        %3155 = vmatpush1.bf16.msra.mxu0 %v2320
        %3156 = vmatprep.subr.bf16.mxu0 %v2323
        %3157 = vmatpush1.bf16.msra.mxu0 %v2322
        %3158 = vmatprep.subr.bf16.mxu0 %v2325
        %3159 = vmatpush1.bf16.msra.mxu0 %v2324
        %3160 = vmatprep.subr.bf16.mxu0 %v2327
        %3161 = vmatpush1.bf16.msra.mxu0 %v2326
        %3162 = vmatprep.subr.bf16.mxu0 %v2329
        %3163 = vmatpush1.bf16.msra.mxu0 %v2328
        %3164 = vmatprep.subr.bf16.mxu0 %v2331
        %3165 = vmatpush1.bf16.msra.mxu0 %v2330
        %3166 = vmatprep.subr.bf16.mxu0 %v2333
        %3167 = vmatpush1.bf16.msra.mxu0 %v2332
        %3168 = vmatprep.subr.bf16.mxu0 %v2335
        %3169 = vmatpush1.bf16.msra.mxu0 %v2334
        %3170 = vmatprep.subr.bf16.mxu0 %v2337
        %3171 = vmatpush1.bf16.msra.mxu0 %v2336
        %3172 = vmatprep.subr.bf16.mxu0 %v2339
        %3173 = vmatpush1.bf16.msra.mxu0 %v2338
        %3174 = vmatprep.subr.bf16.mxu0 %v2341
        %3175 = vmatpush1.bf16.msra.mxu0 %v2340
        %3176 = vmatprep.subr.bf16.mxu0 %v2343
        %3177 = vmatpush1.bf16.msra.mxu0 %v2342
        %3178 = vmatprep.subr.bf16.mxu0 %v2345
        %3179 = vmatpush1.bf16.msra.mxu0 %v2344
        %3180 = vmatprep.subr.bf16.mxu0 %v2347
        %3181 = vmatpush1.bf16.msra.mxu0 %v2346
        %3182 = vmatprep.mubr.bf16.mxu0 %v965
        %3183 = vmatmul.mubr.bf16.gmra.mrb[0].mxu0 %v964
        %v3184 = vpop.f32.mrb[0].mxu0
        %v3185 = vadd.f32 %v2992, %v3184
        %v3186 = vpop.f32.mrb[0].mxu0
        %v3187 = vadd.f32 %v2994, %v3186
        %v3188 = vpop.f32.mrb[0].mxu0
        %v3189 = vadd.f32 %v2996, %v3188
        %v3190 = vpop.f32.mrb[0].mxu0
        %v3191 = vadd.f32 %v2998, %v3190
        %3192 = vmatprep.mubr.bf16.mxu0 %v981
        %3193 = vmatmul.mubr.bf16.gmra.mrb[0].mxu0 %v980
        %v3194 = vpop.f32.mrb[0].mxu0
        %v3195 = vadd.f32 %v3002, %v3194
        %v3196 = vpop.f32.mrb[0].mxu0
        %v3197 = vadd.f32 %v3004, %v3196
        %v3198 = vpop.f32.mrb[0].mxu0
        %v3199 = vadd.f32 %v3006, %v3198
        %v3200 = vpop.f32.mrb[0].mxu0
        %v3201 = vadd.f32 %v3008, %v3200
        %3202 = vmatprep.mubr.bf16.mxu0 %v997
        %3203 = vmatmul.mubr.bf16.gmra.mrb[0].mxu0 %v996
        %v3204 = vpop.f32.mrb[0].mxu0
        %v3205 = vadd.f32 %v3012, %v3204
        %v3206 = vpop.f32.mrb[0].mxu0
        %v3207 = vadd.f32 %v3014, %v3206
        %v3208 = vpop.f32.mrb[0].mxu0
        %v3209 = vadd.f32 %v3016, %v3208
        %v3210 = vpop.f32.mrb[0].mxu0
        %v3211 = vadd.f32 %v3018, %v3210
        %3212 = vmatprep.mubr.bf16.mxu0 %v1013
        %3213 = vmatmul.mubr.bf16.gmra.mrb[0].mxu0 %v1012
        %v3214 = vpop.f32.mrb[0].mxu0
        %v3215 = vadd.f32 %v3022, %v3214
        %v3216 = vpop.f32.mrb[0].mxu0
        %v3217 = vadd.f32 %v3024, %v3216
        %v3218 = vpop.f32.mrb[0].mxu0
        %v3219 = vadd.f32 %v3026, %v3218
        %v3220 = vpop.f32.mrb[0].mxu0
        %v3221 = vadd.f32 %v3028, %v3220
        %3222 = vmatprep.mubr.bf16.mxu0 %v1029
        %3223 = vmatmul.mubr.bf16.gmra.mrb[0].mxu0 %v1028
        %v3224 = vpop.f32.mrb[0].mxu0
        %v3225 = vadd.f32 %v3032, %v3224
        %v3226 = vpop.f32.mrb[0].mxu0
        %v3227 = vadd.f32 %v3034, %v3226
        %v3228 = vpop.f32.mrb[0].mxu0
        %v3229 = vadd.f32 %v3036, %v3228
        %v3230 = vpop.f32.mrb[0].mxu0
        %v3231 = vadd.f32 %v3038, %v3230
        %3232 = vmatprep.mubr.bf16.mxu0 %v1045
        %3233 = vmatmul.mubr.bf16.gmra.mrb[0].mxu0 %v1044
        %v3234 = vpop.f32.mrb[0].mxu0
        %v3235 = vadd.f32 %v3042, %v3234
        %v3236 = vpop.f32.mrb[0].mxu0
        %v3237 = vadd.f32 %v3044, %v3236
        %v3238 = vpop.f32.mrb[0].mxu0
        %v3239 = vadd.f32 %v3046, %v3238
        %v3240 = vpop.f32.mrb[0].mxu0
        %v3241 = vadd.f32 %v3048, %v3240
        %3242 = vmatprep.mubr.bf16.mxu0 %v1061
        %3243 = vmatmul.mubr.bf16.gmra.mrb[0].mxu0 %v1060
        %v3244 = vpop.f32.mrb[0].mxu0
        %v3245 = vadd.f32 %v3052, %v3244
        %v3246 = vpop.f32.mrb[0].mxu0
        %v3247 = vadd.f32 %v3054, %v3246
        %v3248 = vpop.f32.mrb[0].mxu0
        %v3249 = vadd.f32 %v3056, %v3248
        %v3250 = vpop.f32.mrb[0].mxu0
        %v3251 = vadd.f32 %v3058, %v3250
        %3252 = vmatprep.mubr.bf16.mxu0 %v1077
        %3253 = vmatmul.mubr.bf16.gmra.mrb[0].mxu0 %v1076
        %v3254 = vpop.f32.mrb[0].mxu0
        %v3255 = vadd.f32 %v3062, %v3254
        %v3256 = vpop.f32.mrb[0].mxu0
        %v3257 = vadd.f32 %v3064, %v3256
        %v3258 = vpop.f32.mrb[0].mxu0
        %v3259 = vadd.f32 %v3066, %v3258
        %v3260 = vpop.f32.mrb[0].mxu0
        %v3261 = vadd.f32 %v3068, %v3260
        %3262 = vmatprep.mubr.bf16.mxu0 %v1093
        %3263 = vmatmul.mubr.bf16.gmra.mrb[0].mxu0 %v1092
        %v3264 = vpop.f32.mrb[0].mxu0
        %v3265 = vadd.f32 %v3072, %v3264
        %v3266 = vpop.f32.mrb[0].mxu0
        %v3267 = vadd.f32 %v3074, %v3266
        %v3268 = vpop.f32.mrb[0].mxu0
        %v3269 = vadd.f32 %v3076, %v3268
        %v3270 = vpop.f32.mrb[0].mxu0
        %v3271 = vadd.f32 %v3078, %v3270
        %3272 = vmatprep.mubr.bf16.mxu0 %v1109
        %3273 = vmatmul.mubr.bf16.gmra.mrb[0].mxu0 %v1108
        %v3274 = vpop.f32.mrb[0].mxu0
        %v3275 = vadd.f32 %v3082, %v3274
        %v3276 = vpop.f32.mrb[0].mxu0
        %v3277 = vadd.f32 %v3084, %v3276
        %v3278 = vpop.f32.mrb[0].mxu0
        %v3279 = vadd.f32 %v3086, %v3278
        %v3280 = vpop.f32.mrb[0].mxu0
        %v3281 = vadd.f32 %v3088, %v3280
        %3282 = vmatprep.mubr.bf16.mxu0 %v1125
        %3283 = vmatmul.mubr.bf16.gmra.mrb[0].mxu0 %v1124
        %v3284 = vpop.f32.mrb[0].mxu0
        %v3285 = vadd.f32 %v3092, %v3284
        %v3286 = vpop.f32.mrb[0].mxu0
        %v3287 = vadd.f32 %v3094, %v3286
        %v3288 = vpop.f32.mrb[0].mxu0
        %v3289 = vadd.f32 %v3096, %v3288
        %v3290 = vpop.f32.mrb[0].mxu0
        %v3291 = vadd.f32 %v3098, %v3290
        %3292 = vmatprep.mubr.bf16.mxu0 %v1141
        %3293 = vmatmul.mubr.bf16.gmra.mrb[0].mxu0 %v1140
        %v3294 = vpop.f32.mrb[0].mxu0
        %v3295 = vadd.f32 %v3102, %v3294
        %v3296 = vpop.f32.mrb[0].mxu0
        %v3297 = vadd.f32 %v3104, %v3296
        %v3298 = vpop.f32.mrb[0].mxu0
        %v3299 = vadd.f32 %v3106, %v3298
        %v3300 = vpop.f32.mrb[0].mxu0
        %v3301 = vadd.f32 %v3108, %v3300
        %3302 = vmatprep.mubr.bf16.mxu0 %v1157
        %3303 = vmatmul.mubr.bf16.gmra.mrb[0].mxu0 %v1156
        %v3304 = vpop.f32.mrb[0].mxu0
        %v3305 = vadd.f32 %v3112, %v3304
        %v3306 = vpop.f32.mrb[0].mxu0
        %v3307 = vadd.f32 %v3114, %v3306
        %v3308 = vpop.f32.mrb[0].mxu0
        %v3309 = vadd.f32 %v3116, %v3308
        %v3310 = vpop.f32.mrb[0].mxu0
        %v3311 = vadd.f32 %v3118, %v3310
        %3312 = vmatprep.mubr.bf16.mxu0 %v1173
        %3313 = vmatmul.mubr.bf16.gmra.mrb[0].mxu0 %v1172
        %v3314 = vpop.f32.mrb[0].mxu0
        %v3315 = vadd.f32 %v3122, %v3314
        %v3316 = vpop.f32.mrb[0].mxu0
        %v3317 = vadd.f32 %v3124, %v3316
        %v3318 = vpop.f32.mrb[0].mxu0
        %v3319 = vadd.f32 %v3126, %v3318
        %v3320 = vpop.f32.mrb[0].mxu0
        %v3321 = vadd.f32 %v3128, %v3320
        %3322 = vmatprep.mubr.bf16.mxu0 %v1189
        %3323 = vmatmul.mubr.bf16.gmra.mrb[0].mxu0 %v1188
        %v3324 = vpop.f32.mrb[0].mxu0
        %v3325 = vadd.f32 %v3132, %v3324
        %v3326 = vpop.f32.mrb[0].mxu0
        %v3327 = vadd.f32 %v3134, %v3326
        %v3328 = vpop.f32.mrb[0].mxu0
        %v3329 = vadd.f32 %v3136, %v3328
        %v3330 = vpop.f32.mrb[0].mxu0
        %v3331 = vadd.f32 %v3138, %v3330
        %3332 = vmatprep.mubr.bf16.mxu0 %v1205
        %3333 = vmatmul.mubr.bf16.gmra.mrb[0].mxu0 %v1204
        %v3334 = vpop.f32.mrb[0].mxu0
        %v3335 = vadd.f32 %v3142, %v3334
        %v3336 = vpop.f32.mrb[0].mxu0
        %v3337 = vadd.f32 %v3144, %v3336
        %v3338 = vpop.f32.mrb[0].mxu0
        %v3339 = vadd.f32 %v3146, %v3338
        %v3340 = vpop.f32.mrb[0].mxu0
        %v3341 = vadd.f32 %v3148, %v3340
        %3342 = vdwg.mxu0
        %3343 = vmatprep.subr.bf16.mxu0 %v2349
        %3344 = vmatpush1.bf16.msra.mxu0 %v2348
        %3345 = vmatprep.subr.bf16.mxu0 %v2351
        %3346 = vmatpush1.bf16.msra.mxu0 %v2350
        %3347 = vmatprep.subr.bf16.mxu0 %v2353
        %3348 = vmatpush1.bf16.msra.mxu0 %v2352
        %3349 = vmatprep.subr.bf16.mxu0 %v2355
        %3350 = vmatpush1.bf16.msra.mxu0 %v2354
        %3351 = vmatprep.subr.bf16.mxu0 %v2357
        %3352 = vmatpush1.bf16.msra.mxu0 %v2356
        %3353 = vmatprep.subr.bf16.mxu0 %v2359
        %3354 = vmatpush1.bf16.msra.mxu0 %v2358
        %3355 = vmatprep.subr.bf16.mxu0 %v2361
        %3356 = vmatpush1.bf16.msra.mxu0 %v2360
        %3357 = vmatprep.subr.bf16.mxu0 %v2363
        %3358 = vmatpush1.bf16.msra.mxu0 %v2362
        %3359 = vmatprep.subr.bf16.mxu0 %v2365
        %3360 = vmatpush1.bf16.msra.mxu0 %v2364
        %3361 = vmatprep.subr.bf16.mxu0 %v2367
        %3362 = vmatpush1.bf16.msra.mxu0 %v2366
        %3363 = vmatprep.subr.bf16.mxu0 %v2369
        %3364 = vmatpush1.bf16.msra.mxu0 %v2368
        %3365 = vmatprep.subr.bf16.mxu0 %v2371
        %3366 = vmatpush1.bf16.msra.mxu0 %v2370
        %3367 = vmatprep.subr.bf16.mxu0 %v2373
        %3368 = vmatpush1.bf16.msra.mxu0 %v2372
        %3369 = vmatprep.subr.bf16.mxu0 %v2375
        %3370 = vmatpush1.bf16.msra.mxu0 %v2374
        %3371 = vmatprep.subr.bf16.mxu0 %v2377
        %3372 = vmatpush1.bf16.msra.mxu0 %v2376
        %3373 = vmatprep.subr.bf16.mxu0 %v2379
        %3374 = vmatpush1.bf16.msra.mxu0 %v2378
        %3375 = vmatprep.mubr.bf16.mxu0 %v967
        %3376 = vmatmul.mubr.bf16.gmra.mrb[0].mxu0 %v966
        %v3377 = vpop.f32.mrb[0].mxu0
        %v3378 = vadd.f32 %v3185, %v3377
        %v3379 = vpop.f32.mrb[0].mxu0
        %v3380 = vadd.f32 %v3187, %v3379
        %v3381 = vpop.f32.mrb[0].mxu0
        %v3382 = vadd.f32 %v3189, %v3381
        %v3383 = vpop.f32.mrb[0].mxu0
        %v3384 = vadd.f32 %v3191, %v3383
        %3385 = vmatprep.mubr.bf16.mxu0 %v983
        %3386 = vmatmul.mubr.bf16.gmra.mrb[0].mxu0 %v982
        %v3387 = vpop.f32.mrb[0].mxu0
        %v3388 = vadd.f32 %v3195, %v3387
        %v3389 = vpop.f32.mrb[0].mxu0
        %v3390 = vadd.f32 %v3197, %v3389
        %v3391 = vpop.f32.mrb[0].mxu0
        %v3392 = vadd.f32 %v3199, %v3391
        %v3393 = vpop.f32.mrb[0].mxu0
        %v3394 = vadd.f32 %v3201, %v3393
        %3395 = vmatprep.mubr.bf16.mxu0 %v999
        %3396 = vmatmul.mubr.bf16.gmra.mrb[0].mxu0 %v998
        %v3397 = vpop.f32.mrb[0].mxu0
        %v3398 = vadd.f32 %v3205, %v3397
        %v3399 = vpop.f32.mrb[0].mxu0
        %v3400 = vadd.f32 %v3207, %v3399
        %v3401 = vpop.f32.mrb[0].mxu0
        %v3402 = vadd.f32 %v3209, %v3401
        %v3403 = vpop.f32.mrb[0].mxu0
        %v3404 = vadd.f32 %v3211, %v3403
        %3405 = vmatprep.mubr.bf16.mxu0 %v1015
        %3406 = vmatmul.mubr.bf16.gmra.mrb[0].mxu0 %v1014
        %v3407 = vpop.f32.mrb[0].mxu0
        %v3408 = vadd.f32 %v3215, %v3407
        %v3409 = vpop.f32.mrb[0].mxu0
        %v3410 = vadd.f32 %v3217, %v3409
        %v3411 = vpop.f32.mrb[0].mxu0
        %v3412 = vadd.f32 %v3219, %v3411
        %v3413 = vpop.f32.mrb[0].mxu0
        %v3414 = vadd.f32 %v3221, %v3413
        %3415 = vmatprep.mubr.bf16.mxu0 %v1031
        %3416 = vmatmul.mubr.bf16.gmra.mrb[0].mxu0 %v1030
        %v3417 = vpop.f32.mrb[0].mxu0
        %v3418 = vadd.f32 %v3225, %v3417
        %v3419 = vpop.f32.mrb[0].mxu0
        %v3420 = vadd.f32 %v3227, %v3419
        %v3421 = vpop.f32.mrb[0].mxu0
        %v3422 = vadd.f32 %v3229, %v3421
        %v3423 = vpop.f32.mrb[0].mxu0
        %v3424 = vadd.f32 %v3231, %v3423
        %3425 = vmatprep.mubr.bf16.mxu0 %v1047
        %3426 = vmatmul.mubr.bf16.gmra.mrb[0].mxu0 %v1046
        %v3427 = vpop.f32.mrb[0].mxu0
        %v3428 = vadd.f32 %v3235, %v3427
        %v3429 = vpop.f32.mrb[0].mxu0
        %v3430 = vadd.f32 %v3237, %v3429
        %v3431 = vpop.f32.mrb[0].mxu0
        %v3432 = vadd.f32 %v3239, %v3431
        %v3433 = vpop.f32.mrb[0].mxu0
        %v3434 = vadd.f32 %v3241, %v3433
        %3435 = vmatprep.mubr.bf16.mxu0 %v1063
        %3436 = vmatmul.mubr.bf16.gmra.mrb[0].mxu0 %v1062
        %v3437 = vpop.f32.mrb[0].mxu0
        %v3438 = vadd.f32 %v3245, %v3437
        %v3439 = vpop.f32.mrb[0].mxu0
        %v3440 = vadd.f32 %v3247, %v3439
        %v3441 = vpop.f32.mrb[0].mxu0
        %v3442 = vadd.f32 %v3249, %v3441
        %v3443 = vpop.f32.mrb[0].mxu0
        %v3444 = vadd.f32 %v3251, %v3443
        %3445 = vmatprep.mubr.bf16.mxu0 %v1079
        %3446 = vmatmul.mubr.bf16.gmra.mrb[0].mxu0 %v1078
        %v3447 = vpop.f32.mrb[0].mxu0
        %v3448 = vadd.f32 %v3255, %v3447
        %v3449 = vpop.f32.mrb[0].mxu0
        %v3450 = vadd.f32 %v3257, %v3449
        %v3451 = vpop.f32.mrb[0].mxu0
        %v3452 = vadd.f32 %v3259, %v3451
        %v3453 = vpop.f32.mrb[0].mxu0
        %v3454 = vadd.f32 %v3261, %v3453
        %3455 = vmatprep.mubr.bf16.mxu0 %v1095
        %3456 = vmatmul.mubr.bf16.gmra.mrb[0].mxu0 %v1094
        %v3457 = vpop.f32.mrb[0].mxu0
        %v3458 = vadd.f32 %v3265, %v3457
        %v3459 = vpop.f32.mrb[0].mxu0
        %v3460 = vadd.f32 %v3267, %v3459
        %v3461 = vpop.f32.mrb[0].mxu0
        %v3462 = vadd.f32 %v3269, %v3461
        %v3463 = vpop.f32.mrb[0].mxu0
        %v3464 = vadd.f32 %v3271, %v3463
        %3465 = vmatprep.mubr.bf16.mxu0 %v1111
        %3466 = vmatmul.mubr.bf16.gmra.mrb[0].mxu0 %v1110
        %v3467 = vpop.f32.mrb[0].mxu0
        %v3468 = vadd.f32 %v3275, %v3467
        %v3469 = vpop.f32.mrb[0].mxu0
        %v3470 = vadd.f32 %v3277, %v3469
        %v3471 = vpop.f32.mrb[0].mxu0
        %v3472 = vadd.f32 %v3279, %v3471
        %v3473 = vpop.f32.mrb[0].mxu0
        %v3474 = vadd.f32 %v3281, %v3473
        %3475 = vmatprep.mubr.bf16.mxu0 %v1127
        %3476 = vmatmul.mubr.bf16.gmra.mrb[0].mxu0 %v1126
        %v3477 = vpop.f32.mrb[0].mxu0
        %v3478 = vadd.f32 %v3285, %v3477
        %v3479 = vpop.f32.mrb[0].mxu0
        %v3480 = vadd.f32 %v3287, %v3479
        %v3481 = vpop.f32.mrb[0].mxu0
        %v3482 = vadd.f32 %v3289, %v3481
        %v3483 = vpop.f32.mrb[0].mxu0
        %v3484 = vadd.f32 %v3291, %v3483
        %3485 = vmatprep.mubr.bf16.mxu0 %v1143
        %3486 = vmatmul.mubr.bf16.gmra.mrb[0].mxu0 %v1142
        %v3487 = vpop.f32.mrb[0].mxu0
        %v3488 = vadd.f32 %v3295, %v3487
        %v3489 = vpop.f32.mrb[0].mxu0
        %v3490 = vadd.f32 %v3297, %v3489
        %v3491 = vpop.f32.mrb[0].mxu0
        %v3492 = vadd.f32 %v3299, %v3491
        %v3493 = vpop.f32.mrb[0].mxu0
        %v3494 = vadd.f32 %v3301, %v3493
        %3495 = vmatprep.mubr.bf16.mxu0 %v1159
        %3496 = vmatmul.mubr.bf16.gmra.mrb[0].mxu0 %v1158
        %v3497 = vpop.f32.mrb[0].mxu0
        %v3498 = vadd.f32 %v3305, %v3497
        %v3499 = vpop.f32.mrb[0].mxu0
        %v3500 = vadd.f32 %v3307, %v3499
        %v3501 = vpop.f32.mrb[0].mxu0
        %v3502 = vadd.f32 %v3309, %v3501
        %v3503 = vpop.f32.mrb[0].mxu0
        %v3504 = vadd.f32 %v3311, %v3503
        %3505 = vmatprep.mubr.bf16.mxu0 %v1175
        %3506 = vmatmul.mubr.bf16.gmra.mrb[0].mxu0 %v1174
        %v3507 = vpop.f32.mrb[0].mxu0
        %v3508 = vadd.f32 %v3315, %v3507
        %v3509 = vpop.f32.mrb[0].mxu0
        %v3510 = vadd.f32 %v3317, %v3509
        %v3511 = vpop.f32.mrb[0].mxu0
        %v3512 = vadd.f32 %v3319, %v3511
        %v3513 = vpop.f32.mrb[0].mxu0
        %v3514 = vadd.f32 %v3321, %v3513
        %3515 = vmatprep.mubr.bf16.mxu0 %v1191
        %3516 = vmatmul.mubr.bf16.gmra.mrb[0].mxu0 %v1190
        %v3517 = vpop.f32.mrb[0].mxu0
        %v3518 = vadd.f32 %v3325, %v3517
        %v3519 = vpop.f32.mrb[0].mxu0
        %v3520 = vadd.f32 %v3327, %v3519
        %v3521 = vpop.f32.mrb[0].mxu0
        %v3522 = vadd.f32 %v3329, %v3521
        %v3523 = vpop.f32.mrb[0].mxu0
        %v3524 = vadd.f32 %v3331, %v3523
        %3525 = vmatprep.mubr.bf16.mxu0 %v1207
        %3526 = vmatmul.mubr.bf16.gmra.mrb[0].mxu0 %v1206
        %v3527 = vpop.f32.mrb[0].mxu0
        %v3528 = vadd.f32 %v3335, %v3527
        %v3529 = vpop.f32.mrb[0].mxu0
        %v3530 = vadd.f32 %v3337, %v3529
        %v3531 = vpop.f32.mrb[0].mxu0
        %v3532 = vadd.f32 %v3339, %v3531
        %v3533 = vpop.f32.mrb[0].mxu0
        %v3534 = vadd.f32 %v3341, %v3533
        %3535 = vdwg.mxu0
        %3536 = vmatprep.subr.bf16.mxu0 %v2381
        %3537 = vmatpush1.bf16.msra.mxu0 %v2380
        %3538 = vmatprep.subr.bf16.mxu0 %v2383
        %3539 = vmatpush1.bf16.msra.mxu0 %v2382
        %3540 = vmatprep.subr.bf16.mxu0 %v2385
        %3541 = vmatpush1.bf16.msra.mxu0 %v2384
        %3542 = vmatprep.subr.bf16.mxu0 %v2387
        %3543 = vmatpush1.bf16.msra.mxu0 %v2386
        %3544 = vmatprep.subr.bf16.mxu0 %v2389
        %3545 = vmatpush1.bf16.msra.mxu0 %v2388
        %3546 = vmatprep.subr.bf16.mxu0 %v2391
        %3547 = vmatpush1.bf16.msra.mxu0 %v2390
        %3548 = vmatprep.subr.bf16.mxu0 %v2393
        %3549 = vmatpush1.bf16.msra.mxu0 %v2392
        %3550 = vmatprep.subr.bf16.mxu0 %v2395
        %3551 = vmatpush1.bf16.msra.mxu0 %v2394
        %3552 = vmatprep.subr.bf16.mxu0 %v2397
        %3553 = vmatpush1.bf16.msra.mxu0 %v2396
        %3554 = vmatprep.subr.bf16.mxu0 %v2399
        %3555 = vmatpush1.bf16.msra.mxu0 %v2398
        %3556 = vmatprep.subr.bf16.mxu0 %v2401
        %3557 = vmatpush1.bf16.msra.mxu0 %v2400
        %3558 = vmatprep.subr.bf16.mxu0 %v2403
        %3559 = vmatpush1.bf16.msra.mxu0 %v2402
        %3560 = vmatprep.subr.bf16.mxu0 %v2405
        %3561 = vmatpush1.bf16.msra.mxu0 %v2404
        %3562 = vmatprep.subr.bf16.mxu0 %v2407
        %3563 = vmatpush1.bf16.msra.mxu0 %v2406
        %3564 = vmatprep.subr.bf16.mxu0 %v2409
        %3565 = vmatpush1.bf16.msra.mxu0 %v2408
        %3566 = vmatprep.subr.bf16.mxu0 %v2411
        %3567 = vmatpush1.bf16.msra.mxu0 %v2410
        %3568 = vmatprep.mubr.bf16.mxu0 %v969
        %3569 = vmatmul.mubr.bf16.gmra.mrb[0].mxu0 %v968
        %v3570 = vpop.f32.mrb[0].mxu0
        %v3571 = vadd.f32 %v3378, %v3570
        %v3572 = vpop.f32.mrb[0].mxu0
        %v3573 = vadd.f32 %v3380, %v3572
        %v3574 = vpop.f32.mrb[0].mxu0
        %v3575 = vadd.f32 %v3382, %v3574
        %v3576 = vpop.f32.mrb[0].mxu0
        %v3577 = vadd.f32 %v3384, %v3576
        %3578 = vmatprep.mubr.bf16.mxu0 %v985
        %3579 = vmatmul.mubr.bf16.gmra.mrb[0].mxu0 %v984
        %v3580 = vpop.f32.mrb[0].mxu0
        %v3581 = vadd.f32 %v3388, %v3580
        %v3582 = vpop.f32.mrb[0].mxu0
        %v3583 = vadd.f32 %v3390, %v3582
        %v3584 = vpop.f32.mrb[0].mxu0
        %v3585 = vadd.f32 %v3392, %v3584
        %v3586 = vpop.f32.mrb[0].mxu0
        %v3587 = vadd.f32 %v3394, %v3586
        %3588 = vmatprep.mubr.bf16.mxu0 %v1001
        %3589 = vmatmul.mubr.bf16.gmra.mrb[0].mxu0 %v1000
        %v3590 = vpop.f32.mrb[0].mxu0
        %v3591 = vadd.f32 %v3398, %v3590
        %v3592 = vpop.f32.mrb[0].mxu0
        %v3593 = vadd.f32 %v3400, %v3592
        %v3594 = vpop.f32.mrb[0].mxu0
        %v3595 = vadd.f32 %v3402, %v3594
        %v3596 = vpop.f32.mrb[0].mxu0
        %v3597 = vadd.f32 %v3404, %v3596
        %3598 = vmatprep.mubr.bf16.mxu0 %v1017
        %3599 = vmatmul.mubr.bf16.gmra.mrb[0].mxu0 %v1016
        %v3600 = vpop.f32.mrb[0].mxu0
        %v3601 = vadd.f32 %v3408, %v3600
        %v3602 = vpop.f32.mrb[0].mxu0
        %v3603 = vadd.f32 %v3410, %v3602
        %v3604 = vpop.f32.mrb[0].mxu0
        %v3605 = vadd.f32 %v3412, %v3604
        %v3606 = vpop.f32.mrb[0].mxu0
        %v3607 = vadd.f32 %v3414, %v3606
        %3608 = vmatprep.mubr.bf16.mxu0 %v1033
        %3609 = vmatmul.mubr.bf16.gmra.mrb[0].mxu0 %v1032
        %v3610 = vpop.f32.mrb[0].mxu0
        %v3611 = vadd.f32 %v3418, %v3610
        %v3612 = vpop.f32.mrb[0].mxu0
        %v3613 = vadd.f32 %v3420, %v3612
        %v3614 = vpop.f32.mrb[0].mxu0
        %v3615 = vadd.f32 %v3422, %v3614
        %v3616 = vpop.f32.mrb[0].mxu0
        %v3617 = vadd.f32 %v3424, %v3616
        %3618 = vmatprep.mubr.bf16.mxu0 %v1049
        %3619 = vmatmul.mubr.bf16.gmra.mrb[0].mxu0 %v1048
        %v3620 = vpop.f32.mrb[0].mxu0
        %v3621 = vadd.f32 %v3428, %v3620
        %v3622 = vpop.f32.mrb[0].mxu0
        %v3623 = vadd.f32 %v3430, %v3622
        %v3624 = vpop.f32.mrb[0].mxu0
        %v3625 = vadd.f32 %v3432, %v3624
        %v3626 = vpop.f32.mrb[0].mxu0
        %v3627 = vadd.f32 %v3434, %v3626
        %3628 = vmatprep.mubr.bf16.mxu0 %v1065
        %3629 = vmatmul.mubr.bf16.gmra.mrb[0].mxu0 %v1064
        %v3630 = vpop.f32.mrb[0].mxu0
        %v3631 = vadd.f32 %v3438, %v3630
        %v3632 = vpop.f32.mrb[0].mxu0
        %v3633 = vadd.f32 %v3440, %v3632
        %v3634 = vpop.f32.mrb[0].mxu0
        %v3635 = vadd.f32 %v3442, %v3634
        %v3636 = vpop.f32.mrb[0].mxu0
        %v3637 = vadd.f32 %v3444, %v3636
        %3638 = vmatprep.mubr.bf16.mxu0 %v1081
        %3639 = vmatmul.mubr.bf16.gmra.mrb[0].mxu0 %v1080
        %v3640 = vpop.f32.mrb[0].mxu0
        %v3641 = vadd.f32 %v3448, %v3640
        %v3642 = vpop.f32.mrb[0].mxu0
        %v3643 = vadd.f32 %v3450, %v3642
        %v3644 = vpop.f32.mrb[0].mxu0
        %v3645 = vadd.f32 %v3452, %v3644
        %v3646 = vpop.f32.mrb[0].mxu0
        %v3647 = vadd.f32 %v3454, %v3646
        %3648 = vmatprep.mubr.bf16.mxu0 %v1097
        %3649 = vmatmul.mubr.bf16.gmra.mrb[0].mxu0 %v1096
        %v3650 = vpop.f32.mrb[0].mxu0
        %v3651 = vadd.f32 %v3458, %v3650
        %v3652 = vpop.f32.mrb[0].mxu0
        %v3653 = vadd.f32 %v3460, %v3652
        %v3654 = vpop.f32.mrb[0].mxu0
        %v3655 = vadd.f32 %v3462, %v3654
        %v3656 = vpop.f32.mrb[0].mxu0
        %v3657 = vadd.f32 %v3464, %v3656
        %3658 = vmatprep.mubr.bf16.mxu0 %v1113
        %3659 = vmatmul.mubr.bf16.gmra.mrb[0].mxu0 %v1112
        %v3660 = vpop.f32.mrb[0].mxu0
        %v3661 = vadd.f32 %v3468, %v3660
        %v3662 = vpop.f32.mrb[0].mxu0
        %v3663 = vadd.f32 %v3470, %v3662
        %v3664 = vpop.f32.mrb[0].mxu0
        %v3665 = vadd.f32 %v3472, %v3664
        %v3666 = vpop.f32.mrb[0].mxu0
        %v3667 = vadd.f32 %v3474, %v3666
        %3668 = vmatprep.mubr.bf16.mxu0 %v1129
        %3669 = vmatmul.mubr.bf16.gmra.mrb[0].mxu0 %v1128
        %v3670 = vpop.f32.mrb[0].mxu0
        %v3671 = vadd.f32 %v3478, %v3670
        %v3672 = vpop.f32.mrb[0].mxu0
        %v3673 = vadd.f32 %v3480, %v3672
        %v3674 = vpop.f32.mrb[0].mxu0
        %v3675 = vadd.f32 %v3482, %v3674
        %v3676 = vpop.f32.mrb[0].mxu0
        %v3677 = vadd.f32 %v3484, %v3676
        %3678 = vmatprep.mubr.bf16.mxu0 %v1145
        %3679 = vmatmul.mubr.bf16.gmra.mrb[0].mxu0 %v1144
        %v3680 = vpop.f32.mrb[0].mxu0
        %v3681 = vadd.f32 %v3488, %v3680
        %v3682 = vpop.f32.mrb[0].mxu0
        %v3683 = vadd.f32 %v3490, %v3682
        %v3684 = vpop.f32.mrb[0].mxu0
        %v3685 = vadd.f32 %v3492, %v3684
        %v3686 = vpop.f32.mrb[0].mxu0
        %v3687 = vadd.f32 %v3494, %v3686
        %3688 = vmatprep.mubr.bf16.mxu0 %v1161
        %3689 = vmatmul.mubr.bf16.gmra.mrb[0].mxu0 %v1160
        %v3690 = vpop.f32.mrb[0].mxu0
        %v3691 = vadd.f32 %v3498, %v3690
        %v3692 = vpop.f32.mrb[0].mxu0
        %v3693 = vadd.f32 %v3500, %v3692
        %v3694 = vpop.f32.mrb[0].mxu0
        %v3695 = vadd.f32 %v3502, %v3694
        %v3696 = vpop.f32.mrb[0].mxu0
        %v3697 = vadd.f32 %v3504, %v3696
        %3698 = vmatprep.mubr.bf16.mxu0 %v1177
        %3699 = vmatmul.mubr.bf16.gmra.mrb[0].mxu0 %v1176
        %v3700 = vpop.f32.mrb[0].mxu0
        %v3701 = vadd.f32 %v3508, %v3700
        %v3702 = vpop.f32.mrb[0].mxu0
        %v3703 = vadd.f32 %v3510, %v3702
        %v3704 = vpop.f32.mrb[0].mxu0
        %v3705 = vadd.f32 %v3512, %v3704
        %v3706 = vpop.f32.mrb[0].mxu0
        %v3707 = vadd.f32 %v3514, %v3706
        %3708 = vmatprep.mubr.bf16.mxu0 %v1193
        %3709 = vmatmul.mubr.bf16.gmra.mrb[0].mxu0 %v1192
        %v3710 = vpop.f32.mrb[0].mxu0
        %v3711 = vadd.f32 %v3518, %v3710
        %v3712 = vpop.f32.mrb[0].mxu0
        %v3713 = vadd.f32 %v3520, %v3712
        %v3714 = vpop.f32.mrb[0].mxu0
        %v3715 = vadd.f32 %v3522, %v3714
        %v3716 = vpop.f32.mrb[0].mxu0
        %v3717 = vadd.f32 %v3524, %v3716
        %3718 = vmatprep.mubr.bf16.mxu0 %v1209
        %3719 = vmatmul.mubr.bf16.gmra.mrb[0].mxu0 %v1208
        %v3720 = vpop.f32.mrb[0].mxu0
        %v3721 = vadd.f32 %v3528, %v3720
        %v3722 = vpop.f32.mrb[0].mxu0
        %v3723 = vadd.f32 %v3530, %v3722
        %v3724 = vpop.f32.mrb[0].mxu0
        %v3725 = vadd.f32 %v3532, %v3724
        %v3726 = vpop.f32.mrb[0].mxu0
        %v3727 = vadd.f32 %v3534, %v3726
        %3728 = vdwg.mxu0
        %3729 = vmatprep.subr.bf16.mxu0 %v2413
        %3730 = vmatpush1.bf16.msra.mxu0 %v2412
        %3731 = vmatprep.subr.bf16.mxu0 %v2415
        %3732 = vmatpush1.bf16.msra.mxu0 %v2414
        %3733 = vmatprep.subr.bf16.mxu0 %v2417
        %3734 = vmatpush1.bf16.msra.mxu0 %v2416
        %3735 = vmatprep.subr.bf16.mxu0 %v2419
        %3736 = vmatpush1.bf16.msra.mxu0 %v2418
        %3737 = vmatprep.subr.bf16.mxu0 %v2421
        %3738 = vmatpush1.bf16.msra.mxu0 %v2420
        %3739 = vmatprep.subr.bf16.mxu0 %v2423
        %3740 = vmatpush1.bf16.msra.mxu0 %v2422
        %3741 = vmatprep.subr.bf16.mxu0 %v2425
        %3742 = vmatpush1.bf16.msra.mxu0 %v2424
        %3743 = vmatprep.subr.bf16.mxu0 %v2427
        %3744 = vmatpush1.bf16.msra.mxu0 %v2426
        %3745 = vmatprep.subr.bf16.mxu0 %v2429
        %3746 = vmatpush1.bf16.msra.mxu0 %v2428
        %3747 = vmatprep.subr.bf16.mxu0 %v2431
        %3748 = vmatpush1.bf16.msra.mxu0 %v2430
        %3749 = vmatprep.subr.bf16.mxu0 %v2433
        %3750 = vmatpush1.bf16.msra.mxu0 %v2432
        %3751 = vmatprep.subr.bf16.mxu0 %v2435
        %3752 = vmatpush1.bf16.msra.mxu0 %v2434
        %3753 = vmatprep.subr.bf16.mxu0 %v2437
        %3754 = vmatpush1.bf16.msra.mxu0 %v2436
        %3755 = vmatprep.subr.bf16.mxu0 %v2439
        %3756 = vmatpush1.bf16.msra.mxu0 %v2438
        %3757 = vmatprep.subr.bf16.mxu0 %v2441
        %3758 = vmatpush1.bf16.msra.mxu0 %v2440
        %3759 = vmatprep.subr.bf16.mxu0 %v2443
        %3760 = vmatpush1.bf16.msra.mxu0 %v2442
        %3761 = vmatprep.mubr.bf16.mxu0 %v971
        %3762 = vmatmul.mubr.bf16.gmra.mrb[0].mxu0 %v970
        %v3763 = vpop.f32.mrb[0].mxu0
        %v3764 = vadd.f32 %v3571, %v3763
        %v3765 = vpop.f32.mrb[0].mxu0
        %v3766 = vadd.f32 %v3573, %v3765
        %v3767 = vpop.f32.mrb[0].mxu0
        %v3768 = vadd.f32 %v3575, %v3767
        %v3769 = vpop.f32.mrb[0].mxu0
        %v3770 = vadd.f32 %v3577, %v3769
        %3771 = vmatprep.mubr.bf16.mxu0 %v987
        %3772 = vmatmul.mubr.bf16.gmra.mrb[0].mxu0 %v986
        %v3773 = vpop.f32.mrb[0].mxu0
        %v3774 = vadd.f32 %v3581, %v3773
        %v3775 = vpop.f32.mrb[0].mxu0
        %v3776 = vadd.f32 %v3583, %v3775
        %v3777 = vpop.f32.mrb[0].mxu0
        %v3778 = vadd.f32 %v3585, %v3777
        %v3779 = vpop.f32.mrb[0].mxu0
        %v3780 = vadd.f32 %v3587, %v3779
        %3781 = vmatprep.mubr.bf16.mxu0 %v1003
        %3782 = vmatmul.mubr.bf16.gmra.mrb[0].mxu0 %v1002
        %v3783 = vpop.f32.mrb[0].mxu0
        %v3784 = vadd.f32 %v3591, %v3783
        %v3785 = vpop.f32.mrb[0].mxu0
        %v3786 = vadd.f32 %v3593, %v3785
        %v3787 = vpop.f32.mrb[0].mxu0
        %v3788 = vadd.f32 %v3595, %v3787
        %v3789 = vpop.f32.mrb[0].mxu0
        %v3790 = vadd.f32 %v3597, %v3789
        %3791 = vmatprep.mubr.bf16.mxu0 %v1019
        %3792 = vmatmul.mubr.bf16.gmra.mrb[0].mxu0 %v1018
        %v3793 = vpop.f32.mrb[0].mxu0
        %v3794 = vadd.f32 %v3601, %v3793
        %v3795 = vpop.f32.mrb[0].mxu0
        %v3796 = vadd.f32 %v3603, %v3795
        %v3797 = vpop.f32.mrb[0].mxu0
        %v3798 = vadd.f32 %v3605, %v3797
        %v3799 = vpop.f32.mrb[0].mxu0
        %v3800 = vadd.f32 %v3607, %v3799
        %3801 = vmatprep.mubr.bf16.mxu0 %v1035
        %3802 = vmatmul.mubr.bf16.gmra.mrb[0].mxu0 %v1034
        %v3803 = vpop.f32.mrb[0].mxu0
        %v3804 = vadd.f32 %v3611, %v3803
        %v3805 = vpop.f32.mrb[0].mxu0
        %v3806 = vadd.f32 %v3613, %v3805
        %v3807 = vpop.f32.mrb[0].mxu0
        %v3808 = vadd.f32 %v3615, %v3807
        %v3809 = vpop.f32.mrb[0].mxu0
        %v3810 = vadd.f32 %v3617, %v3809
        %3811 = vmatprep.mubr.bf16.mxu0 %v1051
        %3812 = vmatmul.mubr.bf16.gmra.mrb[0].mxu0 %v1050
        %v3813 = vpop.f32.mrb[0].mxu0
        %v3814 = vadd.f32 %v3621, %v3813
        %v3815 = vpop.f32.mrb[0].mxu0
        %v3816 = vadd.f32 %v3623, %v3815
        %v3817 = vpop.f32.mrb[0].mxu0
        %v3818 = vadd.f32 %v3625, %v3817
        %v3819 = vpop.f32.mrb[0].mxu0
        %v3820 = vadd.f32 %v3627, %v3819
        %3821 = vmatprep.mubr.bf16.mxu0 %v1067
        %3822 = vmatmul.mubr.bf16.gmra.mrb[0].mxu0 %v1066
        %v3823 = vpop.f32.mrb[0].mxu0
        %v3824 = vadd.f32 %v3631, %v3823
        %v3825 = vpop.f32.mrb[0].mxu0
        %v3826 = vadd.f32 %v3633, %v3825
        %v3827 = vpop.f32.mrb[0].mxu0
        %v3828 = vadd.f32 %v3635, %v3827
        %v3829 = vpop.f32.mrb[0].mxu0
        %v3830 = vadd.f32 %v3637, %v3829
        %3831 = vmatprep.mubr.bf16.mxu0 %v1083
        %3832 = vmatmul.mubr.bf16.gmra.mrb[0].mxu0 %v1082
        %v3833 = vpop.f32.mrb[0].mxu0
        %v3834 = vadd.f32 %v3641, %v3833
        %v3835 = vpop.f32.mrb[0].mxu0
        %v3836 = vadd.f32 %v3643, %v3835
        %v3837 = vpop.f32.mrb[0].mxu0
        %v3838 = vadd.f32 %v3645, %v3837
        %v3839 = vpop.f32.mrb[0].mxu0
        %v3840 = vadd.f32 %v3647, %v3839
        %3841 = vmatprep.mubr.bf16.mxu0 %v1099
        %3842 = vmatmul.mubr.bf16.gmra.mrb[0].mxu0 %v1098
        %v3843 = vpop.f32.mrb[0].mxu0
        %v3844 = vadd.f32 %v3651, %v3843
        %v3845 = vpop.f32.mrb[0].mxu0
        %v3846 = vadd.f32 %v3653, %v3845
        %v3847 = vpop.f32.mrb[0].mxu0
        %v3848 = vadd.f32 %v3655, %v3847
        %v3849 = vpop.f32.mrb[0].mxu0
        %v3850 = vadd.f32 %v3657, %v3849
        %3851 = vmatprep.mubr.bf16.mxu0 %v1115
        %3852 = vmatmul.mubr.bf16.gmra.mrb[0].mxu0 %v1114
        %v3853 = vpop.f32.mrb[0].mxu0
        %v3854 = vadd.f32 %v3661, %v3853
        %v3855 = vpop.f32.mrb[0].mxu0
        %v3856 = vadd.f32 %v3663, %v3855
        %v3857 = vpop.f32.mrb[0].mxu0
        %v3858 = vadd.f32 %v3665, %v3857
        %v3859 = vpop.f32.mrb[0].mxu0
        %v3860 = vadd.f32 %v3667, %v3859
        %3861 = vmatprep.mubr.bf16.mxu0 %v1131
        %3862 = vmatmul.mubr.bf16.gmra.mrb[0].mxu0 %v1130
        %v3863 = vpop.f32.mrb[0].mxu0
        %v3864 = vadd.f32 %v3671, %v3863
        %v3865 = vpop.f32.mrb[0].mxu0
        %v3866 = vadd.f32 %v3673, %v3865
        %v3867 = vpop.f32.mrb[0].mxu0
        %v3868 = vadd.f32 %v3675, %v3867
        %v3869 = vpop.f32.mrb[0].mxu0
        %v3870 = vadd.f32 %v3677, %v3869
        %3871 = vmatprep.mubr.bf16.mxu0 %v1147
        %3872 = vmatmul.mubr.bf16.gmra.mrb[0].mxu0 %v1146
        %v3873 = vpop.f32.mrb[0].mxu0
        %v3874 = vadd.f32 %v3681, %v3873
        %v3875 = vpop.f32.mrb[0].mxu0
        %v3876 = vadd.f32 %v3683, %v3875
        %v3877 = vpop.f32.mrb[0].mxu0
        %v3878 = vadd.f32 %v3685, %v3877
        %v3879 = vpop.f32.mrb[0].mxu0
        %v3880 = vadd.f32 %v3687, %v3879
        %3881 = vmatprep.mubr.bf16.mxu0 %v1163
        %3882 = vmatmul.mubr.bf16.gmra.mrb[0].mxu0 %v1162
        %v3883 = vpop.f32.mrb[0].mxu0
        %v3884 = vadd.f32 %v3691, %v3883
        %v3885 = vpop.f32.mrb[0].mxu0
        %v3886 = vadd.f32 %v3693, %v3885
        %v3887 = vpop.f32.mrb[0].mxu0
        %v3888 = vadd.f32 %v3695, %v3887
        %v3889 = vpop.f32.mrb[0].mxu0
        %v3890 = vadd.f32 %v3697, %v3889
        %3891 = vmatprep.mubr.bf16.mxu0 %v1179
        %3892 = vmatmul.mubr.bf16.gmra.mrb[0].mxu0 %v1178
        %v3893 = vpop.f32.mrb[0].mxu0
        %v3894 = vadd.f32 %v3701, %v3893
        %v3895 = vpop.f32.mrb[0].mxu0
        %v3896 = vadd.f32 %v3703, %v3895
        %v3897 = vpop.f32.mrb[0].mxu0
        %v3898 = vadd.f32 %v3705, %v3897
        %v3899 = vpop.f32.mrb[0].mxu0
        %v3900 = vadd.f32 %v3707, %v3899
        %3901 = vmatprep.mubr.bf16.mxu0 %v1195
        %3902 = vmatmul.mubr.bf16.gmra.mrb[0].mxu0 %v1194
        %v3903 = vpop.f32.mrb[0].mxu0
        %v3904 = vadd.f32 %v3711, %v3903
        %v3905 = vpop.f32.mrb[0].mxu0
        %v3906 = vadd.f32 %v3713, %v3905
        %v3907 = vpop.f32.mrb[0].mxu0
        %v3908 = vadd.f32 %v3715, %v3907
        %v3909 = vpop.f32.mrb[0].mxu0
        %v3910 = vadd.f32 %v3717, %v3909
        %3911 = vmatprep.mubr.bf16.mxu0 %v1211
        %3912 = vmatmul.mubr.bf16.gmra.mrb[0].mxu0 %v1210
        %v3913 = vpop.f32.mrb[0].mxu0
        %v3914 = vadd.f32 %v3721, %v3913
        %v3915 = vpop.f32.mrb[0].mxu0
        %v3916 = vadd.f32 %v3723, %v3915
        %v3917 = vpop.f32.mrb[0].mxu0
        %v3918 = vadd.f32 %v3725, %v3917
        %v3919 = vpop.f32.mrb[0].mxu0
        %v3920 = vadd.f32 %v3727, %v3919
        %3921 = vdwg.mxu0
        %3922 = vmatprep.subr.bf16.mxu0 %v2445
        %3923 = vmatpush1.bf16.msra.mxu0 %v2444
        %3924 = vmatprep.subr.bf16.mxu0 %v2447
        %3925 = vmatpush1.bf16.msra.mxu0 %v2446
        %3926 = vmatprep.subr.bf16.mxu0 %v2449
        %3927 = vmatpush1.bf16.msra.mxu0 %v2448
        %3928 = vmatprep.subr.bf16.mxu0 %v2451
        %3929 = vmatpush1.bf16.msra.mxu0 %v2450
        %3930 = vmatprep.subr.bf16.mxu0 %v2453
        %3931 = vmatpush1.bf16.msra.mxu0 %v2452
        %3932 = vmatprep.subr.bf16.mxu0 %v2455
        %3933 = vmatpush1.bf16.msra.mxu0 %v2454
        %3934 = vmatprep.subr.bf16.mxu0 %v2457
        %3935 = vmatpush1.bf16.msra.mxu0 %v2456
        %3936 = vmatprep.subr.bf16.mxu0 %v2459
        %3937 = vmatpush1.bf16.msra.mxu0 %v2458
        %3938 = vmatprep.subr.bf16.mxu0 %v2461
        %3939 = vmatpush1.bf16.msra.mxu0 %v2460
        %3940 = vmatprep.subr.bf16.mxu0 %v2463
        %3941 = vmatpush1.bf16.msra.mxu0 %v2462
        %3942 = vmatprep.subr.bf16.mxu0 %v2465
        %3943 = vmatpush1.bf16.msra.mxu0 %v2464
        %3944 = vmatprep.subr.bf16.mxu0 %v2467
        %3945 = vmatpush1.bf16.msra.mxu0 %v2466
        %3946 = vmatprep.subr.bf16.mxu0 %v2469
        %3947 = vmatpush1.bf16.msra.mxu0 %v2468
        %3948 = vmatprep.subr.bf16.mxu0 %v2471
        %3949 = vmatpush1.bf16.msra.mxu0 %v2470
        %3950 = vmatprep.subr.bf16.mxu0 %v2473
        %3951 = vmatpush1.bf16.msra.mxu0 %v2472
        %3952 = vmatprep.subr.bf16.mxu0 %v2475
        %3953 = vmatpush1.bf16.msra.mxu0 %v2474
        %3954 = vmatprep.mubr.bf16.mxu0 %v973
        %3955 = vmatmul.mubr.bf16.gmra.mrb[0].mxu0 %v972
        %v3956 = vpop.f32.mrb[0].mxu0
        %v3957 = vadd.f32 %v3764, %v3956
        %v3958 = vpop.f32.mrb[0].mxu0
        %v3959 = vadd.f32 %v3766, %v3958
        %v3960 = vpop.f32.mrb[0].mxu0
        %v3961 = vadd.f32 %v3768, %v3960
        %v3962 = vpop.f32.mrb[0].mxu0
        %v3963 = vadd.f32 %v3770, %v3962
        %3964 = vmatprep.mubr.bf16.mxu0 %v989
        %3965 = vmatmul.mubr.bf16.gmra.mrb[0].mxu0 %v988
        %v3966 = vpop.f32.mrb[0].mxu0
        %v3967 = vadd.f32 %v3774, %v3966
        %v3968 = vpop.f32.mrb[0].mxu0
        %v3969 = vadd.f32 %v3776, %v3968
        %v3970 = vpop.f32.mrb[0].mxu0
        %v3971 = vadd.f32 %v3778, %v3970
        %v3972 = vpop.f32.mrb[0].mxu0
        %v3973 = vadd.f32 %v3780, %v3972
        %3974 = vmatprep.mubr.bf16.mxu0 %v1005
        %3975 = vmatmul.mubr.bf16.gmra.mrb[0].mxu0 %v1004
        %v3976 = vpop.f32.mrb[0].mxu0
        %v3977 = vadd.f32 %v3784, %v3976
        %v3978 = vpop.f32.mrb[0].mxu0
        %v3979 = vadd.f32 %v3786, %v3978
        %v3980 = vpop.f32.mrb[0].mxu0
        %v3981 = vadd.f32 %v3788, %v3980
        %v3982 = vpop.f32.mrb[0].mxu0
        %v3983 = vadd.f32 %v3790, %v3982
        %3984 = vmatprep.mubr.bf16.mxu0 %v1021
        %3985 = vmatmul.mubr.bf16.gmra.mrb[0].mxu0 %v1020
        %v3986 = vpop.f32.mrb[0].mxu0
        %v3987 = vadd.f32 %v3794, %v3986
        %v3988 = vpop.f32.mrb[0].mxu0
        %v3989 = vadd.f32 %v3796, %v3988
        %v3990 = vpop.f32.mrb[0].mxu0
        %v3991 = vadd.f32 %v3798, %v3990
        %v3992 = vpop.f32.mrb[0].mxu0
        %v3993 = vadd.f32 %v3800, %v3992
        %3994 = vmatprep.mubr.bf16.mxu0 %v1037
        %3995 = vmatmul.mubr.bf16.gmra.mrb[0].mxu0 %v1036
        %v3996 = vpop.f32.mrb[0].mxu0
        %v3997 = vadd.f32 %v3804, %v3996
        %v3998 = vpop.f32.mrb[0].mxu0
        %v3999 = vadd.f32 %v3806, %v3998
        %v4000 = vpop.f32.mrb[0].mxu0
        %v4001 = vadd.f32 %v3808, %v4000
        %v4002 = vpop.f32.mrb[0].mxu0
        %v4003 = vadd.f32 %v3810, %v4002
        %4004 = vmatprep.mubr.bf16.mxu0 %v1053
        %4005 = vmatmul.mubr.bf16.gmra.mrb[0].mxu0 %v1052
        %v4006 = vpop.f32.mrb[0].mxu0
        %v4007 = vadd.f32 %v3814, %v4006
        %v4008 = vpop.f32.mrb[0].mxu0
        %v4009 = vadd.f32 %v3816, %v4008
        %v4010 = vpop.f32.mrb[0].mxu0
        %v4011 = vadd.f32 %v3818, %v4010
        %v4012 = vpop.f32.mrb[0].mxu0
        %v4013 = vadd.f32 %v3820, %v4012
        %4014 = vmatprep.mubr.bf16.mxu0 %v1069
        %4015 = vmatmul.mubr.bf16.gmra.mrb[0].mxu0 %v1068
        %v4016 = vpop.f32.mrb[0].mxu0
        %v4017 = vadd.f32 %v3824, %v4016
        %v4018 = vpop.f32.mrb[0].mxu0
        %v4019 = vadd.f32 %v3826, %v4018
        %v4020 = vpop.f32.mrb[0].mxu0
        %v4021 = vadd.f32 %v3828, %v4020
        %v4022 = vpop.f32.mrb[0].mxu0
        %v4023 = vadd.f32 %v3830, %v4022
        %4024 = vmatprep.mubr.bf16.mxu0 %v1085
        %4025 = vmatmul.mubr.bf16.gmra.mrb[0].mxu0 %v1084
        %v4026 = vpop.f32.mrb[0].mxu0
        %v4027 = vadd.f32 %v3834, %v4026
        %v4028 = vpop.f32.mrb[0].mxu0
        %v4029 = vadd.f32 %v3836, %v4028
        %v4030 = vpop.f32.mrb[0].mxu0
        %v4031 = vadd.f32 %v3838, %v4030
        %v4032 = vpop.f32.mrb[0].mxu0
        %v4033 = vadd.f32 %v3840, %v4032
        %4034 = vmatprep.mubr.bf16.mxu0 %v1101
        %4035 = vmatmul.mubr.bf16.gmra.mrb[0].mxu0 %v1100
        %v4036 = vpop.f32.mrb[0].mxu0
        %v4037 = vadd.f32 %v3844, %v4036
        %v4038 = vpop.f32.mrb[0].mxu0
        %v4039 = vadd.f32 %v3846, %v4038
        %v4040 = vpop.f32.mrb[0].mxu0
        %v4041 = vadd.f32 %v3848, %v4040
        %v4042 = vpop.f32.mrb[0].mxu0
        %v4043 = vadd.f32 %v3850, %v4042
        %4044 = vmatprep.mubr.bf16.mxu0 %v1117
        %4045 = vmatmul.mubr.bf16.gmra.mrb[0].mxu0 %v1116
        %v4046 = vpop.f32.mrb[0].mxu0
        %v4047 = vadd.f32 %v3854, %v4046
        %v4048 = vpop.f32.mrb[0].mxu0
        %v4049 = vadd.f32 %v3856, %v4048
        %v4050 = vpop.f32.mrb[0].mxu0
        %v4051 = vadd.f32 %v3858, %v4050
        %v4052 = vpop.f32.mrb[0].mxu0
        %v4053 = vadd.f32 %v3860, %v4052
        %4054 = vmatprep.mubr.bf16.mxu0 %v1133
        %4055 = vmatmul.mubr.bf16.gmra.mrb[0].mxu0 %v1132
        %v4056 = vpop.f32.mrb[0].mxu0
        %v4057 = vadd.f32 %v3864, %v4056
        %v4058 = vpop.f32.mrb[0].mxu0
        %v4059 = vadd.f32 %v3866, %v4058
        %v4060 = vpop.f32.mrb[0].mxu0
        %v4061 = vadd.f32 %v3868, %v4060
        %v4062 = vpop.f32.mrb[0].mxu0
        %v4063 = vadd.f32 %v3870, %v4062
        %4064 = vmatprep.mubr.bf16.mxu0 %v1149
        %4065 = vmatmul.mubr.bf16.gmra.mrb[0].mxu0 %v1148
        %v4066 = vpop.f32.mrb[0].mxu0
        %v4067 = vadd.f32 %v3874, %v4066
        %v4068 = vpop.f32.mrb[0].mxu0
        %v4069 = vadd.f32 %v3876, %v4068
        %v4070 = vpop.f32.mrb[0].mxu0
        %v4071 = vadd.f32 %v3878, %v4070
        %v4072 = vpop.f32.mrb[0].mxu0
        %v4073 = vadd.f32 %v3880, %v4072
        %4074 = vmatprep.mubr.bf16.mxu0 %v1165
        %4075 = vmatmul.mubr.bf16.gmra.mrb[0].mxu0 %v1164
        %v4076 = vpop.f32.mrb[0].mxu0
        %v4077 = vadd.f32 %v3884, %v4076
        %v4078 = vpop.f32.mrb[0].mxu0
        %v4079 = vadd.f32 %v3886, %v4078
        %v4080 = vpop.f32.mrb[0].mxu0
        %v4081 = vadd.f32 %v3888, %v4080
        %v4082 = vpop.f32.mrb[0].mxu0
        %v4083 = vadd.f32 %v3890, %v4082
        %4084 = vmatprep.mubr.bf16.mxu0 %v1181
        %4085 = vmatmul.mubr.bf16.gmra.mrb[0].mxu0 %v1180
        %v4086 = vpop.f32.mrb[0].mxu0
        %v4087 = vadd.f32 %v3894, %v4086
        %v4088 = vpop.f32.mrb[0].mxu0
        %v4089 = vadd.f32 %v3896, %v4088
        %v4090 = vpop.f32.mrb[0].mxu0
        %v4091 = vadd.f32 %v3898, %v4090
        %v4092 = vpop.f32.mrb[0].mxu0
        %v4093 = vadd.f32 %v3900, %v4092
        %4094 = vmatprep.mubr.bf16.mxu0 %v1197
        %4095 = vmatmul.mubr.bf16.gmra.mrb[0].mxu0 %v1196
        %v4096 = vpop.f32.mrb[0].mxu0
        %v4097 = vadd.f32 %v3904, %v4096
        %v4098 = vpop.f32.mrb[0].mxu0
        %v4099 = vadd.f32 %v3906, %v4098
        %v4100 = vpop.f32.mrb[0].mxu0
        %v4101 = vadd.f32 %v3908, %v4100
        %v4102 = vpop.f32.mrb[0].mxu0
        %v4103 = vadd.f32 %v3910, %v4102
        %4104 = vmatprep.mubr.bf16.mxu0 %v1213
        %4105 = vmatmul.mubr.bf16.gmra.mrb[0].mxu0 %v1212
        %v4106 = vpop.f32.mrb[0].mxu0
        %v4107 = vadd.f32 %v3914, %v4106
        %v4108 = vpop.f32.mrb[0].mxu0
        %v4109 = vadd.f32 %v3916, %v4108
        %v4110 = vpop.f32.mrb[0].mxu0
        %v4111 = vadd.f32 %v3918, %v4110
        %v4112 = vpop.f32.mrb[0].mxu0
        %v4113 = vadd.f32 %v3920, %v4112
        %4114 = vdwg.mxu0
        %4115 = vmatprep.subr.bf16.mxu0 %v2477
        %4116 = vmatpush1.bf16.msra.mxu0 %v2476
        %4117 = vmatprep.subr.bf16.mxu0 %v2479
        %4118 = vmatpush1.bf16.msra.mxu0 %v2478
        %4119 = vmatprep.subr.bf16.mxu0 %v2481
        %4120 = vmatpush1.bf16.msra.mxu0 %v2480
        %4121 = vmatprep.subr.bf16.mxu0 %v2483
        %4122 = vmatpush1.bf16.msra.mxu0 %v2482
        %4123 = vmatprep.subr.bf16.mxu0 %v2485
        %4124 = vmatpush1.bf16.msra.mxu0 %v2484
        %4125 = vmatprep.subr.bf16.mxu0 %v2487
        %4126 = vmatpush1.bf16.msra.mxu0 %v2486
        %4127 = vmatprep.subr.bf16.mxu0 %v2489
        %4128 = vmatpush1.bf16.msra.mxu0 %v2488
        %4129 = vmatprep.subr.bf16.mxu0 %v2491
        %4130 = vmatpush1.bf16.msra.mxu0 %v2490
        %4131 = vmatprep.subr.bf16.mxu0 %v2493
        %4132 = vmatpush1.bf16.msra.mxu0 %v2492
        %4133 = vmatprep.subr.bf16.mxu0 %v2495
        %4134 = vmatpush1.bf16.msra.mxu0 %v2494
        %4135 = vmatprep.subr.bf16.mxu0 %v2497
        %4136 = vmatpush1.bf16.msra.mxu0 %v2496
        %4137 = vmatprep.subr.bf16.mxu0 %v2499
        %4138 = vmatpush1.bf16.msra.mxu0 %v2498
        %4139 = vmatprep.subr.bf16.mxu0 %v2501
        %4140 = vmatpush1.bf16.msra.mxu0 %v2500
        %4141 = vmatprep.subr.bf16.mxu0 %v2503
        %4142 = vmatpush1.bf16.msra.mxu0 %v2502
        %4143 = vmatprep.subr.bf16.mxu0 %v2505
        %4144 = vmatpush1.bf16.msra.mxu0 %v2504
        %4145 = vmatprep.subr.bf16.mxu0 %v2507
        %4146 = vmatpush1.bf16.msra.mxu0 %v2506
        %4147 = vmatprep.mubr.bf16.mxu0 %v975
        %4148 = vmatmul.mubr.bf16.gmra.mrb[0].mxu0 %v974
        %v4149 = vpop.f32.mrb[0].mxu0
        %v4150 = vadd.f32 %v3957, %v4149
        %v4151 = vpop.f32.mrb[0].mxu0
        %v4152 = vadd.f32 %v3959, %v4151
        %v4153 = vpop.f32.mrb[0].mxu0
        %v4154 = vadd.f32 %v3961, %v4153
        %v4155 = vpop.f32.mrb[0].mxu0
        %v4156 = vadd.f32 %v3963, %v4155
        %4157 = vmatprep.mubr.bf16.mxu0 %v991
        %4158 = vmatmul.mubr.bf16.gmra.mrb[0].mxu0 %v990
        %v4159 = vpop.f32.mrb[0].mxu0
        %v4160 = vadd.f32 %v3967, %v4159
        %v4161 = vpop.f32.mrb[0].mxu0
        %v4162 = vadd.f32 %v3969, %v4161
        %v4163 = vpop.f32.mrb[0].mxu0
        %v4164 = vadd.f32 %v3971, %v4163
        %v4165 = vpop.f32.mrb[0].mxu0
        %v4166 = vadd.f32 %v3973, %v4165
        %4167 = vmatprep.mubr.bf16.mxu0 %v1007
        %4168 = vmatmul.mubr.bf16.gmra.mrb[0].mxu0 %v1006
        %v4169 = vpop.f32.mrb[0].mxu0
        %v4170 = vadd.f32 %v3977, %v4169
        %v4171 = vpop.f32.mrb[0].mxu0
        %v4172 = vadd.f32 %v3979, %v4171
        %v4173 = vpop.f32.mrb[0].mxu0
        %v4174 = vadd.f32 %v3981, %v4173
        %v4175 = vpop.f32.mrb[0].mxu0
        %v4176 = vadd.f32 %v3983, %v4175
        %4177 = vmatprep.mubr.bf16.mxu0 %v1023
        %4178 = vmatmul.mubr.bf16.gmra.mrb[0].mxu0 %v1022
        %v4179 = vpop.f32.mrb[0].mxu0
        %v4180 = vadd.f32 %v3987, %v4179
        %v4181 = vpop.f32.mrb[0].mxu0
        %v4182 = vadd.f32 %v3989, %v4181
        %v4183 = vpop.f32.mrb[0].mxu0
        %v4184 = vadd.f32 %v3991, %v4183
        %v4185 = vpop.f32.mrb[0].mxu0
        %v4186 = vadd.f32 %v3993, %v4185
        %4187 = vmatprep.mubr.bf16.mxu0 %v1039
        %4188 = vmatmul.mubr.bf16.gmra.mrb[0].mxu0 %v1038
        %v4189 = vpop.f32.mrb[0].mxu0
        %v4190 = vadd.f32 %v3997, %v4189
        %v4191 = vpop.f32.mrb[0].mxu0
        %v4192 = vadd.f32 %v3999, %v4191
        %v4193 = vpop.f32.mrb[0].mxu0
        %v4194 = vadd.f32 %v4001, %v4193
        %v4195 = vpop.f32.mrb[0].mxu0
        %v4196 = vadd.f32 %v4003, %v4195
        %4197 = vmatprep.mubr.bf16.mxu0 %v1055
        %4198 = vmatmul.mubr.bf16.gmra.mrb[0].mxu0 %v1054
        %v4199 = vpop.f32.mrb[0].mxu0
        %v4200 = vadd.f32 %v4007, %v4199
        %v4201 = vpop.f32.mrb[0].mxu0
        %v4202 = vadd.f32 %v4009, %v4201
        %v4203 = vpop.f32.mrb[0].mxu0
        %v4204 = vadd.f32 %v4011, %v4203
        %v4205 = vpop.f32.mrb[0].mxu0
        %v4206 = vadd.f32 %v4013, %v4205
        %4207 = vmatprep.mubr.bf16.mxu0 %v1071
        %4208 = vmatmul.mubr.bf16.gmra.mrb[0].mxu0 %v1070
        %v4209 = vpop.f32.mrb[0].mxu0
        %v4210 = vadd.f32 %v4017, %v4209
        %v4211 = vpop.f32.mrb[0].mxu0
        %v4212 = vadd.f32 %v4019, %v4211
        %v4213 = vpop.f32.mrb[0].mxu0
        %v4214 = vadd.f32 %v4021, %v4213
        %v4215 = vpop.f32.mrb[0].mxu0
        %v4216 = vadd.f32 %v4023, %v4215
        %4217 = vmatprep.mubr.bf16.mxu0 %v1087
        %4218 = vmatmul.mubr.bf16.gmra.mrb[0].mxu0 %v1086
        %v4219 = vpop.f32.mrb[0].mxu0
        %v4220 = vadd.f32 %v4027, %v4219
        %v4221 = vpop.f32.mrb[0].mxu0
        %v4222 = vadd.f32 %v4029, %v4221
        %v4223 = vpop.f32.mrb[0].mxu0
        %v4224 = vadd.f32 %v4031, %v4223
        %v4225 = vpop.f32.mrb[0].mxu0
        %v4226 = vadd.f32 %v4033, %v4225
        %4227 = vmatprep.mubr.bf16.mxu0 %v1103
        %4228 = vmatmul.mubr.bf16.gmra.mrb[0].mxu0 %v1102
        %v4229 = vpop.f32.mrb[0].mxu0
        %v4230 = vadd.f32 %v4037, %v4229
        %v4231 = vpop.f32.mrb[0].mxu0
        %v4232 = vadd.f32 %v4039, %v4231
        %v4233 = vpop.f32.mrb[0].mxu0
        %v4234 = vadd.f32 %v4041, %v4233
        %v4235 = vpop.f32.mrb[0].mxu0
        %v4236 = vadd.f32 %v4043, %v4235
        %4237 = vmatprep.mubr.bf16.mxu0 %v1119
        %4238 = vmatmul.mubr.bf16.gmra.mrb[0].mxu0 %v1118
        %v4239 = vpop.f32.mrb[0].mxu0
        %v4240 = vadd.f32 %v4047, %v4239
        %v4241 = vpop.f32.mrb[0].mxu0
        %v4242 = vadd.f32 %v4049, %v4241
        %v4243 = vpop.f32.mrb[0].mxu0
        %v4244 = vadd.f32 %v4051, %v4243
        %v4245 = vpop.f32.mrb[0].mxu0
        %v4246 = vadd.f32 %v4053, %v4245
        %4247 = vmatprep.mubr.bf16.mxu0 %v1135
        %4248 = vmatmul.mubr.bf16.gmra.mrb[0].mxu0 %v1134
        %v4249 = vpop.f32.mrb[0].mxu0
        %v4250 = vadd.f32 %v4057, %v4249
        %v4251 = vpop.f32.mrb[0].mxu0
        %v4252 = vadd.f32 %v4059, %v4251
        %v4253 = vpop.f32.mrb[0].mxu0
        %v4254 = vadd.f32 %v4061, %v4253
        %v4255 = vpop.f32.mrb[0].mxu0
        %v4256 = vadd.f32 %v4063, %v4255
        %4257 = vmatprep.mubr.bf16.mxu0 %v1151
        %4258 = vmatmul.mubr.bf16.gmra.mrb[0].mxu0 %v1150
        %v4259 = vpop.f32.mrb[0].mxu0
        %v4260 = vadd.f32 %v4067, %v4259
        %v4261 = vpop.f32.mrb[0].mxu0
        %v4262 = vadd.f32 %v4069, %v4261
        %v4263 = vpop.f32.mrb[0].mxu0
        %v4264 = vadd.f32 %v4071, %v4263
        %v4265 = vpop.f32.mrb[0].mxu0
        %v4266 = vadd.f32 %v4073, %v4265
        %4267 = vmatprep.mubr.bf16.mxu0 %v1167
        %4268 = vmatmul.mubr.bf16.gmra.mrb[0].mxu0 %v1166
        %v4269 = vpop.f32.mrb[0].mxu0
        %v4270 = vadd.f32 %v4077, %v4269
        %v4271 = vpop.f32.mrb[0].mxu0
        %v4272 = vadd.f32 %v4079, %v4271
        %v4273 = vpop.f32.mrb[0].mxu0
        %v4274 = vadd.f32 %v4081, %v4273
        %v4275 = vpop.f32.mrb[0].mxu0
        %v4276 = vadd.f32 %v4083, %v4275
        %4277 = vmatprep.mubr.bf16.mxu0 %v1183
        %4278 = vmatmul.mubr.bf16.gmra.mrb[0].mxu0 %v1182
        %v4279 = vpop.f32.mrb[0].mxu0
        %v4280 = vadd.f32 %v4087, %v4279
        %v4281 = vpop.f32.mrb[0].mxu0
        %v4282 = vadd.f32 %v4089, %v4281
        %v4283 = vpop.f32.mrb[0].mxu0
        %v4284 = vadd.f32 %v4091, %v4283
        %v4285 = vpop.f32.mrb[0].mxu0
        %v4286 = vadd.f32 %v4093, %v4285
        %4287 = vmatprep.mubr.bf16.mxu0 %v1199
        %4288 = vmatmul.mubr.bf16.gmra.mrb[0].mxu0 %v1198
        %v4289 = vpop.f32.mrb[0].mxu0
        %v4290 = vadd.f32 %v4097, %v4289
        %v4291 = vpop.f32.mrb[0].mxu0
        %v4292 = vadd.f32 %v4099, %v4291
        %v4293 = vpop.f32.mrb[0].mxu0
        %v4294 = vadd.f32 %v4101, %v4293
        %v4295 = vpop.f32.mrb[0].mxu0
        %v4296 = vadd.f32 %v4103, %v4295
        %4297 = vmatprep.mubr.bf16.mxu0 %v1215
        %4298 = vmatmul.mubr.bf16.gmra.mrb[0].mxu0 %v1214
        %v4299 = vpop.f32.mrb[0].mxu0
        %v4300 = vadd.f32 %v4107, %v4299
        %v4301 = vpop.f32.mrb[0].mxu0
        %v4302 = vadd.f32 %v4109, %v4301
        %v4303 = vpop.f32.mrb[0].mxu0
        %v4304 = vadd.f32 %v4111, %v4303
        %v4305 = vpop.f32.mrb[0].mxu0
        %v4306 = vadd.f32 %v4113, %v4305
        %4307 = vdwg.mxu0
        %v4308 = vmax.f32 %v4150, 0.0
        %v4309 = vmax.f32 %v4152, 0.0
        %v4310 = vmax.f32 %v4154, 0.0
        %v4311 = vmax.f32 %v4156, 0.0
        %v4312 = vmax.f32 %v4160, 0.0
        %v4313 = vmax.f32 %v4162, 0.0
        %v4314 = vmax.f32 %v4164, 0.0
        %v4315 = vmax.f32 %v4166, 0.0
        %v4316 = vmax.f32 %v4170, 0.0
        %v4317 = vmax.f32 %v4172, 0.0
        %v4318 = vmax.f32 %v4174, 0.0
        %v4319 = vmax.f32 %v4176, 0.0
        %v4320 = vmax.f32 %v4180, 0.0
        %v4321 = vmax.f32 %v4182, 0.0
        %v4322 = vmax.f32 %v4184, 0.0
        %v4323 = vmax.f32 %v4186, 0.0
        %v4324 = vmax.f32 %v4190, 0.0
        %v4325 = vmax.f32 %v4192, 0.0
        %v4326 = vmax.f32 %v4194, 0.0
        %v4327 = vmax.f32 %v4196, 0.0
        %v4328 = vmax.f32 %v4200, 0.0
        %v4329 = vmax.f32 %v4202, 0.0
        %v4330 = vmax.f32 %v4204, 0.0
        %v4331 = vmax.f32 %v4206, 0.0
        %v4332 = vmax.f32 %v4210, 0.0
        %v4333 = vmax.f32 %v4212, 0.0
        %v4334 = vmax.f32 %v4214, 0.0
        %v4335 = vmax.f32 %v4216, 0.0
        %v4336 = vmax.f32 %v4220, 0.0
        %v4337 = vmax.f32 %v4222, 0.0
        %v4338 = vmax.f32 %v4224, 0.0
        %v4339 = vmax.f32 %v4226, 0.0
        %v4340 = vmax.f32 %v4230, 0.0
        %v4341 = vmax.f32 %v4232, 0.0
        %v4342 = vmax.f32 %v4234, 0.0
        %v4343 = vmax.f32 %v4236, 0.0
        %v4344 = vmax.f32 %v4240, 0.0
        %v4345 = vmax.f32 %v4242, 0.0
        %v4346 = vmax.f32 %v4244, 0.0
        %v4347 = vmax.f32 %v4246, 0.0
        %v4348 = vmax.f32 %v4250, 0.0
        %v4349 = vmax.f32 %v4252, 0.0
        %v4350 = vmax.f32 %v4254, 0.0
        %v4351 = vmax.f32 %v4256, 0.0
        %v4352 = vmax.f32 %v4260, 0.0
        %v4353 = vmax.f32 %v4262, 0.0
        %v4354 = vmax.f32 %v4264, 0.0
        %v4355 = vmax.f32 %v4266, 0.0
        %v4356 = vmax.f32 %v4270, 0.0
        %v4357 = vmax.f32 %v4272, 0.0
        %v4358 = vmax.f32 %v4274, 0.0
        %v4359 = vmax.f32 %v4276, 0.0
        %v4360 = vmax.f32 %v4280, 0.0
        %v4361 = vmax.f32 %v4282, 0.0
        %v4362 = vmax.f32 %v4284, 0.0
        %v4363 = vmax.f32 %v4286, 0.0
        %v4364 = vmax.f32 %v4290, 0.0
        %v4365 = vmax.f32 %v4292, 0.0
        %v4366 = vmax.f32 %v4294, 0.0
        %v4367 = vmax.f32 %v4296, 0.0
        %v4368 = vmax.f32 %v4300, 0.0
        %v4369 = vmax.f32 %v4302, 0.0
        %v4370 = vmax.f32 %v4304, 0.0
        %v4371 = vmax.f32 %v4306, 0.0
        %v4372 = vpack.c.bf16 %v4310, %v4308
        %v4373 = vpack.c.bf16 %v4311, %v4309
        %v4374 = vpack.c.bf16 %v4314, %v4312
        %v4375 = vpack.c.bf16 %v4315, %v4313
        %v4376 = vpack.c.bf16 %v4318, %v4316
        %v4377 = vpack.c.bf16 %v4319, %v4317
        %v4378 = vpack.c.bf16 %v4322, %v4320
        %v4379 = vpack.c.bf16 %v4323, %v4321
        %v4380 = vpack.c.bf16 %v4326, %v4324
        %v4381 = vpack.c.bf16 %v4327, %v4325
        %v4382 = vpack.c.bf16 %v4330, %v4328
        %v4383 = vpack.c.bf16 %v4331, %v4329
        %v4384 = vpack.c.bf16 %v4334, %v4332
        %v4385 = vpack.c.bf16 %v4335, %v4333
        %v4386 = vpack.c.bf16 %v4338, %v4336
        %v4387 = vpack.c.bf16 %v4339, %v4337
        %v4388 = vpack.c.bf16 %v4342, %v4340
        %v4389 = vpack.c.bf16 %v4343, %v4341
        %v4390 = vpack.c.bf16 %v4346, %v4344
        %v4391 = vpack.c.bf16 %v4347, %v4345
        %v4392 = vpack.c.bf16 %v4350, %v4348
        %v4393 = vpack.c.bf16 %v4351, %v4349
        %v4394 = vpack.c.bf16 %v4354, %v4352
        %v4395 = vpack.c.bf16 %v4355, %v4353
        %v4396 = vpack.c.bf16 %v4358, %v4356
        %v4397 = vpack.c.bf16 %v4359, %v4357
        %v4398 = vpack.c.bf16 %v4362, %v4360
        %v4399 = vpack.c.bf16 %v4363, %v4361
        %v4400 = vpack.c.bf16 %v4366, %v4364
        %v4401 = vpack.c.bf16 %v4367, %v4365
        %v4402 = vpack.c.bf16 %v4370, %v4368
        %v4403 = vpack.c.bf16 %v4371, %v4369
        %v4404 = vld [vmem:[#allocation8] sm:$0xf]
        %v4405 = vld [vmem:[#allocation8 + $0x4] sm:$0xf]
        %v4406 = vld [vmem:[#allocation8 + $0x8] sm:$0xf]
        %v4407 = vld [vmem:[#allocation8 + $0xc] sm:$0xf]
        %v4408 = vld [vmem:[#allocation8 + $0x10] sm:$0xf]
        %v4409 = vld [vmem:[#allocation8 + $0x14] sm:$0xf]
        %v4410 = vld [vmem:[#allocation8 + $0x18] sm:$0xf]
        %v4411 = vld [vmem:[#allocation8 + $0x1c] sm:$0xf]
        %v4412 = vld [vmem:[#allocation8 + $0x20] sm:$0xf]
        %v4413 = vld [vmem:[#allocation8 + $0x24] sm:$0xf]
        %v4414 = vld [vmem:[#allocation8 + $0x28] sm:$0xf]
        %v4415 = vld [vmem:[#allocation8 + $0x2c] sm:$0xf]
        %v4416 = vld [vmem:[#allocation8 + $0x30] sm:$0xf]
        %v4417 = vld [vmem:[#allocation8 + $0x34] sm:$0xf]
        %v4418 = vld [vmem:[#allocation8 + $0x38] sm:$0xf]
        %v4419 = vld [vmem:[#allocation8 + $0x3c] sm:$0xf]
        %v4420 = vld [vmem:[#allocation8 + $0x40] sm:$0xf]
        %v4421 = vld [vmem:[#allocation8 + $0x44] sm:$0xf]
        %v4422 = vld [vmem:[#allocation8 + $0x48] sm:$0xf]
        %v4423 = vld [vmem:[#allocation8 + $0x4c] sm:$0xf]
        %v4424 = vld [vmem:[#allocation8 + $0x50] sm:$0xf]
        %v4425 = vld [vmem:[#allocation8 + $0x54] sm:$0xf]
        %v4426 = vld [vmem:[#allocation8 + $0x58] sm:$0xf]
        %v4427 = vld [vmem:[#allocation8 + $0x5c] sm:$0xf]
        %v4428 = vld [vmem:[#allocation8 + $0x60] sm:$0xf]
        %v4429 = vld [vmem:[#allocation8 + $0x64] sm:$0xf]
        %v4430 = vld [vmem:[#allocation8 + $0x68] sm:$0xf]
        %v4431 = vld [vmem:[#allocation8 + $0x6c] sm:$0xf]
        %v4432 = vld [vmem:[#allocation8 + $0x70] sm:$0xf]
        %v4433 = vld [vmem:[#allocation8 + $0x74] sm:$0xf]
        %v4434 = vld [vmem:[#allocation8 + $0x78] sm:$0xf]
        %v4435 = vld [vmem:[#allocation8 + $0x7c] sm:$0xf]
        %v4436 = vld [vmem:[#allocation10] sm:$0x1]
        %v4438 = vlaneseq
        %v4439 = vshrl.u32 %v4438, 7
        %v4440 = vsub.s32 0, %v4439
        %v4441 = vrot.slane %v4436, %v4440
        %v4475 = vunpack.c.l.b16 %v4404
        %v4476 = vunpack.c.l.b16 %v4405
        %v4477 = vunpack.c.l.b16 %v4406
        %v4478 = vunpack.c.l.b16 %v4407
        %v4479 = vunpack.c.l.b16 %v4408
        %v4480 = vunpack.c.l.b16 %v4409
        %v4481 = vunpack.c.l.b16 %v4410
        %v4482 = vunpack.c.l.b16 %v4411
        %v4483 = vunpack.c.l.b16 %v4412
        %v4484 = vunpack.c.l.b16 %v4413
        %v4485 = vunpack.c.l.b16 %v4414
        %v4486 = vunpack.c.l.b16 %v4415
        %v4487 = vunpack.c.l.b16 %v4416
        %v4488 = vunpack.c.l.b16 %v4417
        %v4489 = vunpack.c.l.b16 %v4418
        %v4490 = vunpack.c.l.b16 %v4419
        %v4491 = vunpack.c.l.b16 %v4420
        %v4492 = vunpack.c.l.b16 %v4421
        %v4493 = vunpack.c.l.b16 %v4422
        %v4494 = vunpack.c.l.b16 %v4423
        %v4495 = vunpack.c.l.b16 %v4424
        %v4496 = vunpack.c.l.b16 %v4425
        %v4497 = vunpack.c.l.b16 %v4426
        %v4498 = vunpack.c.l.b16 %v4427
        %v4499 = vunpack.c.l.b16 %v4428
        %v4500 = vunpack.c.l.b16 %v4429
        %v4501 = vunpack.c.l.b16 %v4430
        %v4502 = vunpack.c.l.b16 %v4431
        %v4503 = vunpack.c.l.b16 %v4432
        %v4504 = vunpack.c.l.b16 %v4433
        %v4505 = vunpack.c.l.b16 %v4434
        %v4506 = vunpack.c.l.b16 %v4435
        %v4507 = vpack.c.b16 %v4476, %v4475
        %v4508 = vpack.c.b16 %v4478, %v4477
        %v4509 = vpack.c.b16 %v4480, %v4479
        %v4510 = vpack.c.b16 %v4482, %v4481
        %v4511 = vpack.c.b16 %v4484, %v4483
        %v4512 = vpack.c.b16 %v4486, %v4485
        %v4513 = vpack.c.b16 %v4488, %v4487
        %v4514 = vpack.c.b16 %v4490, %v4489
        %v4515 = vpack.c.b16 %v4492, %v4491
        %v4516 = vpack.c.b16 %v4494, %v4493
        %v4517 = vpack.c.b16 %v4496, %v4495
        %v4518 = vpack.c.b16 %v4498, %v4497
        %v4519 = vpack.c.b16 %v4500, %v4499
        %v4520 = vpack.c.b16 %v4502, %v4501
        %v4521 = vpack.c.b16 %v4504, %v4503
        %v4522 = vpack.c.b16 %v4506, %v4505
        %4539 = vmatprep.subr.bf16.mxu0 0
        %4540 = vmatpush1.bf16.msra.mxu0 %v4507
        %4541 = vmatprep.subr.bf16.mxu0 0
        %4542 = vmatpush1.bf16.msra.mxu0 %v4508
        %4543 = vmatprep.subr.bf16.mxu0 0
        %4544 = vmatpush1.bf16.msra.mxu0 %v4509
        %4545 = vmatprep.subr.bf16.mxu0 0
        %4546 = vmatpush1.bf16.msra.mxu0 %v4510
        %4547 = vmatprep.subr.bf16.mxu0 0
        %4548 = vmatpush1.bf16.msra.mxu0 %v4511
        %4549 = vmatprep.subr.bf16.mxu0 0
        %4550 = vmatpush1.bf16.msra.mxu0 %v4512
        %4551 = vmatprep.subr.bf16.mxu0 0
        %4552 = vmatpush1.bf16.msra.mxu0 %v4513
        %4553 = vmatprep.subr.bf16.mxu0 0
        %4554 = vmatpush1.bf16.msra.mxu0 %v4514
        %4555 = vmatprep.subr.bf16.mxu0 0
        %4556 = vmatpush1.bf16.msra.mxu0 %v4515
        %4557 = vmatprep.subr.bf16.mxu0 0
        %4558 = vmatpush1.bf16.msra.mxu0 %v4516
        %4559 = vmatprep.subr.bf16.mxu0 0
        %4560 = vmatpush1.bf16.msra.mxu0 %v4517
        %4561 = vmatprep.subr.bf16.mxu0 0
        %4562 = vmatpush1.bf16.msra.mxu0 %v4518
        %4563 = vmatprep.subr.bf16.mxu0 0
        %4564 = vmatpush1.bf16.msra.mxu0 %v4519
        %4565 = vmatprep.subr.bf16.mxu0 0
        %4566 = vmatpush1.bf16.msra.mxu0 %v4520
        %4567 = vmatprep.subr.bf16.mxu0 0
        %4568 = vmatpush1.bf16.msra.mxu0 %v4521
        %4569 = vmatprep.subr.bf16.mxu0 0
        %4570 = vmatpush1.bf16.msra.mxu0 %v4522
        %4571 = vmatprep.mubr.bf16.mxu0 %v4373
        %4572 = vmatmul.mubr.bf16.gmra.mrb[0].mxu0 %v4372
        %v4573 = vpop.f32.mrb[0].mxu0
        %v4574 = vadd.f32 %v4441, %v4573
        %v4575 = vpop.f32.mrb[0].mxu0
        %v4576 = vpop.f32.mrb[0].mxu0
        %v4577 = vadd.f32 %v4441, %v4576
        %v4578 = vpop.f32.mrb[0].mxu0
        %4579 = vmatprep.mubr.bf16.mxu0 %v4375
        %4580 = vmatmul.mubr.bf16.gmra.mrb[0].mxu0 %v4374
        %v4581 = vpop.f32.mrb[0].mxu0
        %v4582 = vadd.f32 %v4441, %v4581
        %v4583 = vpop.f32.mrb[0].mxu0
        %v4584 = vpop.f32.mrb[0].mxu0
        %v4585 = vadd.f32 %v4441, %v4584
        %v4586 = vpop.f32.mrb[0].mxu0
        %4587 = vmatprep.mubr.bf16.mxu0 %v4377
        %4588 = vmatmul.mubr.bf16.gmra.mrb[0].mxu0 %v4376
        %v4589 = vpop.f32.mrb[0].mxu0
        %v4590 = vadd.f32 %v4441, %v4589
        %v4591 = vpop.f32.mrb[0].mxu0
        %v4592 = vpop.f32.mrb[0].mxu0
        %v4593 = vadd.f32 %v4441, %v4592
        %v4594 = vpop.f32.mrb[0].mxu0
        %4595 = vmatprep.mubr.bf16.mxu0 %v4379
        %4596 = vmatmul.mubr.bf16.gmra.mrb[0].mxu0 %v4378
        %v4597 = vpop.f32.mrb[0].mxu0
        %v4598 = vadd.f32 %v4441, %v4597
        %v4599 = vpop.f32.mrb[0].mxu0
        %v4600 = vpop.f32.mrb[0].mxu0
        %v4601 = vadd.f32 %v4441, %v4600
        %v4602 = vpop.f32.mrb[0].mxu0
        %4603 = vmatprep.mubr.bf16.mxu0 %v4381
        %4604 = vmatmul.mubr.bf16.gmra.mrb[0].mxu0 %v4380
        %v4605 = vpop.f32.mrb[0].mxu0
        %v4606 = vadd.f32 %v4441, %v4605
        %v4607 = vpop.f32.mrb[0].mxu0
        %v4608 = vpop.f32.mrb[0].mxu0
        %v4609 = vadd.f32 %v4441, %v4608
        %v4610 = vpop.f32.mrb[0].mxu0
        %4611 = vmatprep.mubr.bf16.mxu0 %v4383
        %4612 = vmatmul.mubr.bf16.gmra.mrb[0].mxu0 %v4382
        %v4613 = vpop.f32.mrb[0].mxu0
        %v4614 = vadd.f32 %v4441, %v4613
        %v4615 = vpop.f32.mrb[0].mxu0
        %v4616 = vpop.f32.mrb[0].mxu0
        %v4617 = vadd.f32 %v4441, %v4616
        %v4618 = vpop.f32.mrb[0].mxu0
        %4619 = vmatprep.mubr.bf16.mxu0 %v4385
        %4620 = vmatmul.mubr.bf16.gmra.mrb[0].mxu0 %v4384
        %v4621 = vpop.f32.mrb[0].mxu0
        %v4622 = vadd.f32 %v4441, %v4621
        %v4623 = vpop.f32.mrb[0].mxu0
        %v4624 = vpop.f32.mrb[0].mxu0
        %v4625 = vadd.f32 %v4441, %v4624
        %v4626 = vpop.f32.mrb[0].mxu0
        %4627 = vmatprep.mubr.bf16.mxu0 %v4387
        %4628 = vmatmul.mubr.bf16.gmra.mrb[0].mxu0 %v4386
        %v4629 = vpop.f32.mrb[0].mxu0
        %v4630 = vadd.f32 %v4441, %v4629
        %v4631 = vpop.f32.mrb[0].mxu0
        %v4632 = vpop.f32.mrb[0].mxu0
        %v4633 = vadd.f32 %v4441, %v4632
        %v4634 = vpop.f32.mrb[0].mxu0
        %4635 = vmatprep.mubr.bf16.mxu0 %v4389
        %4636 = vmatmul.mubr.bf16.gmra.mrb[0].mxu0 %v4388
        %v4637 = vpop.f32.mrb[0].mxu0
        %v4638 = vadd.f32 %v4441, %v4637
        %v4639 = vpop.f32.mrb[0].mxu0
        %v4640 = vpop.f32.mrb[0].mxu0
        %v4641 = vadd.f32 %v4441, %v4640
        %v4642 = vpop.f32.mrb[0].mxu0
        %4643 = vmatprep.mubr.bf16.mxu0 %v4391
        %4644 = vmatmul.mubr.bf16.gmra.mrb[0].mxu0 %v4390
        %v4645 = vpop.f32.mrb[0].mxu0
        %v4646 = vadd.f32 %v4441, %v4645
        %v4647 = vpop.f32.mrb[0].mxu0
        %v4648 = vpop.f32.mrb[0].mxu0
        %v4649 = vadd.f32 %v4441, %v4648
        %v4650 = vpop.f32.mrb[0].mxu0
        %4651 = vmatprep.mubr.bf16.mxu0 %v4393
        %4652 = vmatmul.mubr.bf16.gmra.mrb[0].mxu0 %v4392
        %v4653 = vpop.f32.mrb[0].mxu0
        %v4654 = vadd.f32 %v4441, %v4653
        %v4655 = vpop.f32.mrb[0].mxu0
        %v4656 = vpop.f32.mrb[0].mxu0
        %v4657 = vadd.f32 %v4441, %v4656
        %v4658 = vpop.f32.mrb[0].mxu0
        %4659 = vmatprep.mubr.bf16.mxu0 %v4395
        %4660 = vmatmul.mubr.bf16.gmra.mrb[0].mxu0 %v4394
        %v4661 = vpop.f32.mrb[0].mxu0
        %v4662 = vadd.f32 %v4441, %v4661
        %v4663 = vpop.f32.mrb[0].mxu0
        %v4664 = vpop.f32.mrb[0].mxu0
        %v4665 = vadd.f32 %v4441, %v4664
        %v4666 = vpop.f32.mrb[0].mxu0
        %4667 = vmatprep.mubr.bf16.mxu0 %v4397
        %4668 = vmatmul.mubr.bf16.gmra.mrb[0].mxu0 %v4396
        %v4669 = vpop.f32.mrb[0].mxu0
        %v4670 = vadd.f32 %v4441, %v4669
        %v4671 = vpop.f32.mrb[0].mxu0
        %v4672 = vpop.f32.mrb[0].mxu0
        %v4673 = vadd.f32 %v4441, %v4672
        %v4674 = vpop.f32.mrb[0].mxu0
        %4675 = vmatprep.mubr.bf16.mxu0 %v4399
        %4676 = vmatmul.mubr.bf16.gmra.mrb[0].mxu0 %v4398
        %v4677 = vpop.f32.mrb[0].mxu0
        %v4678 = vadd.f32 %v4441, %v4677
        %v4679 = vpop.f32.mrb[0].mxu0
        %v4680 = vpop.f32.mrb[0].mxu0
        %v4681 = vadd.f32 %v4441, %v4680
        %v4682 = vpop.f32.mrb[0].mxu0
        %4683 = vmatprep.mubr.bf16.mxu0 %v4401
        %4684 = vmatmul.mubr.bf16.gmra.mrb[0].mxu0 %v4400
        %v4685 = vpop.f32.mrb[0].mxu0
        %v4686 = vadd.f32 %v4441, %v4685
        %v4687 = vpop.f32.mrb[0].mxu0
        %v4688 = vpop.f32.mrb[0].mxu0
        %v4689 = vadd.f32 %v4441, %v4688
        %v4690 = vpop.f32.mrb[0].mxu0
        %4691 = vmatprep.mubr.bf16.mxu0 %v4403
        %4692 = vmatmul.mubr.bf16.gmra.mrb[0].mxu0 %v4402
        %v4693 = vpop.f32.mrb[0].mxu0
        %v4694 = vadd.f32 %v4441, %v4693
        %v4695 = vpop.f32.mrb[0].mxu0
        %v4696 = vpop.f32.mrb[0].mxu0
        %v4697 = vadd.f32 %v4441, %v4696
        %v4698 = vpop.f32.mrb[0].mxu0
        %4699 = vdwg.mxu0
        %v4700 = vmax.f32 %v4574, 0.0
        %v4701 = vmax.f32 %v4577, 0.0
        %v4702 = vmax.f32 %v4582, 0.0
        %v4703 = vmax.f32 %v4585, 0.0
        %v4704 = vmax.f32 %v4590, 0.0
        %v4705 = vmax.f32 %v4593, 0.0
        %v4706 = vmax.f32 %v4598, 0.0
        %v4707 = vmax.f32 %v4601, 0.0
        %v4708 = vmax.f32 %v4606, 0.0
        %v4709 = vmax.f32 %v4609, 0.0
        %v4710 = vmax.f32 %v4614, 0.0
        %v4711 = vmax.f32 %v4617, 0.0
        %v4712 = vmax.f32 %v4622, 0.0
        %v4713 = vmax.f32 %v4625, 0.0
        %v4714 = vmax.f32 %v4630, 0.0
        %v4715 = vmax.f32 %v4633, 0.0
        %v4716 = vmax.f32 %v4638, 0.0
        %v4717 = vmax.f32 %v4641, 0.0
        %v4718 = vmax.f32 %v4646, 0.0
        %v4719 = vmax.f32 %v4649, 0.0
        %v4720 = vmax.f32 %v4654, 0.0
        %v4721 = vmax.f32 %v4657, 0.0
        %v4722 = vmax.f32 %v4662, 0.0
        %v4723 = vmax.f32 %v4665, 0.0
        %v4724 = vmax.f32 %v4670, 0.0
        %v4725 = vmax.f32 %v4673, 0.0
        %v4726 = vmax.f32 %v4678, 0.0
        %v4727 = vmax.f32 %v4681, 0.0
        %v4728 = vmax.f32 %v4686, 0.0
        %v4729 = vmax.f32 %v4689, 0.0
        %v4730 = vmax.f32 %v4694, 0.0
        %v4731 = vmax.f32 %v4697, 0.0
        %v4732 = vpack.c.bf16 %v4701, %v4700
        %v4733 = vpack.c.bf16 %v4703, %v4702
        %v4734 = vpack.c.bf16 %v4705, %v4704
        %v4735 = vpack.c.bf16 %v4707, %v4706
        %v4736 = vpack.c.bf16 %v4709, %v4708
        %v4737 = vpack.c.bf16 %v4711, %v4710
        %v4738 = vpack.c.bf16 %v4713, %v4712
        %v4739 = vpack.c.bf16 %v4715, %v4714
        %v4740 = vpack.c.bf16 %v4717, %v4716
        %v4741 = vpack.c.bf16 %v4719, %v4718
        %v4742 = vpack.c.bf16 %v4721, %v4720
        %v4743 = vpack.c.bf16 %v4723, %v4722
        %v4744 = vpack.c.bf16 %v4725, %v4724
        %v4745 = vpack.c.bf16 %v4727, %v4726
        %v4746 = vpack.c.bf16 %v4729, %v4728
        %v4747 = vpack.c.bf16 %v4731, %v4730
        %v4748 = vld [vmem:[%s5] sm:$0xf]
        %v4749 = vld [vmem:[%s5 + $0x4] sm:$0xf]
        %v4750 = vld [vmem:[%s5 + $0x8] sm:$0xf]
        %v4751 = vld [vmem:[%s5 + $0xc] sm:$0xf]
        %v4752 = vld [vmem:[%s5 + $0x10] sm:$0xf]
        %v4753 = vld [vmem:[%s5 + $0x14] sm:$0xf]
        %v4754 = vld [vmem:[%s5 + $0x18] sm:$0xf]
        %v4755 = vld [vmem:[%s5 + $0x1c] sm:$0xf]
        %v4756 = vld [vmem:[%s5 + $0x20] sm:$0xf]
        %v4757 = vld [vmem:[%s5 + $0x24] sm:$0xf]
        %v4758 = vld [vmem:[%s5 + $0x28] sm:$0xf]
        %v4759 = vld [vmem:[%s5 + $0x2c] sm:$0xf]
        %v4760 = vld [vmem:[%s5 + $0x30] sm:$0xf]
        %v4761 = vld [vmem:[%s5 + $0x34] sm:$0xf]
        %v4762 = vld [vmem:[%s5 + $0x38] sm:$0xf]
        %v4763 = vld [vmem:[%s5 + $0x3c] sm:$0xf]
        %v4764 = vld [vmem:[#allocation11] sm:$0x1]
        %v4766 = vlaneseq
        %v4767 = vshrl.u32 %v4766, 7
        %v4768 = vsub.s32 0, %v4767
        %v4769 = vrot.slane %v4764, %v4768
        %v4787 = vunpack.c.l.b16 %v4748
        %v4788 = vunpack.c.l.b16 %v4749
        %v4789 = vunpack.c.l.b16 %v4750
        %v4790 = vunpack.c.l.b16 %v4751
        %v4791 = vunpack.c.l.b16 %v4752
        %v4792 = vunpack.c.l.b16 %v4753
        %v4793 = vunpack.c.l.b16 %v4754
        %v4794 = vunpack.c.l.b16 %v4755
        %v4795 = vunpack.c.l.b16 %v4756
        %v4796 = vunpack.c.l.b16 %v4757
        %v4797 = vunpack.c.l.b16 %v4758
        %v4798 = vunpack.c.l.b16 %v4759
        %v4799 = vunpack.c.l.b16 %v4760
        %v4800 = vunpack.c.l.b16 %v4761
        %v4801 = vunpack.c.l.b16 %v4762
        %v4802 = vunpack.c.l.b16 %v4763
        %v4803 = vpack.c.b16 %v4788, %v4787
        %v4804 = vpack.c.b16 %v4790, %v4789
        %v4805 = vpack.c.b16 %v4792, %v4791
        %v4806 = vpack.c.b16 %v4794, %v4793
        %v4807 = vpack.c.b16 %v4796, %v4795
        %v4808 = vpack.c.b16 %v4798, %v4797
        %v4809 = vpack.c.b16 %v4800, %v4799
        %v4810 = vpack.c.b16 %v4802, %v4801
        %4819 = vmatprep.subr.bf16.mxu0 0
        %4820 = vmatpush1.bf16.msra.mxu0 %v4803
        %4821 = vmatprep.subr.bf16.mxu0 0
        %4822 = vmatpush1.bf16.msra.mxu0 %v4804
        %4823 = vmatprep.subr.bf16.mxu0 0
        %4824 = vmatpush1.bf16.msra.mxu0 %v4805
        %4825 = vmatprep.subr.bf16.mxu0 0
        %4826 = vmatpush1.bf16.msra.mxu0 %v4806
        %4827 = vmatprep.subr.bf16.mxu0 0
        %4828 = vmatpush1.bf16.msra.mxu0 %v4807
        %4829 = vmatprep.subr.bf16.mxu0 0
        %4830 = vmatpush1.bf16.msra.mxu0 %v4808
        %4831 = vmatprep.subr.bf16.mxu0 0
        %4832 = vmatpush1.bf16.msra.mxu0 %v4809
        %4833 = vmatprep.subr.bf16.mxu0 0
        %4834 = vmatpush1.bf16.msra.mxu0 %v4810
        %4835 = vmatprep.subr.bf16.mxu0 0
        %4836 = vmatpush1.bf16.msra.mxu0 0
        %4837 = vmatprep.subr.bf16.mxu0 0
        %4838 = vmatpush1.bf16.msra.mxu0 0
        %4839 = vmatprep.subr.bf16.mxu0 0
        %4840 = vmatpush1.bf16.msra.mxu0 0
        %4841 = vmatprep.subr.bf16.mxu0 0
        %4842 = vmatpush1.bf16.msra.mxu0 0
        %4843 = vmatprep.subr.bf16.mxu0 0
        %4844 = vmatpush1.bf16.msra.mxu0 0
        %4845 = vmatprep.subr.bf16.mxu0 0
        %4846 = vmatpush1.bf16.msra.mxu0 0
        %4847 = vmatprep.subr.bf16.mxu0 0
        %4848 = vmatpush1.bf16.msra.mxu0 0
        %4849 = vmatprep.subr.bf16.mxu0 0
        %4850 = vmatpush1.bf16.msra.mxu0 0
        %4851 = vmatprep.mubr.bf16.mxu0 0
        %4852 = vmatmul.mubr.bf16.gmra.mrb[0].mxu0 %v4732
        %v4853 = vpop.f32.mrb[0].mxu0
        %v4854 = vadd.f32 %v4769, %v4853
        %v4855 = vpop.f32.mrb[0].mxu0
        %v4856 = vpop.f32.mrb[0].mxu0
        %v4857 = vadd.f32 %v4769, %v4856
        %v4858 = vpop.f32.mrb[0].mxu0
        %4859 = vmatprep.mubr.bf16.mxu0 0
        %4860 = vmatmul.mubr.bf16.gmra.mrb[0].mxu0 %v4733
        %v4861 = vpop.f32.mrb[0].mxu0
        %v4862 = vadd.f32 %v4769, %v4861
        %v4863 = vpop.f32.mrb[0].mxu0
        %v4864 = vpop.f32.mrb[0].mxu0
        %v4865 = vadd.f32 %v4769, %v4864
        %v4866 = vpop.f32.mrb[0].mxu0
        %4867 = vmatprep.mubr.bf16.mxu0 0
        %4868 = vmatmul.mubr.bf16.gmra.mrb[0].mxu0 %v4734
        %v4869 = vpop.f32.mrb[0].mxu0
        %v4870 = vadd.f32 %v4769, %v4869
        %v4871 = vpop.f32.mrb[0].mxu0
        %v4872 = vpop.f32.mrb[0].mxu0
        %v4873 = vadd.f32 %v4769, %v4872
        %v4874 = vpop.f32.mrb[0].mxu0
        %4875 = vmatprep.mubr.bf16.mxu0 0
        %4876 = vmatmul.mubr.bf16.gmra.mrb[0].mxu0 %v4735
        %v4877 = vpop.f32.mrb[0].mxu0
        %v4878 = vadd.f32 %v4769, %v4877
        %v4879 = vpop.f32.mrb[0].mxu0
        %v4880 = vpop.f32.mrb[0].mxu0
        %v4881 = vadd.f32 %v4769, %v4880
        %v4882 = vpop.f32.mrb[0].mxu0
        %4883 = vmatprep.mubr.bf16.mxu0 0
        %4884 = vmatmul.mubr.bf16.gmra.mrb[0].mxu0 %v4736
        %v4885 = vpop.f32.mrb[0].mxu0
        %v4886 = vadd.f32 %v4769, %v4885
        %v4887 = vpop.f32.mrb[0].mxu0
        %v4888 = vpop.f32.mrb[0].mxu0
        %v4889 = vadd.f32 %v4769, %v4888
        %v4890 = vpop.f32.mrb[0].mxu0
        %4891 = vmatprep.mubr.bf16.mxu0 0
        %4892 = vmatmul.mubr.bf16.gmra.mrb[0].mxu0 %v4737
        %v4893 = vpop.f32.mrb[0].mxu0
        %v4894 = vadd.f32 %v4769, %v4893
        %v4895 = vpop.f32.mrb[0].mxu0
        %v4896 = vpop.f32.mrb[0].mxu0
        %v4897 = vadd.f32 %v4769, %v4896
        %v4898 = vpop.f32.mrb[0].mxu0
        %4899 = vmatprep.mubr.bf16.mxu0 0
        %4900 = vmatmul.mubr.bf16.gmra.mrb[0].mxu0 %v4738
        %v4901 = vpop.f32.mrb[0].mxu0
        %v4902 = vadd.f32 %v4769, %v4901
        %v4903 = vpop.f32.mrb[0].mxu0
        %v4904 = vpop.f32.mrb[0].mxu0
        %v4905 = vadd.f32 %v4769, %v4904
        %v4906 = vpop.f32.mrb[0].mxu0
        %4907 = vmatprep.mubr.bf16.mxu0 0
        %4908 = vmatmul.mubr.bf16.gmra.mrb[0].mxu0 %v4739
        %v4909 = vpop.f32.mrb[0].mxu0
        %v4910 = vadd.f32 %v4769, %v4909
        %v4911 = vpop.f32.mrb[0].mxu0
        %v4912 = vpop.f32.mrb[0].mxu0
        %v4913 = vadd.f32 %v4769, %v4912
        %v4914 = vpop.f32.mrb[0].mxu0
        %4915 = vmatprep.mubr.bf16.mxu0 0
        %4916 = vmatmul.mubr.bf16.gmra.mrb[0].mxu0 %v4740
        %v4917 = vpop.f32.mrb[0].mxu0
        %v4918 = vadd.f32 %v4769, %v4917
        %v4919 = vpop.f32.mrb[0].mxu0
        %v4920 = vpop.f32.mrb[0].mxu0
        %v4921 = vadd.f32 %v4769, %v4920
        %v4922 = vpop.f32.mrb[0].mxu0
        %4923 = vmatprep.mubr.bf16.mxu0 0
        %4924 = vmatmul.mubr.bf16.gmra.mrb[0].mxu0 %v4741
        %v4925 = vpop.f32.mrb[0].mxu0
        %v4926 = vadd.f32 %v4769, %v4925
        %v4927 = vpop.f32.mrb[0].mxu0
        %v4928 = vpop.f32.mrb[0].mxu0
        %v4929 = vadd.f32 %v4769, %v4928
        %v4930 = vpop.f32.mrb[0].mxu0
        %4931 = vmatprep.mubr.bf16.mxu0 0
        %4932 = vmatmul.mubr.bf16.gmra.mrb[0].mxu0 %v4742
        %v4933 = vpop.f32.mrb[0].mxu0
        %v4934 = vadd.f32 %v4769, %v4933
        %v4935 = vpop.f32.mrb[0].mxu0
        %v4936 = vpop.f32.mrb[0].mxu0
        %v4937 = vadd.f32 %v4769, %v4936
        %v4938 = vpop.f32.mrb[0].mxu0
        %4939 = vmatprep.mubr.bf16.mxu0 0
        %4940 = vmatmul.mubr.bf16.gmra.mrb[0].mxu0 %v4743
        %v4941 = vpop.f32.mrb[0].mxu0
        %v4942 = vadd.f32 %v4769, %v4941
        %v4943 = vpop.f32.mrb[0].mxu0
        %v4944 = vpop.f32.mrb[0].mxu0
        %v4945 = vadd.f32 %v4769, %v4944
        %v4946 = vpop.f32.mrb[0].mxu0
        %4947 = vmatprep.mubr.bf16.mxu0 0
        %4948 = vmatmul.mubr.bf16.gmra.mrb[0].mxu0 %v4744
        %v4949 = vpop.f32.mrb[0].mxu0
        %v4950 = vadd.f32 %v4769, %v4949
        %v4951 = vpop.f32.mrb[0].mxu0
        %v4952 = vpop.f32.mrb[0].mxu0
        %v4953 = vadd.f32 %v4769, %v4952
        %v4954 = vpop.f32.mrb[0].mxu0
        %4955 = vmatprep.mubr.bf16.mxu0 0
        %4956 = vmatmul.mubr.bf16.gmra.mrb[0].mxu0 %v4745
        %v4957 = vpop.f32.mrb[0].mxu0
        %v4958 = vadd.f32 %v4769, %v4957
        %v4959 = vpop.f32.mrb[0].mxu0
        %v4960 = vpop.f32.mrb[0].mxu0
        %v4961 = vadd.f32 %v4769, %v4960
        %v4962 = vpop.f32.mrb[0].mxu0
        %4963 = vmatprep.mubr.bf16.mxu0 0
        %4964 = vmatmul.mubr.bf16.gmra.mrb[0].mxu0 %v4746
        %v4965 = vpop.f32.mrb[0].mxu0
        %v4966 = vadd.f32 %v4769, %v4965
        %v4967 = vpop.f32.mrb[0].mxu0
        %v4968 = vpop.f32.mrb[0].mxu0
        %v4969 = vadd.f32 %v4769, %v4968
        %v4970 = vpop.f32.mrb[0].mxu0
        %4971 = vmatprep.mubr.bf16.mxu0 0
        %4972 = vmatmul.mubr.bf16.gmra.mrb[0].mxu0 %v4747
        %v4973 = vpop.f32.mrb[0].mxu0
        %v4974 = vadd.f32 %v4769, %v4973
        %v4975 = vpop.f32.mrb[0].mxu0
        %v4976 = vpop.f32.mrb[0].mxu0
        %v4977 = vadd.f32 %v4769, %v4976
        %v4978 = vpop.f32.mrb[0].mxu0
        %4979 = vdwg.mxu0
        %v4980 = vmax.f32 %v4854, 0.0
        %v4981 = vmax.f32 %v4857, 0.0
        %v4982 = vmax.f32 %v4862, 0.0
        %v4983 = vmax.f32 %v4865, 0.0
        %v4984 = vmax.f32 %v4870, 0.0
        %v4985 = vmax.f32 %v4873, 0.0
        %v4986 = vmax.f32 %v4878, 0.0
        %v4987 = vmax.f32 %v4881, 0.0
        %v4988 = vmax.f32 %v4886, 0.0
        %v4989 = vmax.f32 %v4889, 0.0
        %v4990 = vmax.f32 %v4894, 0.0
        %v4991 = vmax.f32 %v4897, 0.0
        %v4992 = vmax.f32 %v4902, 0.0
        %v4993 = vmax.f32 %v4905, 0.0
        %v4994 = vmax.f32 %v4910, 0.0
        %v4995 = vmax.f32 %v4913, 0.0
        %v4996 = vmax.f32 %v4918, 0.0
        %v4997 = vmax.f32 %v4921, 0.0
        %v4998 = vmax.f32 %v4926, 0.0
        %v4999 = vmax.f32 %v4929, 0.0
        %v5000 = vmax.f32 %v4934, 0.0
        %v5001 = vmax.f32 %v4937, 0.0
        %v5002 = vmax.f32 %v4942, 0.0
        %v5003 = vmax.f32 %v4945, 0.0
        %v5004 = vmax.f32 %v4950, 0.0
        %v5005 = vmax.f32 %v4953, 0.0
        %v5006 = vmax.f32 %v4958, 0.0
        %v5007 = vmax.f32 %v4961, 0.0
        %v5008 = vmax.f32 %v4966, 0.0
        %v5009 = vmax.f32 %v4969, 0.0
        %v5010 = vmax.f32 %v4974, 0.0
        %v5011 = vmax.f32 %v4977, 0.0
        %v5012 = vld [vmem:[#allocation13] sm:$0x1]
        %v5014 = vlaneseq
        %v5015 = vshrl.u32 %v5014, 7
        %v5016 = vsub.s32 0, %v5015
        %v5017 = vrot.slane %v5012, %v5016
        %v5019 = vmul.f32 %v4980, %v5017
        %v5020 = vmul.f32 %v4981, %v5017
        %v5021 = vmul.f32 %v4982, %v5017
        %v5022 = vmul.f32 %v4983, %v5017
        %v5023 = vmul.f32 %v4984, %v5017
        %v5024 = vmul.f32 %v4985, %v5017
        %v5025 = vmul.f32 %v4986, %v5017
        %v5026 = vmul.f32 %v4987, %v5017
        %v5027 = vmul.f32 %v4988, %v5017
        %v5028 = vmul.f32 %v4989, %v5017
        %v5029 = vmul.f32 %v4990, %v5017
        %v5030 = vmul.f32 %v4991, %v5017
        %v5031 = vmul.f32 %v4992, %v5017
        %v5032 = vmul.f32 %v4993, %v5017
        %v5033 = vmul.f32 %v4994, %v5017
        %v5034 = vmul.f32 %v4995, %v5017
        %v5035 = vmul.f32 %v4996, %v5017
        %v5036 = vmul.f32 %v4997, %v5017
        %v5037 = vmul.f32 %v4998, %v5017
        %v5038 = vmul.f32 %v4999, %v5017
        %v5039 = vmul.f32 %v5000, %v5017
        %v5040 = vmul.f32 %v5001, %v5017
        %v5041 = vmul.f32 %v5002, %v5017
        %v5042 = vmul.f32 %v5003, %v5017
        %v5043 = vmul.f32 %v5004, %v5017
        %v5044 = vmul.f32 %v5005, %v5017
        %v5045 = vmul.f32 %v5006, %v5017
        %v5046 = vmul.f32 %v5007, %v5017
        %v5047 = vmul.f32 %v5008, %v5017
        %v5048 = vmul.f32 %v5009, %v5017
        %v5049 = vmul.f32 %v5010, %v5017
        %v5050 = vmul.f32 %v5011, %v5017
        %vm5051 = vcmask 261120
        %v5052 = vsel %vm5051, %v5019, 0.0
        %5053 = vadd.xlane.f32.xlu0 %v5052
        %v5054 = vpop.xlane.xlu0 %5053
        %v5055 = vsel %vm5051, %v5020, 0.0
        %5056 = vadd.xlane.f32.xlu0 %v5055
        %v5057 = vpop.xlane.xlu0 %5056
        %v5058 = vsel %vm5051, %v5021, 0.0
        %5059 = vadd.xlane.f32.xlu0 %v5058
        %v5060 = vpop.xlane.xlu0 %5059
        %v5061 = vsel %vm5051, %v5022, 0.0
        %5062 = vadd.xlane.f32.xlu0 %v5061
        %v5063 = vpop.xlane.xlu0 %5062
        %v5064 = vsel %vm5051, %v5023, 0.0
        %5065 = vadd.xlane.f32.xlu0 %v5064
        %v5066 = vpop.xlane.xlu0 %5065
        %v5067 = vsel %vm5051, %v5024, 0.0
        %5068 = vadd.xlane.f32.xlu0 %v5067
        %v5069 = vpop.xlane.xlu0 %5068
        %v5070 = vsel %vm5051, %v5025, 0.0
        %5071 = vadd.xlane.f32.xlu0 %v5070
        %v5072 = vpop.xlane.xlu0 %5071
        %v5073 = vsel %vm5051, %v5026, 0.0
        %5074 = vadd.xlane.f32.xlu0 %v5073
        %v5075 = vpop.xlane.xlu0 %5074
        %v5076 = vsel %vm5051, %v5027, 0.0
        %5077 = vadd.xlane.f32.xlu0 %v5076
        %v5078 = vpop.xlane.xlu0 %5077
        %v5079 = vsel %vm5051, %v5028, 0.0
        %5080 = vadd.xlane.f32.xlu0 %v5079
        %v5081 = vpop.xlane.xlu0 %5080
        %v5082 = vsel %vm5051, %v5029, 0.0
        %5083 = vadd.xlane.f32.xlu0 %v5082
        %v5084 = vpop.xlane.xlu0 %5083
        %v5085 = vsel %vm5051, %v5030, 0.0
        %5086 = vadd.xlane.f32.xlu0 %v5085
        %v5087 = vpop.xlane.xlu0 %5086
        %v5088 = vsel %vm5051, %v5031, 0.0
        %5089 = vadd.xlane.f32.xlu0 %v5088
        %v5090 = vpop.xlane.xlu0 %5089
        %v5091 = vsel %vm5051, %v5032, 0.0
        %5092 = vadd.xlane.f32.xlu0 %v5091
        %v5093 = vpop.xlane.xlu0 %5092
        %v5094 = vsel %vm5051, %v5033, 0.0
        %5095 = vadd.xlane.f32.xlu0 %v5094
        %v5096 = vpop.xlane.xlu0 %5095
        %v5097 = vsel %vm5051, %v5034, 0.0
        %5098 = vadd.xlane.f32.xlu0 %v5097
        %v5099 = vpop.xlane.xlu0 %5098
        %v5100 = vsel %vm5051, %v5035, 0.0
        %5101 = vadd.xlane.f32.xlu0 %v5100
        %v5102 = vpop.xlane.xlu0 %5101
        %v5103 = vsel %vm5051, %v5036, 0.0
        %5104 = vadd.xlane.f32.xlu0 %v5103
        %v5105 = vpop.xlane.xlu0 %5104
        %v5106 = vsel %vm5051, %v5037, 0.0
        %5107 = vadd.xlane.f32.xlu0 %v5106
        %v5108 = vpop.xlane.xlu0 %5107
        %v5109 = vsel %vm5051, %v5038, 0.0
        %5110 = vadd.xlane.f32.xlu0 %v5109
        %v5111 = vpop.xlane.xlu0 %5110
        %v5112 = vsel %vm5051, %v5039, 0.0
        %5113 = vadd.xlane.f32.xlu0 %v5112
        %v5114 = vpop.xlane.xlu0 %5113
        %v5115 = vsel %vm5051, %v5040, 0.0
        %5116 = vadd.xlane.f32.xlu0 %v5115
        %v5117 = vpop.xlane.xlu0 %5116
        %v5118 = vsel %vm5051, %v5041, 0.0
        %5119 = vadd.xlane.f32.xlu0 %v5118
        %v5120 = vpop.xlane.xlu0 %5119
        %v5121 = vsel %vm5051, %v5042, 0.0
        %5122 = vadd.xlane.f32.xlu0 %v5121
        %v5123 = vpop.xlane.xlu0 %5122
        %v5124 = vsel %vm5051, %v5043, 0.0
        %5125 = vadd.xlane.f32.xlu0 %v5124
        %v5126 = vpop.xlane.xlu0 %5125
        %v5127 = vsel %vm5051, %v5044, 0.0
        %5128 = vadd.xlane.f32.xlu0 %v5127
        %v5129 = vpop.xlane.xlu0 %5128
        %v5130 = vsel %vm5051, %v5045, 0.0
        %5131 = vadd.xlane.f32.xlu0 %v5130
        %v5132 = vpop.xlane.xlu0 %5131
        %v5133 = vsel %vm5051, %v5046, 0.0
        %5134 = vadd.xlane.f32.xlu0 %v5133
        %v5135 = vpop.xlane.xlu0 %5134
        %v5136 = vsel %vm5051, %v5047, 0.0
        %5137 = vadd.xlane.f32.xlu0 %v5136
        %v5138 = vpop.xlane.xlu0 %5137
        %v5139 = vsel %vm5051, %v5048, 0.0
        %5140 = vadd.xlane.f32.xlu0 %v5139
        %v5141 = vpop.xlane.xlu0 %5140
        %v5142 = vsel %vm5051, %v5049, 0.0
        %5143 = vadd.xlane.f32.xlu0 %v5142
        %v5144 = vpop.xlane.xlu0 %5143
        %v5145 = vsel %vm5051, %v5050, 0.0
        %5146 = vadd.xlane.f32.xlu0 %v5145
        %v5147 = vpop.xlane.xlu0 %5146
        %v5148 = vld [vmem:[#allocation2] sm:$0x1]
        %v5150 = vlaneseq
        %v5151 = vshrl.u32 %v5150, 7
        %v5152 = vsub.s32 0, %v5151
        %v5153 = vrot.slane %v5148, %v5152
        %v5155 = vadd.f32 %v5054, %v5153
        %v5156 = vadd.f32 %v5057, %v5153
        %v5157 = vadd.f32 %v5060, %v5153
        %v5158 = vadd.f32 %v5063, %v5153
        %v5159 = vadd.f32 %v5066, %v5153
        %v5160 = vadd.f32 %v5069, %v5153
        %v5161 = vadd.f32 %v5072, %v5153
        %v5162 = vadd.f32 %v5075, %v5153
        %v5163 = vadd.f32 %v5078, %v5153
        %v5164 = vadd.f32 %v5081, %v5153
        %v5165 = vadd.f32 %v5084, %v5153
        %v5166 = vadd.f32 %v5087, %v5153
        %v5167 = vadd.f32 %v5090, %v5153
        %v5168 = vadd.f32 %v5093, %v5153
        %v5169 = vadd.f32 %v5096, %v5153
        %v5170 = vadd.f32 %v5099, %v5153
        %v5171 = vadd.f32 %v5102, %v5153
        %v5172 = vadd.f32 %v5105, %v5153
        %v5173 = vadd.f32 %v5108, %v5153
        %v5174 = vadd.f32 %v5111, %v5153
        %v5175 = vadd.f32 %v5114, %v5153
        %v5176 = vadd.f32 %v5117, %v5153
        %v5177 = vadd.f32 %v5120, %v5153
        %v5178 = vadd.f32 %v5123, %v5153
        %v5179 = vadd.f32 %v5126, %v5153
        %v5180 = vadd.f32 %v5129, %v5153
        %v5181 = vadd.f32 %v5132, %v5153
        %v5182 = vadd.f32 %v5135, %v5153
        %v5183 = vadd.f32 %v5138, %v5153
        %v5184 = vadd.f32 %v5141, %v5153
        %v5185 = vadd.f32 %v5144, %v5153
        %v5186 = vadd.f32 %v5147, %v5153
        %v5187 = vxor.u32 %v5155, 2147483648
        %v5188 = vxor.u32 %v5156, 2147483648
        %v5189 = vxor.u32 %v5157, 2147483648
        %v5190 = vxor.u32 %v5158, 2147483648
        %v5191 = vxor.u32 %v5159, 2147483648
        %v5192 = vxor.u32 %v5160, 2147483648
        %v5193 = vxor.u32 %v5161, 2147483648
        %v5194 = vxor.u32 %v5162, 2147483648
        %v5195 = vxor.u32 %v5163, 2147483648
        %v5196 = vxor.u32 %v5164, 2147483648
        %v5197 = vxor.u32 %v5165, 2147483648
        %v5198 = vxor.u32 %v5166, 2147483648
        %v5199 = vxor.u32 %v5167, 2147483648
        %v5200 = vxor.u32 %v5168, 2147483648
        %v5201 = vxor.u32 %v5169, 2147483648
        %v5202 = vxor.u32 %v5170, 2147483648
        %v5203 = vxor.u32 %v5171, 2147483648
        %v5204 = vxor.u32 %v5172, 2147483648
        %v5205 = vxor.u32 %v5173, 2147483648
        %v5206 = vxor.u32 %v5174, 2147483648
        %v5207 = vxor.u32 %v5175, 2147483648
        %v5208 = vxor.u32 %v5176, 2147483648
        %v5209 = vxor.u32 %v5177, 2147483648
        %v5210 = vxor.u32 %v5178, 2147483648
        %v5211 = vxor.u32 %v5179, 2147483648
        %v5212 = vxor.u32 %v5180, 2147483648
        %v5213 = vxor.u32 %v5181, 2147483648
        %v5214 = vxor.u32 %v5182, 2147483648
        %v5215 = vxor.u32 %v5183, 2147483648
        %v5216 = vxor.u32 %v5184, 2147483648
        %v5217 = vxor.u32 %v5185, 2147483648
        %v5218 = vxor.u32 %v5186, 2147483648
        %v5219 = vmul.f32 %v5187, 1.442695
        %v5220 = vpow.pop %v5219
        %v5221 = vmul.f32 %v5188, 1.442695
        %v5222 = vpow.pop %v5221
        %v5223 = vmul.f32 %v5189, 1.442695
        %v5224 = vpow.pop %v5223
        %v5225 = vmul.f32 %v5190, 1.442695
        %v5226 = vpow.pop %v5225
        %v5227 = vmul.f32 %v5191, 1.442695
        %v5228 = vpow.pop %v5227
        %v5229 = vmul.f32 %v5192, 1.442695
        %v5230 = vpow.pop %v5229
        %v5231 = vmul.f32 %v5193, 1.442695
        %v5232 = vpow.pop %v5231
        %v5233 = vmul.f32 %v5194, 1.442695
        %v5234 = vpow.pop %v5233
        %v5235 = vmul.f32 %v5195, 1.442695
        %v5236 = vpow.pop %v5235
        %v5237 = vmul.f32 %v5196, 1.442695
        %v5238 = vpow.pop %v5237
        %v5239 = vmul.f32 %v5197, 1.442695
        %v5240 = vpow.pop %v5239
        %v5241 = vmul.f32 %v5198, 1.442695
        %v5242 = vpow.pop %v5241
        %v5243 = vmul.f32 %v5199, 1.442695
        %v5244 = vpow.pop %v5243
        %v5245 = vmul.f32 %v5200, 1.442695
        %v5246 = vpow.pop %v5245
        %v5247 = vmul.f32 %v5201, 1.442695
        %v5248 = vpow.pop %v5247
        %v5249 = vmul.f32 %v5202, 1.442695
        %v5250 = vpow.pop %v5249
        %v5251 = vmul.f32 %v5203, 1.442695
        %v5252 = vpow.pop %v5251
        %v5253 = vmul.f32 %v5204, 1.442695
        %v5254 = vpow.pop %v5253
        %v5255 = vmul.f32 %v5205, 1.442695
        %v5256 = vpow.pop %v5255
        %v5257 = vmul.f32 %v5206, 1.442695
        %v5258 = vpow.pop %v5257
        %v5259 = vmul.f32 %v5207, 1.442695
        %v5260 = vpow.pop %v5259
        %v5261 = vmul.f32 %v5208, 1.442695
        %v5262 = vpow.pop %v5261
        %v5263 = vmul.f32 %v5209, 1.442695
        %v5264 = vpow.pop %v5263
        %v5265 = vmul.f32 %v5210, 1.442695
        %v5266 = vpow.pop %v5265
        %v5267 = vmul.f32 %v5211, 1.442695
        %v5268 = vpow.pop %v5267
        %v5269 = vmul.f32 %v5212, 1.442695
        %v5270 = vpow.pop %v5269
        %v5271 = vmul.f32 %v5213, 1.442695
        %v5272 = vpow.pop %v5271
        %v5273 = vmul.f32 %v5214, 1.442695
        %v5274 = vpow.pop %v5273
        %v5275 = vmul.f32 %v5215, 1.442695
        %v5276 = vpow.pop %v5275
        %v5277 = vmul.f32 %v5216, 1.442695
        %v5278 = vpow.pop %v5277
        %v5279 = vmul.f32 %v5217, 1.442695
        %v5280 = vpow.pop %v5279
        %v5281 = vmul.f32 %v5218, 1.442695
        %v5282 = vpow.pop %v5281
        %v5283 = vadd.f32 %v5220, 1.0
        %v5284 = vadd.f32 %v5222, 1.0
        %v5285 = vadd.f32 %v5224, 1.0
        %v5286 = vadd.f32 %v5226, 1.0
        %v5287 = vadd.f32 %v5228, 1.0
        %v5288 = vadd.f32 %v5230, 1.0
        %v5289 = vadd.f32 %v5232, 1.0
        %v5290 = vadd.f32 %v5234, 1.0
        %v5291 = vadd.f32 %v5236, 1.0
        %v5292 = vadd.f32 %v5238, 1.0
        %v5293 = vadd.f32 %v5240, 1.0
        %v5294 = vadd.f32 %v5242, 1.0
        %v5295 = vadd.f32 %v5244, 1.0
        %v5296 = vadd.f32 %v5246, 1.0
        %v5297 = vadd.f32 %v5248, 1.0
        %v5298 = vadd.f32 %v5250, 1.0
        %v5299 = vadd.f32 %v5252, 1.0
        %v5300 = vadd.f32 %v5254, 1.0
        %v5301 = vadd.f32 %v5256, 1.0
        %v5302 = vadd.f32 %v5258, 1.0
        %v5303 = vadd.f32 %v5260, 1.0
        %v5304 = vadd.f32 %v5262, 1.0
        %v5305 = vadd.f32 %v5264, 1.0
        %v5306 = vadd.f32 %v5266, 1.0
        %v5307 = vadd.f32 %v5268, 1.0
        %v5308 = vadd.f32 %v5270, 1.0
        %v5309 = vadd.f32 %v5272, 1.0
        %v5310 = vadd.f32 %v5274, 1.0
        %v5311 = vadd.f32 %v5276, 1.0
        %v5312 = vadd.f32 %v5278, 1.0
        %v5313 = vadd.f32 %v5280, 1.0
        %v5314 = vadd.f32 %v5282, 1.0
        %v5315 = vrcp.pop %v5283
        %v5316 = vmul.f32 1.0, %v5315
        %v5317 = vrcp.pop %v5284
        %v5318 = vmul.f32 1.0, %v5317
        %v5319 = vrcp.pop %v5285
        %v5320 = vmul.f32 1.0, %v5319
        %v5321 = vrcp.pop %v5286
        %v5322 = vmul.f32 1.0, %v5321
        %v5323 = vrcp.pop %v5287
        %v5324 = vmul.f32 1.0, %v5323
        %v5325 = vrcp.pop %v5288
        %v5326 = vmul.f32 1.0, %v5325
        %v5327 = vrcp.pop %v5289
        %v5328 = vmul.f32 1.0, %v5327
        %v5329 = vrcp.pop %v5290
        %v5330 = vmul.f32 1.0, %v5329
        %v5331 = vrcp.pop %v5291
        %v5332 = vmul.f32 1.0, %v5331
        %v5333 = vrcp.pop %v5292
        %v5334 = vmul.f32 1.0, %v5333
        %v5335 = vrcp.pop %v5293
        %v5336 = vmul.f32 1.0, %v5335
        %v5337 = vrcp.pop %v5294
        %v5338 = vmul.f32 1.0, %v5337
        %v5339 = vrcp.pop %v5295
        %v5340 = vmul.f32 1.0, %v5339
        %v5341 = vrcp.pop %v5296
        %v5342 = vmul.f32 1.0, %v5341
        %v5343 = vrcp.pop %v5297
        %v5344 = vmul.f32 1.0, %v5343
        %v5345 = vrcp.pop %v5298
        %v5346 = vmul.f32 1.0, %v5345
        %v5347 = vrcp.pop %v5299
        %v5348 = vmul.f32 1.0, %v5347
        %v5349 = vrcp.pop %v5300
        %v5350 = vmul.f32 1.0, %v5349
        %v5351 = vrcp.pop %v5301
        %v5352 = vmul.f32 1.0, %v5351
        %v5353 = vrcp.pop %v5302
        %v5354 = vmul.f32 1.0, %v5353
        %v5355 = vrcp.pop %v5303
        %v5356 = vmul.f32 1.0, %v5355
        %v5357 = vrcp.pop %v5304
        %v5358 = vmul.f32 1.0, %v5357
        %v5359 = vrcp.pop %v5305
        %v5360 = vmul.f32 1.0, %v5359
        %v5361 = vrcp.pop %v5306
        %v5362 = vmul.f32 1.0, %v5361
        %v5363 = vrcp.pop %v5307
        %v5364 = vmul.f32 1.0, %v5363
        %v5365 = vrcp.pop %v5308
        %v5366 = vmul.f32 1.0, %v5365
        %v5367 = vrcp.pop %v5309
        %v5368 = vmul.f32 1.0, %v5367
        %v5369 = vrcp.pop %v5310
        %v5370 = vmul.f32 1.0, %v5369
        %v5371 = vrcp.pop %v5311
        %v5372 = vmul.f32 1.0, %v5371
        %v5373 = vrcp.pop %v5312
        %v5374 = vmul.f32 1.0, %v5373
        %v5375 = vrcp.pop %v5313
        %v5376 = vmul.f32 1.0, %v5375
        %v5377 = vrcp.pop %v5314
        %v5378 = vmul.f32 1.0, %v5377
        %vm5379 = vcmask 7168
        %5380 = vst.msk [vmem:[%s435] sm:$0xff] %vm5379, %v5316
        %5381 = vst.msk [vmem:[%s435 + $0x8] sm:$0xff] %vm5379, %v5318
        %5382 = vst.msk [vmem:[%s435 + $0x10] sm:$0xff] %vm5379, %v5320
        %5383 = vst.msk [vmem:[%s435 + $0x18] sm:$0xff] %vm5379, %v5322
        %5384 = vst.msk [vmem:[%s435 + $0x20] sm:$0xff] %vm5379, %v5324
        %5385 = vst.msk [vmem:[%s435 + $0x28] sm:$0xff] %vm5379, %v5326
        %5386 = vst.msk [vmem:[%s435 + $0x30] sm:$0xff] %vm5379, %v5328
        %5387 = vst.msk [vmem:[%s435 + $0x38] sm:$0xff] %vm5379, %v5330
        %5388 = vst.msk [vmem:[%s435 + $0x40] sm:$0xff] %vm5379, %v5332
        %5389 = vst.msk [vmem:[%s435 + $0x48] sm:$0xff] %vm5379, %v5334
        %5390 = vst.msk [vmem:[%s435 + $0x50] sm:$0xff] %vm5379, %v5336
        %5391 = vst.msk [vmem:[%s435 + $0x58] sm:$0xff] %vm5379, %v5338
        %5392 = vst.msk [vmem:[%s435 + $0x60] sm:$0xff] %vm5379, %v5340
        %5393 = vst.msk [vmem:[%s435 + $0x68] sm:$0xff] %vm5379, %v5342
        %5394 = vst.msk [vmem:[%s435 + $0x70] sm:$0xff] %vm5379, %v5344
        %5395 = vst.msk [vmem:[%s435 + $0x78] sm:$0xff] %vm5379, %v5346
        %5396 = vst.msk [vmem:[%s435 + $0x80] sm:$0xff] %vm5379, %v5348
        %5397 = vst.msk [vmem:[%s435 + $0x88] sm:$0xff] %vm5379, %v5350
        %5398 = vst.msk [vmem:[%s435 + $0x90] sm:$0xff] %vm5379, %v5352
        %5399 = vst.msk [vmem:[%s435 + $0x98] sm:$0xff] %vm5379, %v5354
        %5400 = vst.msk [vmem:[%s435 + $0xa0] sm:$0xff] %vm5379, %v5356
        %5401 = vst.msk [vmem:[%s435 + $0xa8] sm:$0xff] %vm5379, %v5358
        %5402 = vst.msk [vmem:[%s435 + $0xb0] sm:$0xff] %vm5379, %v5360
        %5403 = vst.msk [vmem:[%s435 + $0xb8] sm:$0xff] %vm5379, %v5362
        %5404 = vst.msk [vmem:[%s435 + $0xc0] sm:$0xff] %vm5379, %v5364
        %5405 = vst.msk [vmem:[%s435 + $0xc8] sm:$0xff] %vm5379, %v5366
        %5406 = vst.msk [vmem:[%s435 + $0xd0] sm:$0xff] %vm5379, %v5368
        %5407 = vst.msk [vmem:[%s435 + $0xd8] sm:$0xff] %vm5379, %v5370
        %5408 = vst.msk [vmem:[%s435 + $0xe0] sm:$0xff] %vm5379, %v5372
        %5409 = vst.msk [vmem:[%s435 + $0xe8] sm:$0xff] %vm5379, %v5374
        %5410 = vst.msk [vmem:[%s435 + $0xf0] sm:$0xff] %vm5379, %v5376
        %5411 = vst.msk [vmem:[%s435 + $0xf8] sm:$0xff] %vm5379, %v5378
        %s5412 = sand.u32 %s230, 1
        %s5413 = sand.u32 %s230, 1
        %s5414 = smul.addr %s5413, 256
        %s5415 = scalar_lea.vmem [#allocation14], %s5414
        // Predicated region
        $region85: #{mlp_forward.1} parent=55 // pred_check
          %p5416 = pneg %p240
        $region86: #{mlp_forward.1} parent=55 // pred_check_branch
          %5418 = sbr.rel (%p5416) target = $region88
        $region87: #{mlp_forward.1} parent=55 // pred_region
          %s5419 = smul.u32 32, %s28
          %s5420 = ssub.s32 48, %s5419
          %p5421 = scmp.lt.s32.totalorder %s5420, 32
          %s5422 = scalar_select %p5421, %s5420, 32
          %s5423 = smul.u32 128, %s5422
          %p5424 = scmp.ne.s32.totalorder 0, %s5423
          %s5425 = smul.addr %s5419, 8
          %s5426 = scalar_lea.vmem %s9, %s5425
          // Predicated region
          $region89: #{mlp_forward.1} parent=87 // pred_check
            %p5427 = pneg %p5424
          $region90: #{mlp_forward.1} parent=87 // pred_check_branch
            %5429 = sbr.rel (%p5427) target = $region92
          $region91: #{mlp_forward.1} parent=87 // pred_region
            // Predicated region
            $region93: #{mlp_forward.1} parent=91 // pred_check
              _
            $region94: #{mlp_forward.1} parent=91 // pred_check_branch
              %5431 = sbr.rel (0) target = $region96
            $region95: #{mlp_forward.1} parent=91 // pred_region
              // Predicated region
              $region115: #{mlp_forward.1} parent=95 // pred_check
                _
              $region116: #{mlp_forward.1} parent=95 // pred_check_branch
                %5542 = sbr.rel (0) target = $region118
              $region117: #{mlp_forward.1} parent=95 // pred_region
                %s5543 = sshrl.u32 %s5422, 5
                // While loop
                $region119: #{mlp_forward.1} parent=117 // loop_pre_header
                  _
                $region120: #{mlp_forward.1} parent=117 // loop_header
                  %s5545 = sphi 0, %s5547
                  %p5546 = scmp.ge.s32.totalorder %s5545, %s5543
                  %s5550 = sphi 0, %s5619
                  %s5551 = sphi %s5415, %s5622
                  %s5552 = sphi %s5426, %s5623
                $region121: #{mlp_forward.1} parent=117 // loop_header_branch
                  %5549 = sbr.rel (%p5546) target = $region125
                $region122: #{mlp_forward.1} parent=117 // loop_body
                  %v5553 = vld [vmem:[%s5551] sm:$0xff]
                  %5554 = vst [vmem:[%s5552] sm:$0xff] %v5553
                  %v5555 = vld [vmem:[%s5551 + $0x8] sm:$0xff]
                  %5556 = vst [vmem:[%s5552 + $0x8] sm:$0xff] %v5555
                  %v5557 = vld [vmem:[%s5551 + $0x10] sm:$0xff]
                  %5558 = vst [vmem:[%s5552 + $0x10] sm:$0xff] %v5557
                  %v5559 = vld [vmem:[%s5551 + $0x18] sm:$0xff]
                  %5560 = vst [vmem:[%s5552 + $0x18] sm:$0xff] %v5559
                  %v5561 = vld [vmem:[%s5551 + $0x20] sm:$0xff]
                  %5562 = vst [vmem:[%s5552 + $0x20] sm:$0xff] %v5561
                  %v5563 = vld [vmem:[%s5551 + $0x28] sm:$0xff]
                  %5564 = vst [vmem:[%s5552 + $0x28] sm:$0xff] %v5563
                  %v5565 = vld [vmem:[%s5551 + $0x30] sm:$0xff]
                  %5566 = vst [vmem:[%s5552 + $0x30] sm:$0xff] %v5565
                  %v5567 = vld [vmem:[%s5551 + $0x38] sm:$0xff]
                  %5568 = vst [vmem:[%s5552 + $0x38] sm:$0xff] %v5567
                  %v5569 = vld [vmem:[%s5551 + $0x40] sm:$0xff]
                  %5570 = vst [vmem:[%s5552 + $0x40] sm:$0xff] %v5569
                  %v5571 = vld [vmem:[%s5551 + $0x48] sm:$0xff]
                  %5572 = vst [vmem:[%s5552 + $0x48] sm:$0xff] %v5571
                  %v5573 = vld [vmem:[%s5551 + $0x50] sm:$0xff]
                  %5574 = vst [vmem:[%s5552 + $0x50] sm:$0xff] %v5573
                  %v5575 = vld [vmem:[%s5551 + $0x58] sm:$0xff]
                  %5576 = vst [vmem:[%s5552 + $0x58] sm:$0xff] %v5575
                  %v5577 = vld [vmem:[%s5551 + $0x60] sm:$0xff]
                  %5578 = vst [vmem:[%s5552 + $0x60] sm:$0xff] %v5577
                  %v5579 = vld [vmem:[%s5551 + $0x68] sm:$0xff]
                  %5580 = vst [vmem:[%s5552 + $0x68] sm:$0xff] %v5579
                  %v5581 = vld [vmem:[%s5551 + $0x70] sm:$0xff]
                  %5582 = vst [vmem:[%s5552 + $0x70] sm:$0xff] %v5581
                  %v5583 = vld [vmem:[%s5551 + $0x78] sm:$0xff]
                  %5584 = vst [vmem:[%s5552 + $0x78] sm:$0xff] %v5583
                  %v5585 = vld [vmem:[%s5551 + $0x80] sm:$0xff]
                  %5586 = vst [vmem:[%s5552 + $0x80] sm:$0xff] %v5585
                  %v5587 = vld [vmem:[%s5551 + $0x88] sm:$0xff]
                  %5588 = vst [vmem:[%s5552 + $0x88] sm:$0xff] %v5587
                  %v5589 = vld [vmem:[%s5551 + $0x90] sm:$0xff]
                  %5590 = vst [vmem:[%s5552 + $0x90] sm:$0xff] %v5589
                  %v5591 = vld [vmem:[%s5551 + $0x98] sm:$0xff]
                  %5592 = vst [vmem:[%s5552 + $0x98] sm:$0xff] %v5591
                  %v5593 = vld [vmem:[%s5551 + $0xa0] sm:$0xff]
                  %5594 = vst [vmem:[%s5552 + $0xa0] sm:$0xff] %v5593
                  %v5595 = vld [vmem:[%s5551 + $0xa8] sm:$0xff]
                  %5596 = vst [vmem:[%s5552 + $0xa8] sm:$0xff] %v5595
                  %v5597 = vld [vmem:[%s5551 + $0xb0] sm:$0xff]
                  %5598 = vst [vmem:[%s5552 + $0xb0] sm:$0xff] %v5597
                  %v5599 = vld [vmem:[%s5551 + $0xb8] sm:$0xff]
                  %5600 = vst [vmem:[%s5552 + $0xb8] sm:$0xff] %v5599
                  %v5601 = vld [vmem:[%s5551 + $0xc0] sm:$0xff]
                  %5602 = vst [vmem:[%s5552 + $0xc0] sm:$0xff] %v5601
                  %v5603 = vld [vmem:[%s5551 + $0xc8] sm:$0xff]
                  %5604 = vst [vmem:[%s5552 + $0xc8] sm:$0xff] %v5603
                  %v5605 = vld [vmem:[%s5551 + $0xd0] sm:$0xff]
                  %5606 = vst [vmem:[%s5552 + $0xd0] sm:$0xff] %v5605
                  %v5607 = vld [vmem:[%s5551 + $0xd8] sm:$0xff]
                  %5608 = vst [vmem:[%s5552 + $0xd8] sm:$0xff] %v5607
                  %v5609 = vld [vmem:[%s5551 + $0xe0] sm:$0xff]
                  %5610 = vst [vmem:[%s5552 + $0xe0] sm:$0xff] %v5609
                  %v5611 = vld [vmem:[%s5551 + $0xe8] sm:$0xff]
                  %5612 = vst [vmem:[%s5552 + $0xe8] sm:$0xff] %v5611
                  %v5613 = vld [vmem:[%s5551 + $0xf0] sm:$0xff]
                  %5614 = vst [vmem:[%s5552 + $0xf0] sm:$0xff] %v5613
                  %v5615 = vld [vmem:[%s5551 + $0xf8] sm:$0xff]
                  %5616 = vst [vmem:[%s5552 + $0xf8] sm:$0xff] %v5615
                  %s5617 = sadd.s32 1, %s5550
                  %p5618 = scmp.ge.s32.totalorder %s5617, %s5543
                  %s5619 = scalar_select %p5618, 0, %s5617
                  %s5620 = smul.u32 %s5619, 256
                  %s5621 = smul.u32 %s5619, 256
                  %s5622 = scalar_lea.vmem %s5415, %s5620 [#allocation14]
                  %s5623 = scalar_lea.vmem %s5426, %s5621
                $region123: #{mlp_forward.1} parent=117 // loop_footer
                  %s5547 = sadd.s32 %s5545, 1
                $region124: #{mlp_forward.1} parent=117 // loop_footer_branch
                  %5544 = sbr.rel target = $region120
                $region125: #{mlp_forward.1} parent=117 // loop_exit
                  _
                %s5624 = sshrl.u32 %s5422, 5
                %s5625 = sand.u32 %s5422, 31
                %s5626 = smul.u32 %s5624, 32
                %s5627 = smul.u32 8, %s5626
                %s5628 = scalar_lea.vmem %s5415, %s5627 [#allocation14]
                %s5629 = smul.u32 8, %s5626
                %s5630 = scalar_lea.vmem %s5426, %s5629
                // While loop
                $region126: #{mlp_forward.1} parent=117 // loop_pre_header
                  _
                $region127: #{mlp_forward.1} parent=117 // loop_header
                  %s5632 = sphi 0, %s5634
                  %p5633 = scmp.ge.s32.totalorder %s5632, %s5625
                  %s5637 = sphi 0, %s5644
                  %s5638 = sphi %s5628, %s5647
                  %s5639 = sphi %s5630, %s5648
                $region128: #{mlp_forward.1} parent=117 // loop_header_branch
                  %5636 = sbr.rel (%p5633) target = $region132
                $region129: #{mlp_forward.1} parent=117 // loop_body
                  %v5640 = vld [vmem:[%s5638] sm:$0xff]
                  %5641 = vst [vmem:[%s5639] sm:$0xff] %v5640
                  %s5642 = sadd.s32 1, %s5637
                  %p5643 = scmp.ge.s32.totalorder %s5642, %s5625
                  %s5644 = scalar_select %p5643, 0, %s5642
                  %s5645 = smul.u32 %s5644, 8
                  %s5646 = smul.u32 %s5644, 8
                  %s5647 = scalar_lea.vmem %s5628, %s5645 [#allocation14]
                  %s5648 = scalar_lea.vmem %s5630, %s5646
                $region130: #{mlp_forward.1} parent=117 // loop_footer
                  %s5634 = sadd.s32 %s5632, 1
                $region131: #{mlp_forward.1} parent=117 // loop_footer_branch
                  %5631 = sbr.rel target = $region127
                $region132: #{mlp_forward.1} parent=117 // loop_exit
                  _
              $region118: #{mlp_forward.1} parent=95 // pred_fallthru
                _
              // Predicated region
              $region133: #{mlp_forward.1} parent=95 // pred_check
                _
              $region134: #{mlp_forward.1} parent=95 // pred_check_branch
                %5650 = sbr.rel target = $region136
              $region135: #{mlp_forward.1} parent=95 // pred_region
                _
              $region136: #{mlp_forward.1} parent=95 // pred_fallthru
                _
            $region96: #{mlp_forward.1} parent=91 // pred_fallthru
              _
            // Predicated region
            $region97: #{mlp_forward.1} parent=91 // pred_check
              _
            $region98: #{mlp_forward.1} parent=91 // pred_check_branch
              %5433 = sbr.rel target = $region100
            $region99: #{mlp_forward.1} parent=91 // pred_region
              %s5435 = sshrl.u32 %s5422, 5
              // While loop
              $region101: #{mlp_forward.1} parent=99 // loop_pre_header
                _
              $region102: #{mlp_forward.1} parent=99 // loop_header
                %s5437 = sphi 0, %s5439
                %p5438 = scmp.ge.s32.totalorder %s5437, %s5435
                %s5442 = sphi 0, %s5511
                %s5443 = sphi %s5415, %s5514
                %s5444 = sphi %s5426, %s5515
              $region103: #{mlp_forward.1} parent=99 // loop_header_branch
                %5441 = sbr.rel (%p5438) target = $region107
              $region104: #{mlp_forward.1} parent=99 // loop_body
                %v5445 = vld [vmem:[%s5443] sm:$0xff]
                %5446 = vst [vmem:[%s5444] sm:$0xff] %v5445
                %v5447 = vld [vmem:[%s5443 + $0x8] sm:$0xff]
                %5448 = vst [vmem:[%s5444 + $0x8] sm:$0xff] %v5447
                %v5449 = vld [vmem:[%s5443 + $0x10] sm:$0xff]
                %5450 = vst [vmem:[%s5444 + $0x10] sm:$0xff] %v5449
                %v5451 = vld [vmem:[%s5443 + $0x18] sm:$0xff]
                %5452 = vst [vmem:[%s5444 + $0x18] sm:$0xff] %v5451
                %v5453 = vld [vmem:[%s5443 + $0x20] sm:$0xff]
                %5454 = vst [vmem:[%s5444 + $0x20] sm:$0xff] %v5453
                %v5455 = vld [vmem:[%s5443 + $0x28] sm:$0xff]
                %5456 = vst [vmem:[%s5444 + $0x28] sm:$0xff] %v5455
                %v5457 = vld [vmem:[%s5443 + $0x30] sm:$0xff]
                %5458 = vst [vmem:[%s5444 + $0x30] sm:$0xff] %v5457
                %v5459 = vld [vmem:[%s5443 + $0x38] sm:$0xff]
                %5460 = vst [vmem:[%s5444 + $0x38] sm:$0xff] %v5459
                %v5461 = vld [vmem:[%s5443 + $0x40] sm:$0xff]
                %5462 = vst [vmem:[%s5444 + $0x40] sm:$0xff] %v5461
                %v5463 = vld [vmem:[%s5443 + $0x48] sm:$0xff]
                %5464 = vst [vmem:[%s5444 + $0x48] sm:$0xff] %v5463
                %v5465 = vld [vmem:[%s5443 + $0x50] sm:$0xff]
                %5466 = vst [vmem:[%s5444 + $0x50] sm:$0xff] %v5465
                %v5467 = vld [vmem:[%s5443 + $0x58] sm:$0xff]
                %5468 = vst [vmem:[%s5444 + $0x58] sm:$0xff] %v5467
                %v5469 = vld [vmem:[%s5443 + $0x60] sm:$0xff]
                %5470 = vst [vmem:[%s5444 + $0x60] sm:$0xff] %v5469
                %v5471 = vld [vmem:[%s5443 + $0x68] sm:$0xff]
                %5472 = vst [vmem:[%s5444 + $0x68] sm:$0xff] %v5471
                %v5473 = vld [vmem:[%s5443 + $0x70] sm:$0xff]
                %5474 = vst [vmem:[%s5444 + $0x70] sm:$0xff] %v5473
                %v5475 = vld [vmem:[%s5443 + $0x78] sm:$0xff]
                %5476 = vst [vmem:[%s5444 + $0x78] sm:$0xff] %v5475
                %v5477 = vld [vmem:[%s5443 + $0x80] sm:$0xff]
                %5478 = vst [vmem:[%s5444 + $0x80] sm:$0xff] %v5477
                %v5479 = vld [vmem:[%s5443 + $0x88] sm:$0xff]
                %5480 = vst [vmem:[%s5444 + $0x88] sm:$0xff] %v5479
                %v5481 = vld [vmem:[%s5443 + $0x90] sm:$0xff]
                %5482 = vst [vmem:[%s5444 + $0x90] sm:$0xff] %v5481
                %v5483 = vld [vmem:[%s5443 + $0x98] sm:$0xff]
                %5484 = vst [vmem:[%s5444 + $0x98] sm:$0xff] %v5483
                %v5485 = vld [vmem:[%s5443 + $0xa0] sm:$0xff]
                %5486 = vst [vmem:[%s5444 + $0xa0] sm:$0xff] %v5485
                %v5487 = vld [vmem:[%s5443 + $0xa8] sm:$0xff]
                %5488 = vst [vmem:[%s5444 + $0xa8] sm:$0xff] %v5487
                %v5489 = vld [vmem:[%s5443 + $0xb0] sm:$0xff]
                %5490 = vst [vmem:[%s5444 + $0xb0] sm:$0xff] %v5489
                %v5491 = vld [vmem:[%s5443 + $0xb8] sm:$0xff]
                %5492 = vst [vmem:[%s5444 + $0xb8] sm:$0xff] %v5491
                %v5493 = vld [vmem:[%s5443 + $0xc0] sm:$0xff]
                %5494 = vst [vmem:[%s5444 + $0xc0] sm:$0xff] %v5493
                %v5495 = vld [vmem:[%s5443 + $0xc8] sm:$0xff]
                %5496 = vst [vmem:[%s5444 + $0xc8] sm:$0xff] %v5495
                %v5497 = vld [vmem:[%s5443 + $0xd0] sm:$0xff]
                %5498 = vst [vmem:[%s5444 + $0xd0] sm:$0xff] %v5497
                %v5499 = vld [vmem:[%s5443 + $0xd8] sm:$0xff]
                %5500 = vst [vmem:[%s5444 + $0xd8] sm:$0xff] %v5499
                %v5501 = vld [vmem:[%s5443 + $0xe0] sm:$0xff]
                %5502 = vst [vmem:[%s5444 + $0xe0] sm:$0xff] %v5501
                %v5503 = vld [vmem:[%s5443 + $0xe8] sm:$0xff]
                %5504 = vst [vmem:[%s5444 + $0xe8] sm:$0xff] %v5503
                %v5505 = vld [vmem:[%s5443 + $0xf0] sm:$0xff]
                %5506 = vst [vmem:[%s5444 + $0xf0] sm:$0xff] %v5505
                %v5507 = vld [vmem:[%s5443 + $0xf8] sm:$0xff]
                %5508 = vst [vmem:[%s5444 + $0xf8] sm:$0xff] %v5507
                %s5509 = sadd.s32 1, %s5442
                %p5510 = scmp.ge.s32.totalorder %s5509, %s5435
                %s5511 = scalar_select %p5510, 0, %s5509
                %s5512 = smul.u32 %s5511, 256
                %s5513 = smul.u32 %s5511, 256
                %s5514 = scalar_lea.vmem %s5415, %s5512 [#allocation14]
                %s5515 = scalar_lea.vmem %s5426, %s5513
              $region105: #{mlp_forward.1} parent=99 // loop_footer
                %s5439 = sadd.s32 %s5437, 1
              $region106: #{mlp_forward.1} parent=99 // loop_footer_branch
                %5436 = sbr.rel target = $region102
              $region107: #{mlp_forward.1} parent=99 // loop_exit
                _
              %s5516 = sshrl.u32 %s5422, 5
              %s5517 = sand.u32 %s5422, 31
              %s5518 = smul.u32 %s5516, 32
              %s5519 = smul.u32 8, %s5518
              %s5520 = scalar_lea.vmem %s5415, %s5519 [#allocation14]
              %s5521 = smul.u32 8, %s5518
              %s5522 = scalar_lea.vmem %s5426, %s5521
              // While loop
              $region108: #{mlp_forward.1} parent=99 // loop_pre_header
                _
              $region109: #{mlp_forward.1} parent=99 // loop_header
                %s5524 = sphi 0, %s5526
                %p5525 = scmp.ge.s32.totalorder %s5524, %s5517
                %s5529 = sphi 0, %s5536
                %s5530 = sphi %s5520, %s5539
                %s5531 = sphi %s5522, %s5540
              $region110: #{mlp_forward.1} parent=99 // loop_header_branch
                %5528 = sbr.rel (%p5525) target = $region114
              $region111: #{mlp_forward.1} parent=99 // loop_body
                %v5532 = vld [vmem:[%s5530] sm:$0xff]
                %5533 = vst [vmem:[%s5531] sm:$0xff] %v5532
                %s5534 = sadd.s32 1, %s5529
                %p5535 = scmp.ge.s32.totalorder %s5534, %s5517
                %s5536 = scalar_select %p5535, 0, %s5534
                %s5537 = smul.u32 %s5536, 8
                %s5538 = smul.u32 %s5536, 8
                %s5539 = scalar_lea.vmem %s5520, %s5537 [#allocation14]
                %s5540 = scalar_lea.vmem %s5522, %s5538
              $region112: #{mlp_forward.1} parent=99 // loop_footer
                %s5526 = sadd.s32 %s5524, 1
              $region113: #{mlp_forward.1} parent=99 // loop_footer_branch
                %5523 = sbr.rel target = $region109
              $region114: #{mlp_forward.1} parent=99 // loop_exit
                _
            $region100: #{mlp_forward.1} parent=91 // pred_fallthru
              _
          $region92: #{mlp_forward.1} parent=87 // pred_fallthru
            _
          %5651 = vnop
        $region88: #{mlp_forward.1} parent=55 // pred_fallthru
          _
      $region56: #{mlp_forward.1} parent=5 // pred_fallthru
        _
      %p5652 = scmp.le.s32.totalorder 2, %s23
      // Predicated region
      $region137: #{mlp_forward.1} parent=5 // pred_check
        %p5653 = pneg %p5652
      $region138: #{mlp_forward.1} parent=5 // pred_check_branch
        %5655 = sbr.rel (%p5653) target = $region140
      $region139: #{mlp_forward.1} parent=5 // pred_region
        %s5656 = ssub.s32 %s23, 2
        // Predicated region
        $region141: #{mlp_forward.1} parent=139 // pred_check
          %p5657 = pneg %p246
        $region142: #{mlp_forward.1} parent=139 // pred_check_branch
          %5659 = sbr.rel (%p5657) target = $region144
        $region143: #{mlp_forward.1} parent=139 // pred_region
          %s5660 = sand.u32 %s231, 1
          %s5661 = sand.u32 %s231, 1
          %s5662 = smul.addr %s5661, 256
          %s5663 = scalar_lea.vmem [#allocation14], %s5662
        $region144: #{mlp_forward.1} parent=139 // pred_fallthru
          _
      $region140: #{mlp_forward.1} parent=5 // pred_fallthru
        _
    $region6: #{mlp_forward.1} parent=1 // loop_footer
      %s27 = sadd.s32 1, %s23
    $region7: #{mlp_forward.1} parent=1 // loop_footer_branch
      %22 = sbr.rel target = $region3
    $region8: #{mlp_forward.1} parent=1 // loop_exit
      _
    %5664 = vsyncpa [#allocation4], 1
    %s5665 = scalar_lea.sflag [#allocation4], 1
    %5666 = vsyncpa %s5665, 1
    %5667 = vsyncpa [#allocation6], 1
    %5668 = vsyncpa [#allocation9], 1
    %5669 = vsyncpa [#allocation12], 1

</llo_original>
